<compile_context>
chip_gen: v7x
topology: tpu7x:2x2x1
jax: 0.10.0
libtpu: 0.0.40
codegen_flags: <defaults>
</compile_context>

<pallas_src>
import functools

import jax
import jax.numpy as jnp
import numpy as np
from jax.experimental import pallas as pl
from jax.experimental.pallas import tpu as pltpu


def _round_up(n, m):
    return ((n + m - 1) // m) * m


# ----------------------------------------------------------------------------- GELU
def _gelu(x):
    c0 = 0.7978845608028654  # sqrt(2/pi)
    return 0.5 * x * (1.0 + jnp.tanh(c0 * (x + 0.044715 * x * x * x)))


def _gelu_bf16(x):
    # GELU in f32 (v5e has no bf16 VPU/EUP), cast to bf16 only for the MXU operand.
    return _gelu(x).astype(jnp.float32).astype(jnp.bfloat16)


# ----------------------------------------------------------------------------- kernel
def convolution_head_kernel(n_layer, c, H, packed_per_token, *refs):
    """refs = (x_ref, emb_ref, *hidden_param_refs, wout_ref, bout_ref, o_ref, a_ref).

    x_ref    : (TM, E)      bf16  transformer latents, one row tile (block-major rows)
    emb_ref  : (TM, c*H)    bf16  value embedding, block-major
    hidden   : alternating (weight, bias) refs: deconv, (n_layer-1) conv1x1, n_layer
               blockconv, (n_layer-1) linear
    wout_ref : (H, TV)      bf16  vocab-projection weight tile
    bout_ref : (1, TV)      f32   vocab-projection bias tile
    o_ref    : (TM, TV)           logits block for (row tile, vocab tile, block slot)
    a_ref    : (c, TM, H)   bf16  scratch: cached pre-projection activation per block slot
    """
    x_ref, emb_ref = refs[0], refs[1]
    wout_ref, bout_ref = refs[-4], refs[-3]
    o_ref, a_ref = refs[-2], refs[-1]
    hidden = refs[2:-4]

    vtile = pl.program_id(1)   # vocab tile (middle axis: wout tile re-fetched only here)
    slot = pl.program_id(2)    # block slot r (innermost: wout tile stays resident across it)

    n_pairs = 3 * n_layer - 1
    pairs = [(hidden[2 * i], hidden[2 * i + 1]) for i in range(n_pairs)]
    w_dec, b_dec = pairs[0]
    conv1x1 = pairs[1:n_layer]
    blockconv = pairs[n_layer:2 * n_layer]
    linear = pairs[2 * n_layer:]

    def mm(a_bf16, w_ref, b_ref):
        # bf16 operands, f32 MXU accumulation, f32 bias add.
        return jnp.dot(a_bf16, w_ref[...],
                       preferred_element_type=jnp.float32) + b_ref[...]

    # ---- hidden stack: run once per row tile, cache result in VMEM scratch --------
    @pl.when(jnp.logical_and(vtile == 0, slot == 0))
    def _():
        # deconvolution branch: GELU -> Deconv (one [TM, E] @ [E, c*H] matmul)
        x_f32 = x_ref[...].astype(jnp.float32)
        h = mm(_gelu_bf16(x_f32), w_dec, b_dec)                     # (TM, c*H) f32

        if packed_per_token:
            # Small H: per-token weights packed block-diagonal (c*H, c*H) -> one deep-K MXU
            # push per layer (avoids c shallow-K pushes and non-lane-aligned slices).
            for w, b in conv1x1:
                h = mm(_gelu_bf16(h), w, b)
            h_bf = h.astype(jnp.bfloat16)                           # park residual in bf16
            wb0, bb0 = blockconv[0]
            e = mm(emb_ref[...], wb0, bb0)                          # no leading GELU
            for w, b in blockconv[1:]:
                e = mm(_gelu_bf16(e), w, b)
            y = e + h_bf.astype(jnp.float32)
            for w, b in linear:
                y = mm(_gelu_bf16(y), w, b)
            yg = _gelu_bf16(y)                                      # (TM, c*H)
            for r in range(c):
                a_ref[r] = yg[:, r * H:(r + 1) * H]
        else:
            # Large H: per-token weights stay plain (H, H).  Residual add + Linear stack +
            # final GELU are processed slot-by-slot (a_ref[r] written before slot r+1) to
            # keep the live set small (v5e spill pressure on the single store slot).
            hp = [h[:, r * H:(r + 1) * H] for r in range(c)]
            for w, b in conv1x1:
                wv, bv = w[...], b[...]
                hp = [jnp.dot(_gelu_bf16(t), wv,
                              preferred_element_type=jnp.float32) + bv for t in hp]
            hp = [t.astype(jnp.bfloat16) for t in hp]               # park residual in bf16
            wb0, bb0 = blockconv[0]
            e = mm(emb_ref[...], wb0, bb0)
            for w, b in blockconv[1:]:
                e = mm(_gelu_bf16(e), w, b)
            for r in range(c):
                yr = e[:, r * H:(r + 1) * H] + hp[r].astype(jnp.float32)
                for w, b in linear:
                    yr = mm(_gelu_bf16(yr), w, b)
                a_ref[r] = _gelu_bf16(yr)

    # ---- vocab projection for this (row tile, vocab tile, block slot) -------------
    proj = jnp.dot(a_ref[slot], wout_ref[...], preferred_element_type=jnp.float32)
    o_ref[...] = (proj + bout_ref[...]).astype(o_ref.dtype)


# ----------------------------------------------------------------------------- params
def init_params(key, E, H, c, V, n_layer):
    ks = iter(jax.random.split(key, 256))
    s = 0.1
    nrm = lambda shape: jax.random.normal(next(ks), shape, jnp.float32) * s
    p = {}
    p["Wdec"] = nrm((E, H, c))          # ConvTranspose1d weight [in, out, kernel]
    p["bdec"] = nrm((H,))
    p["Wc"] = [nrm((H, H)) for _ in range(n_layer - 1)]   # Conv1d(kernel=1) as [in, out]
    p["bc"] = [nrm((H,)) for _ in range(n_layer - 1)]
    p["Wb"] = [[[nrm((H, H)) for _j in range(r + 1)] for r in range(c)] for _ in range(n_layer)]
    p["bb"] = [[nrm((H,)) for _r in range(c)] for _ in range(n_layer)]
    p["Wl"] = [nrm((H, H)) for _ in range(n_layer - 1)]
    p["bl"] = [nrm((H,)) for _ in range(n_layer - 1)]
    p["Wout"] = nrm((H, V))
    p["bout"] = nrm((V,))
    table = nrm((V + 1, H))
    p["table"] = table.at[0].set(0.0)   # padding_idx=0
    return p


def pack_params(p, E, H, c, V, n_layer, V_pad, pack_per_token):
    """Repack weights for the block-major layout (bf16 weights, f32 biases).

    BlockConvolution weights are packed block-upper-triangular (c*H x c*H).  Per-token
    1x1-conv / Linear weights are packed block-diagonal only when `pack_per_token` (small H,
    to fill the MXU depth); otherwise they stay plain HxH.  The output projection stays a
    plain (H, V_pad) weight -- never kron-expanded over the block dimension.
    """
    bf16, f32 = jnp.bfloat16, jnp.float32
    cH = c * H
    tile_bias = lambda b: jnp.tile(b, c)[None, :].astype(f32)          # (H,) -> (1, c*H)
    blockdiag = lambda W: jnp.kron(jnp.eye(c, dtype=f32), W)            # (H,H) -> (c*H, c*H)

    hidden = []
    # Deconvolution: [TM, E] @ Wdec_mat -> [TM, c*H]; column block r == Wdec[:, :, r].
    Wdec_mat = jnp.transpose(p["Wdec"], (0, 2, 1)).reshape(E, cH)
    hidden += [Wdec_mat.astype(bf16), tile_bias(p["bdec"])]
    # 1x1 convolutions (per-token linear).
    for l in range(n_layer - 1):
        if pack_per_token:
            hidden += [blockdiag(p["Wc"][l]).astype(bf16), tile_bias(p["bc"][l])]
        else:
            hidden += [p["Wc"][l].astype(bf16), p["bc"][l][None, :].astype(f32)]
    # BlockConvolutions: block-upper-triangular (input block j feeds output block r iff j <= r).
    for l in range(n_layer):
        WB = jnp.zeros((cH, cH), f32)
        for r in range(c):
            for j in range(r + 1):
                WB = WB.at[j * H:(j + 1) * H, r * H:(r + 1) * H].set(p["Wb"][l][r][j])
        bB = jnp.concatenate([p["bb"][l][r] for r in range(c)])[None, :].astype(f32)
        hidden += [WB.astype(bf16), bB]
    # Linear(H, H) stack.
    for l in range(n_layer - 1):
        if pack_per_token:
            hidden += [blockdiag(p["Wl"][l]).astype(bf16), tile_bias(p["bl"][l])]
        else:
            hidden += [p["Wl"][l].astype(bf16), p["bl"][l][None, :].astype(f32)]
    # Output Linear(H, V): single (H, V_pad) weight, pad V -> V_pad (multiple of 128).
    wout = jnp.zeros((H, V_pad), f32).at[:, :V].set(p["Wout"]).astype(bf16)
    bout = jnp.zeros((1, V_pad), f32).at[0, :V].set(p["bout"])
    return hidden, wout, bout


# ----------------------------------------------------------------------------- wrapper
def convolution_head_pallas(x, value, table, hidden, wout, bout, *,
                            H, c, V, n_layer, block_m=None, block_v=None,
                            logits_dtype=jnp.bfloat16):
    N, Tp, E = x.shape
    T = Tp * c
    cH = c * H
    M = N * Tp

    # ---- chip-adaptive tile defaults & VMEM budget --------------------------------
    try:
        vmem_cap = int(pltpu.get_tpu_info().vmem_capacity_bytes)
    except Exception:
        vmem_cap = 64 * 1024 * 1024            # conservative fallback (v7x per-TC VMEM)
    big_vmem = vmem_cap >= 96 * 1024 * 1024    # v5e/v6e (128 MiB) vs v7x (64 MiB)
    if block_m is None:
        block_m = 512 if big_vmem else 256
    if block_v is None:
        block_v = 4096 if big_vmem else 2048
    # Never claim the whole physical VMEM: leave headroom for pipeline buffers / spill.
    vmem_limit = min((vmem_cap * 3) // 4, 100 * 1024 * 1024)

    # ---- row tiling (GM >= 2 when possible so v7x megacore can use both TCs) ------
    TM = min(block_m, max(128, _round_up(M, 128)))
    if M > 128 and _round_up(M, TM) // TM < 2:
        TM = max(128, _round_up((M + 1) // 2, 128))
    M_pad = _round_up(M, TM)
    GM = M_pad // TM

    # ---- vocab tiling: TV <= block_v and always divides V_pad (no whole-vocab tile)
    V_pad_in = wout.shape[1]                   # pack_params pads V to a 128 multiple
    TV = min(block_v, V_pad_in)
    V_pad = _round_up(V_pad_in, TV)
    if V_pad != V_pad_in:
        # TODO(synk): fold this TV-alignment into pack_params (one-time) instead of per call.
        wout = jnp.zeros((H, V_pad), wout.dtype).at[:, :V_pad_in].set(wout)
        bout = jnp.zeros((1, V_pad), bout.dtype).at[:, :V_pad_in].set(bout)
    GV = V_pad // TV

    # ---- inputs: flatten (N, T') into one "parallel" row axis; x parked in bf16 ---
    x2 = jnp.zeros((M_pad, E), jnp.bfloat16).at[:M].set(x.reshape(M, E).astype(jnp.bfloat16))
    # TODO(synk): the nn.Embedding row gather (padding_idx=0) stays in JAX glue; a fused
    # in-kernel gather would need scalar-prefetched indices + a VMEM-resident table.
    emb = jnp.take(table, value[:, :T], axis=0).reshape(M, cH).astype(jnp.bfloat16)
    emb = jnp.zeros((M_pad, cH), jnp.bfloat16).at[:M].set(emb)

    packed_per_token = (n_layer > 1) and (hidden[2].shape[0] == cH)

    def build(const_pipeline_mode):
        const_kwargs = ({} if const_pipeline_mode is None
                        else {"pipeline_mode": const_pipeline_mode})
        in_specs = [
            pl.BlockSpec((TM, E), lambda m, v, r: (m, 0)),
            pl.BlockSpec((TM, cH), lambda m, v, r: (m, 0)),
        ]
        # Grid-constant weights: constant index_map -> resident copy reused across steps.
        in_specs += [pl.BlockSpec(arr.shape, lambda m, v, r: (0, 0), **const_kwargs)
                     for arr in hidden]
        in_specs += [
            pl.BlockSpec((H, TV), lambda m, v, r: (0, v)),   # vocab weight tile (resident
            pl.BlockSpec((1, TV), lambda m, v, r: (0, v)),   #  across the inner slot axis)
        ]
        # Output is block-major 2-D [M_pad, c*V_pad]; (slot, vocab-tile) selects a
        # lane-dense (TM, TV) column block at index r*GV + v.
        out_spec = pl.BlockSpec((TM, TV), lambda m, v, r: (m, r * GV + v))
        return pl.pallas_call(
            functools.partial(convolution_head_kernel, n_layer, c, H, packed_per_token),
            out_shape=jax.ShapeDtypeStruct((M_pad, c * V_pad), logits_dtype),
            grid_spec=pltpu.PrefetchScalarGridSpec(
                num_scalar_prefetch=0,
                grid=(GM, GV, c),
                in_specs=in_specs,
                out_specs=out_spec,
                scratch_shapes=[pltpu.VMEM((c, TM, H), jnp.bfloat16)],
            ),
            # NOTE: the vocab/slot axes MUST stay "arbitrary": the a_ref cache relies on the
            # core that ran (m, 0, 0) also running the later (v, r) steps for that row tile.
            compiler_params=pltpu.CompilerParams(
                dimension_semantics=("parallel", "arbitrary", "arbitrary"),
                vmem_limit_bytes=vmem_limit,
            ),
        )

    try:
        # Single-buffer the grid-constant weights (they never change block index; default
        # double-buffering only wastes VMEM -- matters on v7x's 64 MiB).
        out = build(pl.Buffered(1))(x2, emb, *hidden, wout, bout)
    except Exception:
        # pipeline_mode / Buffered(1) unsupported on this jax build -> default buffering.
        out = build(None)(x2, emb, *hidden, wout, bout)

    # [M, c*V_pad] block-major -> [N, T, V] logits (pure reshape + vocab-pad slice).
    return out[:M].reshape(N, Tp, c, V_pad)[..., :V].reshape(N, T, V)


# ----------------------------------------------------------------------------- pure-JAX reference
def ref_forward(p, x, value, *, c, n_layer):
    """Independent reference using the raw per-module params.  It emulates the kernel's
    numerics (bf16 HBM latents, bf16 matmul operands, f32 accumulation, bf16-parked residual)."""
    N, Tp, E = x.shape
    H = p["bdec"].shape[0]
    T = Tp * c
    bf16, f32 = jnp.bfloat16, jnp.float32

    def mm(a, w):
        return jnp.dot(a.astype(bf16), w.astype(bf16), preferred_element_type=f32)

    # deconvolution branch (mirror the kernel's bf16 HBM storage of x)
    xq = x.astype(bf16).astype(f32).reshape(N * Tp, E)
    g = _gelu(xq)
    h = jnp.stack([mm(g, p["Wdec"][:, :, r]) + p["bdec"] for r in range(c)], axis=1)
    h = h.reshape(N * T, H)
    for l in range(n_layer - 1):
        h = mm(_gelu(h), p["Wc"][l]) + p["bc"][l]
    h = h.astype(bf16).astype(f32)   # mirror the kernel's bf16 residual parking

    # value embedding (+ optional spatial_encoding: None here)
    emb = p["table"][value][:, :T].reshape(N * T, H)

    def blockconv(e, Wb, bb):
        eb = e.reshape(N * Tp, c, H)
        outs = []
        for r in range(c):
            acc = jnp.broadcast_to(bb[r], (N * Tp, H)).astype(f32)
            for j in range(r + 1):
                acc = acc + mm(eb[:, j], Wb[r][j])
            outs.append(acc)
        return jnp.stack(outs, axis=1).reshape(N * T, H)

    e = blockconv(emb, p["Wb"][0], p["bb"][0])
    for l in range(1, n_layer):
        e = blockconv(_gelu(e), p["Wb"][l], p["bb"][l])
    y = e + h
    # linear branch
    for l in range(n_layer - 1):
        y = mm(_gelu(y), p["Wl"][l]) + p["bl"][l]
    logits = mm(_gelu(y), p["Wout"]) + p["bout"]
    return logits.reshape(N, T, -1)


# ----------------------------------------------------------------------------- main
if __name__ == "__main__":
    N, TP, E, H, C, NUM_VOCAB, N_LAYER = 2, 8, 32, 32, 4, 32, 2
    T = TP * C

    key = jax.random.PRNGKey(0)
    k_x, k_v, k_p = jax.random.split(key, 3)

    x = jax.random.normal(k_x, (N, TP, E), jnp.float32)           # transformer latents [N, T', E]
    value = jax.random.randint(k_v, (N, T), 0, NUM_VOCAB + 1)     # target values [N, T] (0 = padding)
    depth = jnp.zeros((N, T), jnp.int32)                          # unused by forward
    pos = jnp.zeros((N, T, 3), jnp.int32)                         # unused (spatial_encoding=None)

    params = init_params(k_p, E, H, C, NUM_VOCAB, N_LAYER)
    V_pad = _round_up(NUM_VOCAB, 128)
    # Per-token weights packed block-diagonal only for small H (MXU-depth crossover:
    # ~64 on v5e, ~128 on v6e/v7x); plain HxH + per-slot processing for large H.
    PACK_PER_TOKEN = H < 128
    hidden, wout, bout = pack_params(params, E, H, C, NUM_VOCAB, N_LAYER, V_pad,
                                     PACK_PER_TOKEN)

    logits = convolution_head_pallas(x, value, params["table"], hidden, wout, bout,
                                     H=H, c=C, V=NUM_VOCAB, n_layer=N_LAYER,
                                     logits_dtype=jnp.bfloat16)
    logits = jax.block_until_ready(logits)

    ref = ref_forward(params, x, value, c=C, n_layer=N_LAYER)
    np.testing.assert_allclose(np.asarray(logits.astype(jnp.float32)),
                               np.asarray(ref), rtol=2e-2, atol=5e-3)

    print("KERNEL_OK")
</pallas_src>

<mosaic_0001>
module attributes {stable_mosaic.version = 11 : i64} {
  func.func @convolution_head_kernel(%arg0: i32, %arg1: i32, %arg2: i32, %arg3: memref<128x32xbf16, #tpu.memory_space<vmem>>, %arg4: memref<128x128xbf16, #tpu.memory_space<vmem>>, %arg5: memref<32x128xbf16, #tpu.memory_space<vmem>>, %arg6: memref<1x128xf32, #tpu.memory_space<vmem>>, %arg7: memref<128x128xbf16, #tpu.memory_space<vmem>>, %arg8: memref<1x128xf32, #tpu.memory_space<vmem>>, %arg9: memref<128x128xbf16, #tpu.memory_space<vmem>>, %arg10: memref<1x128xf32, #tpu.memory_space<vmem>>, %arg11: memref<128x128xbf16, #tpu.memory_space<vmem>>, %arg12: memref<1x128xf32, #tpu.memory_space<vmem>>, %arg13: memref<128x128xbf16, #tpu.memory_space<vmem>>, %arg14: memref<1x128xf32, #tpu.memory_space<vmem>>, %arg15: memref<32x128xbf16, #tpu.memory_space<vmem>>, %arg16: memref<1x128xf32, #tpu.memory_space<vmem>>, %arg17: memref<128x128xbf16, #tpu.memory_space<vmem>>, %arg18: memref<4x128x32xbf16, #tpu.memory_space<vmem>>) attributes {dimension_semantics = [#tpu.dimension_semantics<parallel>, #tpu.dimension_semantics<arbitrary>, #tpu.dimension_semantics<arbitrary>], iteration_bounds = array<i64: 1, 1, 4>, scalar_prefetch = 0 : i64, scratch_operands = 1 : i64, tpu.core_type = #tpu.core_type<tc>, window_params = [{transform_indices = @transform_0, window_bounds = array<i64: 128, 32>}, {transform_indices = @transform_1, window_bounds = array<i64: 128, 128>}, {pipeline_mode = #tpu.pipeline_mode<synchronous>, transform_indices = @transform_2, window_bounds = array<i64: 32, 128>}, {pipeline_mode = #tpu.pipeline_mode<synchronous>, transform_indices = @transform_3, window_bounds = array<i64: 1, 128>}, {pipeline_mode = #tpu.pipeline_mode<synchronous>, transform_indices = @transform_4, window_bounds = array<i64: 128, 128>}, {pipeline_mode = #tpu.pipeline_mode<synchronous>, transform_indices = @transform_5, window_bounds = array<i64: 1, 128>}, {pipeline_mode = #tpu.pipeline_mode<synchronous>, transform_indices = @transform_6, window_bounds = array<i64: 128, 128>}, {pipeline_mode = #tpu.pipeline_mode<synchronous>, transform_indices = @transform_7, window_bounds = array<i64: 1, 128>}, {pipeline_mode = #tpu.pipeline_mode<synchronous>, transform_indices = @transform_8, window_bounds = array<i64: 128, 128>}, {pipeline_mode = #tpu.pipeline_mode<synchronous>, transform_indices = @transform_9, window_bounds = array<i64: 1, 128>}, {pipeline_mode = #tpu.pipeline_mode<synchronous>, transform_indices = @transform_10, window_bounds = array<i64: 128, 128>}, {pipeline_mode = #tpu.pipeline_mode<synchronous>, transform_indices = @transform_11, window_bounds = array<i64: 1, 128>}, {transform_indices = @transform_12, window_bounds = array<i64: 32, 128>}, {transform_indices = @transform_13, window_bounds = array<i64: 1, 128>}, {transform_indices = @transform_14, window_bounds = array<i64: 128, 128>}]} {
    %c0_i32 = arith.constant 0 : i32
    %0 = arith.cmpi eq, %arg1, %c0_i32 : i32
    %c0_i32_0 = arith.constant 0 : i32
    %1 = arith.cmpi eq, %arg2, %c0_i32_0 : i32
    %2 = arith.andi %0, %1 : i1
    %3 = arith.extui %2 : i1 to i32
    %c0_i32_1 = arith.constant 0 : i32
    %4 = arith.cmpi ne, %3, %c0_i32_1 : i32
    scf.if %4 {
      %c0_9 = arith.constant 0 : index
      %c0_10 = arith.constant 0 : index
      %15 = vector.load %arg3[%c0_9, %c0_10] : memref<128x32xbf16, #tpu.memory_space<vmem>>, vector<128x32xbf16>
      %16 = arith.extf %15 : vector<128x32xbf16> to vector<128x32xf32>
      %cst_11 = arith.constant 5.000000e-01 : f32
      %17 = vector.broadcast %cst_11 : f32 to vector<128x32xf32>
      %18 = arith.mulf %17, %16 : vector<128x32xf32>
      %cst_12 = arith.constant 4.471500e-02 : f32
      %19 = vector.broadcast %cst_12 : f32 to vector<128x32xf32>
      %20 = arith.mulf %19, %16 : vector<128x32xf32>
      %21 = arith.mulf %20, %16 : vector<128x32xf32>
      %22 = arith.mulf %21, %16 : vector<128x32xf32>
      %23 = arith.addf %16, %22 : vector<128x32xf32>
      %cst_13 = arith.constant 0.797884583 : f32
      %24 = vector.broadcast %cst_13 : f32 to vector<128x32xf32>
      %25 = arith.mulf %24, %23 : vector<128x32xf32>
      %26 = math.tanh %25 : vector<128x32xf32>
      %cst_14 = arith.constant 1.000000e+00 : f32
      %27 = vector.broadcast %cst_14 : f32 to vector<128x32xf32>
      %28 = arith.addf %27, %26 : vector<128x32xf32>
      %29 = arith.mulf %18, %28 : vector<128x32xf32>
      %30 = arith.truncf %29 : vector<128x32xf32> to vector<128x32xbf16>
      %c0_15 = arith.constant 0 : index
      %c0_16 = arith.constant 0 : index
      %31 = vector.load %arg5[%c0_15, %c0_16] : memref<32x128xbf16, #tpu.memory_space<vmem>>, vector<32x128xbf16>
      %cst_17 = arith.constant dense<0.000000e+00> : vector<128x128xf32>
      %32 = tpu.matmul %30, %31, %cst_17 {dimension_numbers = #tpu.dot_dimension_numbers<[1], [0], [0], [1], [0, 0, 1, 1], [], []>} : vector<128x32xbf16>, vector<32x128xbf16>, vector<128x128xf32> -> vector<128x128xf32>
      %c0_18 = arith.constant 0 : index
      %c0_19 = arith.constant 0 : index
      %33 = vector.load %arg6[%c0_18, %c0_19] : memref<1x128xf32, #tpu.memory_space<vmem>>, vector<1x128xf32>
      %34 = vector.broadcast %33 : vector<1x128xf32> to vector<128x128xf32>
      %35 = arith.addf %32, %34 : vector<128x128xf32>
      %cst_20 = arith.constant 5.000000e-01 : f32
      %36 = vector.broadcast %cst_20 : f32 to vector<128x128xf32>
      %37 = arith.mulf %36, %35 : vector<128x128xf32>
      %cst_21 = arith.constant 4.471500e-02 : f32
      %38 = vector.broadcast %cst_21 : f32 to vector<128x128xf32>
      %39 = arith.mulf %38, %35 : vector<128x128xf32>
      %40 = arith.mulf %39, %35 : vector<128x128xf32>
      %41 = arith.mulf %40, %35 : vector<128x128xf32>
      %42 = arith.addf %35, %41 : vector<128x128xf32>
      %cst_22 = arith.constant 0.797884583 : f32
      %43 = vector.broadcast %cst_22 : f32 to vector<128x128xf32>
      %44 = arith.mulf %43, %42 : vector<128x128xf32>
      %45 = math.tanh %44 : vector<128x128xf32>
      %cst_23 = arith.constant 1.000000e+00 : f32
      %46 = vector.broadcast %cst_23 : f32 to vector<128x128xf32>
      %47 = arith.addf %46, %45 : vector<128x128xf32>
      %48 = arith.mulf %37, %47 : vector<128x128xf32>
      %49 = arith.truncf %48 : vector<128x128xf32> to vector<128x128xbf16>
      %c0_24 = arith.constant 0 : index
      %c0_25 = arith.constant 0 : index
      %50 = vector.load %arg7[%c0_24, %c0_25] : memref<128x128xbf16, #tpu.memory_space<vmem>>, vector<128x128xbf16>
      %cst_26 = arith.constant dense<0.000000e+00> : vector<128x128xf32>
      %51 = tpu.matmul %49, %50, %cst_26 {dimension_numbers = #tpu.dot_dimension_numbers<[1], [0], [0], [1], [0, 0, 1, 1], [], []>} : vector<128x128xbf16>, vector<128x128xbf16>, vector<128x128xf32> -> vector<128x128xf32>
      %c0_27 = arith.constant 0 : index
      %c0_28 = arith.constant 0 : index
      %52 = vector.load %arg8[%c0_27, %c0_28] : memref<1x128xf32, #tpu.memory_space<vmem>>, vector<1x128xf32>
      %53 = vector.broadcast %52 : vector<1x128xf32> to vector<128x128xf32>
      %54 = arith.addf %51, %53 : vector<128x128xf32>
      %55 = arith.truncf %54 : vector<128x128xf32> to vector<128x128xbf16>
      %c0_29 = arith.constant 0 : index
      %c0_30 = arith.constant 0 : index
      %56 = vector.load %arg4[%c0_29, %c0_30] : memref<128x128xbf16, #tpu.memory_space<vmem>>, vector<128x128xbf16>
      %c0_31 = arith.constant 0 : index
      %c0_32 = arith.constant 0 : index
      %57 = vector.load %arg9[%c0_31, %c0_32] : memref<128x128xbf16, #tpu.memory_space<vmem>>, vector<128x128xbf16>
      %cst_33 = arith.constant dense<0.000000e+00> : vector<128x128xf32>
      %58 = tpu.matmul %56, %57, %cst_33 {dimension_numbers = #tpu.dot_dimension_numbers<[1], [0], [0], [1], [0, 0, 1, 1], [], []>} : vector<128x128xbf16>, vector<128x128xbf16>, vector<128x128xf32> -> vector<128x128xf32>
      %c0_34 = arith.constant 0 : index
      %c0_35 = arith.constant 0 : index
      %59 = vector.load %arg10[%c0_34, %c0_35] : memref<1x128xf32, #tpu.memory_space<vmem>>, vector<1x128xf32>
      %60 = vector.broadcast %59 : vector<1x128xf32> to vector<128x128xf32>
      %61 = arith.addf %58, %60 : vector<128x128xf32>
      %cst_36 = arith.constant 5.000000e-01 : f32
      %62 = vector.broadcast %cst_36 : f32 to vector<128x128xf32>
      %63 = arith.mulf %62, %61 : vector<128x128xf32>
      %cst_37 = arith.constant 4.471500e-02 : f32
      %64 = vector.broadcast %cst_37 : f32 to vector<128x128xf32>
      %65 = arith.mulf %64, %61 : vector<128x128xf32>
      %66 = arith.mulf %65, %61 : vector<128x128xf32>
      %67 = arith.mulf %66, %61 : vector<128x128xf32>
      %68 = arith.addf %61, %67 : vector<128x128xf32>
      %cst_38 = arith.constant 0.797884583 : f32
      %69 = vector.broadcast %cst_38 : f32 to vector<128x128xf32>
      %70 = arith.mulf %69, %68 : vector<128x128xf32>
      %71 = math.tanh %70 : vector<128x128xf32>
      %cst_39 = arith.constant 1.000000e+00 : f32
      %72 = vector.broadcast %cst_39 : f32 to vector<128x128xf32>
      %73 = arith.addf %72, %71 : vector<128x128xf32>
      %74 = arith.mulf %63, %73 : vector<128x128xf32>
      %75 = arith.truncf %74 : vector<128x128xf32> to vector<128x128xbf16>
      %c0_40 = arith.constant 0 : index
      %c0_41 = arith.constant 0 : index
      %76 = vector.load %arg11[%c0_40, %c0_41] : memref<128x128xbf16, #tpu.memory_space<vmem>>, vector<128x128xbf16>
      %cst_42 = arith.constant dense<0.000000e+00> : vector<128x128xf32>
      %77 = tpu.matmul %75, %76, %cst_42 {dimension_numbers = #tpu.dot_dimension_numbers<[1], [0], [0], [1], [0, 0, 1, 1], [], []>} : vector<128x128xbf16>, vector<128x128xbf16>, vector<128x128xf32> -> vector<128x128xf32>
      %c0_43 = arith.constant 0 : index
      %c0_44 = arith.constant 0 : index
      %78 = vector.load %arg12[%c0_43, %c0_44] : memref<1x128xf32, #tpu.memory_space<vmem>>, vector<1x128xf32>
      %79 = vector.broadcast %78 : vector<1x128xf32> to vector<128x128xf32>
      %80 = arith.addf %77, %79 : vector<128x128xf32>
      %81 = arith.extf %55 : vector<128x128xbf16> to vector<128x128xf32>
      %82 = arith.addf %80, %81 : vector<128x128xf32>
      %cst_45 = arith.constant 5.000000e-01 : f32
      %83 = vector.broadcast %cst_45 : f32 to vector<128x128xf32>
      %84 = arith.mulf %83, %82 : vector<128x128xf32>
      %cst_46 = arith.constant 4.471500e-02 : f32
      %85 = vector.broadcast %cst_46 : f32 to vector<128x128xf32>
      %86 = arith.mulf %85, %82 : vector<128x128xf32>
      %87 = arith.mulf %86, %82 : vector<128x128xf32>
      %88 = arith.mulf %87, %82 : vector<128x128xf32>
      %89 = arith.addf %82, %88 : vector<128x128xf32>
      %cst_47 = arith.constant 0.797884583 : f32
      %90 = vector.broadcast %cst_47 : f32 to vector<128x128xf32>
      %91 = arith.mulf %90, %89 : vector<128x128xf32>
      %92 = math.tanh %91 : vector<128x128xf32>
      %cst_48 = arith.constant 1.000000e+00 : f32
      %93 = vector.broadcast %cst_48 : f32 to vector<128x128xf32>
      %94 = arith.addf %93, %92 : vector<128x128xf32>
      %95 = arith.mulf %84, %94 : vector<128x128xf32>
      %96 = arith.truncf %95 : vector<128x128xf32> to vector<128x128xbf16>
      %c0_49 = arith.constant 0 : index
      %c0_50 = arith.constant 0 : index
      %97 = vector.load %arg13[%c0_49, %c0_50] : memref<128x128xbf16, #tpu.memory_space<vmem>>, vector<128x128xbf16>
      %cst_51 = arith.constant dense<0.000000e+00> : vector<128x128xf32>
      %98 = tpu.matmul %96, %97, %cst_51 {dimension_numbers = #tpu.dot_dimension_numbers<[1], [0], [0], [1], [0, 0, 1, 1], [], []>} : vector<128x128xbf16>, vector<128x128xbf16>, vector<128x128xf32> -> vector<128x128xf32>
      %c0_52 = arith.constant 0 : index
      %c0_53 = arith.constant 0 : index
      %99 = vector.load %arg14[%c0_52, %c0_53] : memref<1x128xf32, #tpu.memory_space<vmem>>, vector<1x128xf32>
      %100 = vector.broadcast %99 : vector<1x128xf32> to vector<128x128xf32>
      %101 = arith.addf %98, %100 : vector<128x128xf32>
      %cst_54 = arith.constant 5.000000e-01 : f32
      %102 = vector.broadcast %cst_54 : f32 to vector<128x128xf32>
      %103 = arith.mulf %102, %101 : vector<128x128xf32>
      %cst_55 = arith.constant 4.471500e-02 : f32
      %104 = vector.broadcast %cst_55 : f32 to vector<128x128xf32>
      %105 = arith.mulf %104, %101 : vector<128x128xf32>
      %106 = arith.mulf %105, %101 : vector<128x128xf32>
      %107 = arith.mulf %106, %101 : vector<128x128xf32>
      %108 = arith.addf %101, %107 : vector<128x128xf32>
      %cst_56 = arith.constant 0.797884583 : f32
      %109 = vector.broadcast %cst_56 : f32 to vector<128x128xf32>
      %110 = arith.mulf %109, %108 : vector<128x128xf32>
      %111 = math.tanh %110 : vector<128x128xf32>
      %cst_57 = arith.constant 1.000000e+00 : f32
      %112 = vector.broadcast %cst_57 : f32 to vector<128x128xf32>
      %113 = arith.addf %112, %111 : vector<128x128xf32>
      %114 = arith.mulf %103, %113 : vector<128x128xf32>
      %115 = arith.truncf %114 : vector<128x128xf32> to vector<128x128xbf16>
      %116 = vector.extract_strided_slice %115 {offsets = [0, 0], sizes = [128, 32], strides = [1, 1]} : vector<128x128xbf16> to vector<128x32xbf16>
      %c0_58 = arith.constant 0 : index
      %c0_59 = arith.constant 0 : index
      %c0_60 = arith.constant 0 : index
      %117 = vector.load %arg18[%c0_58, %c0_59, %c0_60] : memref<4x128x32xbf16, #tpu.memory_space<vmem>>, vector<1x128x32xbf16>
      %118 = vector.shape_cast %117 : vector<1x128x32xbf16> to vector<128x32xbf16>
      %119 = vector.shape_cast %116 : vector<128x32xbf16> to vector<1x128x32xbf16>
      tpu.vector_store %arg18[%c0_58, %c0_59, %c0_60], %119 {strides = array<i32>} : memref<4x128x32xbf16, #tpu.memory_space<vmem>>, vector<1x128x32xbf16>,
      %120 = vector.extract_strided_slice %115 {offsets = [0, 32], sizes = [128, 32], strides = [1, 1]} : vector<128x128xbf16> to vector<128x32xbf16>
      %c1 = arith.constant 1 : index
      %c0_61 = arith.constant 0 : index
      %c0_62 = arith.constant 0 : index
      %121 = vector.load %arg18[%c1, %c0_61, %c0_62] : memref<4x128x32xbf16, #tpu.memory_space<vmem>>, vector<1x128x32xbf16>
      %122 = vector.shape_cast %121 : vector<1x128x32xbf16> to vector<128x32xbf16>
      %123 = vector.shape_cast %120 : vector<128x32xbf16> to vector<1x128x32xbf16>
      tpu.vector_store %arg18[%c1, %c0_61, %c0_62], %123 {strides = array<i32>} : memref<4x128x32xbf16, #tpu.memory_space<vmem>>, vector<1x128x32xbf16>,
      %124 = vector.extract_strided_slice %115 {offsets = [0, 64], sizes = [128, 32], strides = [1, 1]} : vector<128x128xbf16> to vector<128x32xbf16>
      %c2 = arith.constant 2 : index
      %c0_63 = arith.constant 0 : index
      %c0_64 = arith.constant 0 : index
      %125 = vector.load %arg18[%c2, %c0_63, %c0_64] : memref<4x128x32xbf16, #tpu.memory_space<vmem>>, vector<1x128x32xbf16>
      %126 = vector.shape_cast %125 : vector<1x128x32xbf16> to vector<128x32xbf16>
      %127 = vector.shape_cast %124 : vector<128x32xbf16> to vector<1x128x32xbf16>
      tpu.vector_store %arg18[%c2, %c0_63, %c0_64], %127 {strides = array<i32>} : memref<4x128x32xbf16, #tpu.memory_space<vmem>>, vector<1x128x32xbf16>,
      %128 = vector.extract_strided_slice %115 {offsets = [0, 96], sizes = [128, 32], strides = [1, 1]} : vector<128x128xbf16> to vector<128x32xbf16>
      %c3 = arith.constant 3 : index
      %c0_65 = arith.constant 0 : index
      %c0_66 = arith.constant 0 : index
      %129 = vector.load %arg18[%c3, %c0_65, %c0_66] : memref<4x128x32xbf16, #tpu.memory_space<vmem>>, vector<1x128x32xbf16>
      %130 = vector.shape_cast %129 : vector<1x128x32xbf16> to vector<128x32xbf16>
      %131 = vector.shape_cast %128 : vector<128x32xbf16> to vector<1x128x32xbf16>
      tpu.vector_store %arg18[%c3, %c0_65, %c0_66], %131 {strides = array<i32>} : memref<4x128x32xbf16, #tpu.memory_space<vmem>>, vector<1x128x32xbf16>,
    } else {
    }
    %5 = arith.index_cast %arg2 : i32 to index
    %c0 = arith.constant 0 : index
    %c0_2 = arith.constant 0 : index
    %6 = vector.load %arg18[%5, %c0, %c0_2] : memref<4x128x32xbf16, #tpu.memory_space<vmem>>, vector<1x128x32xbf16>
    %7 = vector.shape_cast %6 : vector<1x128x32xbf16> to vector<128x32xbf16>
    %c0_3 = arith.constant 0 : index
    %c0_4 = arith.constant 0 : index
    %8 = vector.load %arg15[%c0_3, %c0_4] : memref<32x128xbf16, #tpu.memory_space<vmem>>, vector<32x128xbf16>
    %cst = arith.constant dense<0.000000e+00> : vector<128x128xf32>
    %9 = tpu.matmul %7, %8, %cst {dimension_numbers = #tpu.dot_dimension_numbers<[1], [0], [0], [1], [0, 0, 1, 1], [], []>} : vector<128x32xbf16>, vector<32x128xbf16>, vector<128x128xf32> -> vector<128x128xf32>
    %c0_5 = arith.constant 0 : index
    %c0_6 = arith.constant 0 : index
    %10 = vector.load %arg16[%c0_5, %c0_6] : memref<1x128xf32, #tpu.memory_space<vmem>>, vector<1x128xf32>
    %11 = vector.broadcast %10 : vector<1x128xf32> to vector<128x128xf32>
    %12 = arith.addf %9, %11 : vector<128x128xf32>
    %13 = arith.truncf %12 : vector<128x128xf32> to vector<128x128xbf16>
    %c0_7 = arith.constant 0 : index
    %c0_8 = arith.constant 0 : index
    %14 = vector.load %arg17[%c0_7, %c0_8] : memref<128x128xbf16, #tpu.memory_space<vmem>>, vector<128x128xbf16>
    tpu.vector_store %arg17[%c0_7, %c0_8], %13 {strides = array<i32>} : memref<128x128xbf16, #tpu.memory_space<vmem>>, vector<128x128xbf16>,
    return
  }
  func.func @transform_0(%arg0: i32, %arg1: i32, %arg2: i32) -> (i32, i32) {
    %c0_i32 = arith.constant 0 : i32
    %c0_i32_0 = arith.constant 0 : i32
    return %arg0, %c0_i32 : i32, i32
  }
  func.func @transform_1(%arg0: i32, %arg1: i32, %arg2: i32) -> (i32, i32) {
    %c0_i32 = arith.constant 0 : i32
    %c0_i32_0 = arith.constant 0 : i32
    return %arg0, %c0_i32 : i32, i32
  }
  func.func @transform_2(%arg0: i32, %arg1: i32, %arg2: i32) -> (i32, i32) {
    %c0_i32 = arith.constant 0 : i32
    %c0_i32_0 = arith.constant 0 : i32
    %c0_i32_1 = arith.constant 0 : i32
    return %c0_i32, %c0_i32_0 : i32, i32
  }
  func.func @transform_3(%arg0: i32, %arg1: i32, %arg2: i32) -> (i32, i32) {
    %c0_i32 = arith.constant 0 : i32
    %c0_i32_0 = arith.constant 0 : i32
    %c0_i32_1 = arith.constant 0 : i32
    return %c0_i32, %c0_i32_0 : i32, i32
  }
  func.func @transform_4(%arg0: i32, %arg1: i32, %arg2: i32) -> (i32, i32) {
    %c0_i32 = arith.constant 0 : i32
    %c0_i32_0 = arith.constant 0 : i32
    %c0_i32_1 = arith.constant 0 : i32
    return %c0_i32, %c0_i32_0 : i32, i32
  }
  func.func @transform_5(%arg0: i32, %arg1: i32, %arg2: i32) -> (i32, i32) {
    %c0_i32 = arith.constant 0 : i32
    %c0_i32_0 = arith.constant 0 : i32
    %c0_i32_1 = arith.constant 0 : i32
    return %c0_i32, %c0_i32_0 : i32, i32
  }
  func.func @transform_6(%arg0: i32, %arg1: i32, %arg2: i32) -> (i32, i32) {
    %c0_i32 = arith.constant 0 : i32
    %c0_i32_0 = arith.constant 0 : i32
    %c0_i32_1 = arith.constant 0 : i32
    return %c0_i32, %c0_i32_0 : i32, i32
  }
  func.func @transform_7(%arg0: i32, %arg1: i32, %arg2: i32) -> (i32, i32) {
    %c0_i32 = arith.constant 0 : i32
    %c0_i32_0 = arith.constant 0 : i32
    %c0_i32_1 = arith.constant 0 : i32
    return %c0_i32, %c0_i32_0 : i32, i32
  }
  func.func @transform_8(%arg0: i32, %arg1: i32, %arg2: i32) -> (i32, i32) {
    %c0_i32 = arith.constant 0 : i32
    %c0_i32_0 = arith.constant 0 : i32
    %c0_i32_1 = arith.constant 0 : i32
    return %c0_i32, %c0_i32_0 : i32, i32
  }
  func.func @transform_9(%arg0: i32, %arg1: i32, %arg2: i32) -> (i32, i32) {
    %c0_i32 = arith.constant 0 : i32
    %c0_i32_0 = arith.constant 0 : i32
    %c0_i32_1 = arith.constant 0 : i32
    return %c0_i32, %c0_i32_0 : i32, i32
  }
  func.func @transform_10(%arg0: i32, %arg1: i32, %arg2: i32) -> (i32, i32) {
    %c0_i32 = arith.constant 0 : i32
    %c0_i32_0 = arith.constant 0 : i32
    %c0_i32_1 = arith.constant 0 : i32
    return %c0_i32, %c0_i32_0 : i32, i32
  }
  func.func @transform_11(%arg0: i32, %arg1: i32, %arg2: i32) -> (i32, i32) {
    %c0_i32 = arith.constant 0 : i32
    %c0_i32_0 = arith.constant 0 : i32
    %c0_i32_1 = arith.constant 0 : i32
    return %c0_i32, %c0_i32_0 : i32, i32
  }
  func.func @transform_12(%arg0: i32, %arg1: i32, %arg2: i32) -> (i32, i32) {
    %c0_i32 = arith.constant 0 : i32
    %c0_i32_0 = arith.constant 0 : i32
    return %c0_i32, %arg1 : i32, i32
  }
  func.func @transform_13(%arg0: i32, %arg1: i32, %arg2: i32) -> (i32, i32) {
    %c0_i32 = arith.constant 0 : i32
    %c0_i32_0 = arith.constant 0 : i32
    return %c0_i32, %arg1 : i32, i32
  }
  func.func @transform_14(%arg0: i32, %arg1: i32, %arg2: i32) -> (i32, i32) {
    %c1_i32 = arith.constant 1 : i32
    %0 = arith.muli %arg2, %c1_i32 : i32
    %1 = arith.addi %0, %arg1 : i32
    %c0_i32 = arith.constant 0 : i32
    return %arg0, %1 : i32, i32
  }
}

module attributes {stable_mosaic.version = 11 : i64} {
  func.func @convolution_head_kernel(%arg0: i32, %arg1: i32, %arg2: i32, %arg3: memref<128x32xbf16, #tpu.memory_space<vmem>>, %arg4: memref<128x128xbf16, #tpu.memory_space<vmem>>, %arg5: memref<32x128xbf16, #tpu.memory_space<vmem>>, %arg6: memref<1x128xf32, #tpu.memory_space<vmem>>, %arg7: memref<128x128xbf16, #tpu.memory_space<vmem>>, %arg8: memref<1x128xf32, #tpu.memory_space<vmem>>, %arg9: memref<128x128xbf16, #tpu.memory_space<vmem>>, %arg10: memref<1x128xf32, #tpu.memory_space<vmem>>, %arg11: memref<128x128xbf16, #tpu.memory_space<vmem>>, %arg12: memref<1x128xf32, #tpu.memory_space<vmem>>, %arg13: memref<128x128xbf16, #tpu.memory_space<vmem>>, %arg14: memref<1x128xf32, #tpu.memory_space<vmem>>, %arg15: memref<32x128xbf16, #tpu.memory_space<vmem>>, %arg16: memref<1x128xf32, #tpu.memory_space<vmem>>, %arg17: memref<128x128xbf16, #tpu.memory_space<vmem>>, %arg18: memref<4x128x32xbf16, #tpu.memory_space<vmem>>) attributes {dimension_semantics = [#tpu.dimension_semantics<parallel>, #tpu.dimension_semantics<arbitrary>, #tpu.dimension_semantics<arbitrary>], iteration_bounds = array<i64: 1, 1, 4>, scalar_prefetch = 0 : i64, scratch_operands = 1 : i64, tpu.core_type = #tpu.core_type<tc>, window_params = [{transform_indices = @transform_0, window_bounds = array<i64: 128, 32>}, {transform_indices = @transform_1, window_bounds = array<i64: 128, 128>}, {pipeline_mode = #tpu.pipeline_mode<synchronous>, transform_indices = @transform_2, window_bounds = array<i64: 32, 128>}, {pipeline_mode = #tpu.pipeline_mode<synchronous>, transform_indices = @transform_3, window_bounds = array<i64: 1, 128>}, {pipeline_mode = #tpu.pipeline_mode<synchronous>, transform_indices = @transform_4, window_bounds = array<i64: 128, 128>}, {pipeline_mode = #tpu.pipeline_mode<synchronous>, transform_indices = @transform_5, window_bounds = array<i64: 1, 128>}, {pipeline_mode = #tpu.pipeline_mode<synchronous>, transform_indices = @transform_6, window_bounds = array<i64: 128, 128>}, {pipeline_mode = #tpu.pipeline_mode<synchronous>, transform_indices = @transform_7, window_bounds = array<i64: 1, 128>}, {pipeline_mode = #tpu.pipeline_mode<synchronous>, transform_indices = @transform_8, window_bounds = array<i64: 128, 128>}, {pipeline_mode = #tpu.pipeline_mode<synchronous>, transform_indices = @transform_9, window_bounds = array<i64: 1, 128>}, {pipeline_mode = #tpu.pipeline_mode<synchronous>, transform_indices = @transform_10, window_bounds = array<i64: 128, 128>}, {pipeline_mode = #tpu.pipeline_mode<synchronous>, transform_indices = @transform_11, window_bounds = array<i64: 1, 128>}, {transform_indices = @transform_12, window_bounds = array<i64: 32, 128>}, {transform_indices = @transform_13, window_bounds = array<i64: 1, 128>}, {transform_indices = @transform_14, window_bounds = array<i64: 128, 128>}]} {
    %c0_i32 = arith.constant 0 : i32
    %0 = arith.cmpi eq, %arg1, %c0_i32 : i32
    %c0_i32_0 = arith.constant 0 : i32
    %1 = arith.cmpi eq, %arg2, %c0_i32_0 : i32
    %2 = arith.andi %0, %1 : i1
    %3 = arith.extui %2 : i1 to i32
    %c0_i32_1 = arith.constant 0 : i32
    %4 = arith.cmpi ne, %3, %c0_i32_1 : i32
    scf.if %4 {
      %c0_9 = arith.constant 0 : index
      %c0_10 = arith.constant 0 : index
      %15 = vector.load %arg3[%c0_9, %c0_10] : memref<128x32xbf16, #tpu.memory_space<vmem>>, vector<128x32xbf16>
      %16 = arith.extf %15 : vector<128x32xbf16> to vector<128x32xf32>
      %cst_11 = arith.constant 5.000000e-01 : f32
      %17 = vector.broadcast %cst_11 : f32 to vector<128x32xf32>
      %18 = arith.mulf %17, %16 : vector<128x32xf32>
      %cst_12 = arith.constant 4.471500e-02 : f32
      %19 = vector.broadcast %cst_12 : f32 to vector<128x32xf32>
      %20 = arith.mulf %19, %16 : vector<128x32xf32>
      %21 = arith.mulf %20, %16 : vector<128x32xf32>
      %22 = arith.mulf %21, %16 : vector<128x32xf32>
      %23 = arith.addf %16, %22 : vector<128x32xf32>
      %cst_13 = arith.constant 0.797884583 : f32
      %24 = vector.broadcast %cst_13 : f32 to vector<128x32xf32>
      %25 = arith.mulf %24, %23 : vector<128x32xf32>
      %26 = math.tanh %25 : vector<128x32xf32>
      %cst_14 = arith.constant 1.000000e+00 : f32
      %27 = vector.broadcast %cst_14 : f32 to vector<128x32xf32>
      %28 = arith.addf %27, %26 : vector<128x32xf32>
      %29 = arith.mulf %18, %28 : vector<128x32xf32>
      %30 = arith.truncf %29 : vector<128x32xf32> to vector<128x32xbf16>
      %c0_15 = arith.constant 0 : index
      %c0_16 = arith.constant 0 : index
      %31 = vector.load %arg5[%c0_15, %c0_16] : memref<32x128xbf16, #tpu.memory_space<vmem>>, vector<32x128xbf16>
      %cst_17 = arith.constant dense<0.000000e+00> : vector<128x128xf32>
      %32 = tpu.matmul %30, %31, %cst_17 {dimension_numbers = #tpu.dot_dimension_numbers<[1], [0], [0], [1], [0, 0, 1, 1], [], []>} : vector<128x32xbf16>, vector<32x128xbf16>, vector<128x128xf32> -> vector<128x128xf32>
      %c0_18 = arith.constant 0 : index
      %c0_19 = arith.constant 0 : index
      %33 = vector.load %arg6[%c0_18, %c0_19] : memref<1x128xf32, #tpu.memory_space<vmem>>, vector<1x128xf32>
      %34 = vector.broadcast %33 : vector<1x128xf32> to vector<128x128xf32>
      %35 = arith.addf %32, %34 : vector<128x128xf32>
      %cst_20 = arith.constant 5.000000e-01 : f32
      %36 = vector.broadcast %cst_20 : f32 to vector<128x128xf32>
      %37 = arith.mulf %36, %35 : vector<128x128xf32>
      %cst_21 = arith.constant 4.471500e-02 : f32
      %38 = vector.broadcast %cst_21 : f32 to vector<128x128xf32>
      %39 = arith.mulf %38, %35 : vector<128x128xf32>
      %40 = arith.mulf %39, %35 : vector<128x128xf32>
      %41 = arith.mulf %40, %35 : vector<128x128xf32>
      %42 = arith.addf %35, %41 : vector<128x128xf32>
      %cst_22 = arith.constant 0.797884583 : f32
      %43 = vector.broadcast %cst_22 : f32 to vector<128x128xf32>
      %44 = arith.mulf %43, %42 : vector<128x128xf32>
      %45 = math.tanh %44 : vector<128x128xf32>
      %cst_23 = arith.constant 1.000000e+00 : f32
      %46 = vector.broadcast %cst_23 : f32 to vector<128x128xf32>
      %47 = arith.addf %46, %45 : vector<128x128xf32>
      %48 = arith.mulf %37, %47 : vector<128x128xf32>
      %49 = arith.truncf %48 : vector<128x128xf32> to vector<128x128xbf16>
      %c0_24 = arith.constant 0 : index
      %c0_25 = arith.constant 0 : index
      %50 = vector.load %arg7[%c0_24, %c0_25] : memref<128x128xbf16, #tpu.memory_space<vmem>>, vector<128x128xbf16>
      %cst_26 = arith.constant dense<0.000000e+00> : vector<128x128xf32>
      %51 = tpu.matmul %49, %50, %cst_26 {dimension_numbers = #tpu.dot_dimension_numbers<[1], [0], [0], [1], [0, 0, 1, 1], [], []>} : vector<128x128xbf16>, vector<128x128xbf16>, vector<128x128xf32> -> vector<128x128xf32>
      %c0_27 = arith.constant 0 : index
      %c0_28 = arith.constant 0 : index
      %52 = vector.load %arg8[%c0_27, %c0_28] : memref<1x128xf32, #tpu.memory_space<vmem>>, vector<1x128xf32>
      %53 = vector.broadcast %52 : vector<1x128xf32> to vector<128x128xf32>
      %54 = arith.addf %51, %53 : vector<128x128xf32>
      %55 = arith.truncf %54 : vector<128x128xf32> to vector<128x128xbf16>
      %c0_29 = arith.constant 0 : index
      %c0_30 = arith.constant 0 : index
      %56 = vector.load %arg4[%c0_29, %c0_30] : memref<128x128xbf16, #tpu.memory_space<vmem>>, vector<128x128xbf16>
      %c0_31 = arith.constant 0 : index
      %c0_32 = arith.constant 0 : index
      %57 = vector.load %arg9[%c0_31, %c0_32] : memref<128x128xbf16, #tpu.memory_space<vmem>>, vector<128x128xbf16>
      %cst_33 = arith.constant dense<0.000000e+00> : vector<128x128xf32>
      %58 = tpu.matmul %56, %57, %cst_33 {dimension_numbers = #tpu.dot_dimension_numbers<[1], [0], [0], [1], [0, 0, 1, 1], [], []>} : vector<128x128xbf16>, vector<128x128xbf16>, vector<128x128xf32> -> vector<128x128xf32>
      %c0_34 = arith.constant 0 : index
      %c0_35 = arith.constant 0 : index
      %59 = vector.load %arg10[%c0_34, %c0_35] : memref<1x128xf32, #tpu.memory_space<vmem>>, vector<1x128xf32>
      %60 = vector.broadcast %59 : vector<1x128xf32> to vector<128x128xf32>
      %61 = arith.addf %58, %60 : vector<128x128xf32>
      %cst_36 = arith.constant 5.000000e-01 : f32
      %62 = vector.broadcast %cst_36 : f32 to vector<128x128xf32>
      %63 = arith.mulf %62, %61 : vector<128x128xf32>
      %cst_37 = arith.constant 4.471500e-02 : f32
      %64 = vector.broadcast %cst_37 : f32 to vector<128x128xf32>
      %65 = arith.mulf %64, %61 : vector<128x128xf32>
      %66 = arith.mulf %65, %61 : vector<128x128xf32>
      %67 = arith.mulf %66, %61 : vector<128x128xf32>
      %68 = arith.addf %61, %67 : vector<128x128xf32>
      %cst_38 = arith.constant 0.797884583 : f32
      %69 = vector.broadcast %cst_38 : f32 to vector<128x128xf32>
      %70 = arith.mulf %69, %68 : vector<128x128xf32>
      %71 = math.tanh %70 : vector<128x128xf32>
      %cst_39 = arith.constant 1.000000e+00 : f32
      %72 = vector.broadcast %cst_39 : f32 to vector<128x128xf32>
      %73 = arith.addf %72, %71 : vector<128x128xf32>
      %74 = arith.mulf %63, %73 : vector<128x128xf32>
      %75 = arith.truncf %74 : vector<128x128xf32> to vector<128x128xbf16>
      %c0_40 = arith.constant 0 : index
      %c0_41 = arith.constant 0 : index
      %76 = vector.load %arg11[%c0_40, %c0_41] : memref<128x128xbf16, #tpu.memory_space<vmem>>, vector<128x128xbf16>
      %cst_42 = arith.constant dense<0.000000e+00> : vector<128x128xf32>
      %77 = tpu.matmul %75, %76, %cst_42 {dimension_numbers = #tpu.dot_dimension_numbers<[1], [0], [0], [1], [0, 0, 1, 1], [], []>} : vector<128x128xbf16>, vector<128x128xbf16>, vector<128x128xf32> -> vector<128x128xf32>
      %c0_43 = arith.constant 0 : index
      %c0_44 = arith.constant 0 : index
      %78 = vector.load %arg12[%c0_43, %c0_44] : memref<1x128xf32, #tpu.memory_space<vmem>>, vector<1x128xf32>
      %79 = vector.broadcast %78 : vector<1x128xf32> to vector<128x128xf32>
      %80 = arith.addf %77, %79 : vector<128x128xf32>
      %81 = arith.extf %55 : vector<128x128xbf16> to vector<128x128xf32>
      %82 = arith.addf %80, %81 : vector<128x128xf32>
      %cst_45 = arith.constant 5.000000e-01 : f32
      %83 = vector.broadcast %cst_45 : f32 to vector<128x128xf32>
      %84 = arith.mulf %83, %82 : vector<128x128xf32>
      %cst_46 = arith.constant 4.471500e-02 : f32
      %85 = vector.broadcast %cst_46 : f32 to vector<128x128xf32>
      %86 = arith.mulf %85, %82 : vector<128x128xf32>
      %87 = arith.mulf %86, %82 : vector<128x128xf32>
      %88 = arith.mulf %87, %82 : vector<128x128xf32>
      %89 = arith.addf %82, %88 : vector<128x128xf32>
      %cst_47 = arith.constant 0.797884583 : f32
      %90 = vector.broadcast %cst_47 : f32 to vector<128x128xf32>
      %91 = arith.mulf %90, %89 : vector<128x128xf32>
      %92 = math.tanh %91 : vector<128x128xf32>
      %cst_48 = arith.constant 1.000000e+00 : f32
      %93 = vector.broadcast %cst_48 : f32 to vector<128x128xf32>
      %94 = arith.addf %93, %92 : vector<128x128xf32>
      %95 = arith.mulf %84, %94 : vector<128x128xf32>
      %96 = arith.truncf %95 : vector<128x128xf32> to vector<128x128xbf16>
      %c0_49 = arith.constant 0 : index
      %c0_50 = arith.constant 0 : index
      %97 = vector.load %arg13[%c0_49, %c0_50] : memref<128x128xbf16, #tpu.memory_space<vmem>>, vector<128x128xbf16>
      %cst_51 = arith.constant dense<0.000000e+00> : vector<128x128xf32>
      %98 = tpu.matmul %96, %97, %cst_51 {dimension_numbers = #tpu.dot_dimension_numbers<[1], [0], [0], [1], [0, 0, 1, 1], [], []>} : vector<128x128xbf16>, vector<128x128xbf16>, vector<128x128xf32> -> vector<128x128xf32>
      %c0_52 = arith.constant 0 : index
      %c0_53 = arith.constant 0 : index
      %99 = vector.load %arg14[%c0_52, %c0_53] : memref<1x128xf32, #tpu.memory_space<vmem>>, vector<1x128xf32>
      %100 = vector.broadcast %99 : vector<1x128xf32> to vector<128x128xf32>
      %101 = arith.addf %98, %100 : vector<128x128xf32>
      %cst_54 = arith.constant 5.000000e-01 : f32
      %102 = vector.broadcast %cst_54 : f32 to vector<128x128xf32>
      %103 = arith.mulf %102, %101 : vector<128x128xf32>
      %cst_55 = arith.constant 4.471500e-02 : f32
      %104 = vector.broadcast %cst_55 : f32 to vector<128x128xf32>
      %105 = arith.mulf %104, %101 : vector<128x128xf32>
      %106 = arith.mulf %105, %101 : vector<128x128xf32>
      %107 = arith.mulf %106, %101 : vector<128x128xf32>
      %108 = arith.addf %101, %107 : vector<128x128xf32>
      %cst_56 = arith.constant 0.797884583 : f32
      %109 = vector.broadcast %cst_56 : f32 to vector<128x128xf32>
      %110 = arith.mulf %109, %108 : vector<128x128xf32>
      %111 = math.tanh %110 : vector<128x128xf32>
      %cst_57 = arith.constant 1.000000e+00 : f32
      %112 = vector.broadcast %cst_57 : f32 to vector<128x128xf32>
      %113 = arith.addf %112, %111 : vector<128x128xf32>
      %114 = arith.mulf %103, %113 : vector<128x128xf32>
      %115 = arith.truncf %114 : vector<128x128xf32> to vector<128x128xbf16>
      %116 = vector.extract_strided_slice %115 {offsets = [0, 0], sizes = [128, 32], strides = [1, 1]} : vector<128x128xbf16> to vector<128x32xbf16>
      %c0_58 = arith.constant 0 : index
      %c0_59 = arith.constant 0 : index
      %c0_60 = arith.constant 0 : index
      %117 = vector.load %arg18[%c0_58, %c0_59, %c0_60] : memref<4x128x32xbf16, #tpu.memory_space<vmem>>, vector<1x128x32xbf16>
      %118 = vector.shape_cast %117 : vector<1x128x32xbf16> to vector<128x32xbf16>
      %119 = vector.shape_cast %116 : vector<128x32xbf16> to vector<1x128x32xbf16>
      tpu.vector_store %arg18[%c0_58, %c0_59, %c0_60], %119 {strides = array<i32>} : memref<4x128x32xbf16, #tpu.memory_space<vmem>>, vector<1x128x32xbf16>,
      %120 = vector.extract_strided_slice %115 {offsets = [0, 32], sizes = [128, 32], strides = [1, 1]} : vector<128x128xbf16> to vector<128x32xbf16>
      %c1 = arith.constant 1 : index
      %c0_61 = arith.constant 0 : index
      %c0_62 = arith.constant 0 : index
      %121 = vector.load %arg18[%c1, %c0_61, %c0_62] : memref<4x128x32xbf16, #tpu.memory_space<vmem>>, vector<1x128x32xbf16>
      %122 = vector.shape_cast %121 : vector<1x128x32xbf16> to vector<128x32xbf16>
      %123 = vector.shape_cast %120 : vector<128x32xbf16> to vector<1x128x32xbf16>
      tpu.vector_store %arg18[%c1, %c0_61, %c0_62], %123 {strides = array<i32>} : memref<4x128x32xbf16, #tpu.memory_space<vmem>>, vector<1x128x32xbf16>,
      %124 = vector.extract_strided_slice %115 {offsets = [0, 64], sizes = [128, 32], strides = [1, 1]} : vector<128x128xbf16> to vector<128x32xbf16>
      %c2 = arith.constant 2 : index
      %c0_63 = arith.constant 0 : index
      %c0_64 = arith.constant 0 : index
      %125 = vector.load %arg18[%c2, %c0_63, %c0_64] : memref<4x128x32xbf16, #tpu.memory_space<vmem>>, vector<1x128x32xbf16>
      %126 = vector.shape_cast %125 : vector<1x128x32xbf16> to vector<128x32xbf16>
      %127 = vector.shape_cast %124 : vector<128x32xbf16> to vector<1x128x32xbf16>
      tpu.vector_store %arg18[%c2, %c0_63, %c0_64], %127 {strides = array<i32>} : memref<4x128x32xbf16, #tpu.memory_space<vmem>>, vector<1x128x32xbf16>,
      %128 = vector.extract_strided_slice %115 {offsets = [0, 96], sizes = [128, 32], strides = [1, 1]} : vector<128x128xbf16> to vector<128x32xbf16>
      %c3 = arith.constant 3 : index
      %c0_65 = arith.constant 0 : index
      %c0_66 = arith.constant 0 : index
      %129 = vector.load %arg18[%c3, %c0_65, %c0_66] : memref<4x128x32xbf16, #tpu.memory_space<vmem>>, vector<1x128x32xbf16>
      %130 = vector.shape_cast %129 : vector<1x128x32xbf16> to vector<128x32xbf16>
      %131 = vector.shape_cast %128 : vector<128x32xbf16> to vector<1x128x32xbf16>
      tpu.vector_store %arg18[%c3, %c0_65, %c0_66], %131 {strides = array<i32>} : memref<4x128x32xbf16, #tpu.memory_space<vmem>>, vector<1x128x32xbf16>,
    } else {
    }
    %5 = arith.index_cast %arg2 : i32 to index
    %c0 = arith.constant 0 : index
    %c0_2 = arith.constant 0 : index
    %6 = vector.load %arg18[%5, %c0, %c0_2] : memref<4x128x32xbf16, #tpu.memory_space<vmem>>, vector<1x128x32xbf16>
    %7 = vector.shape_cast %6 : vector<1x128x32xbf16> to vector<128x32xbf16>
    %c0_3 = arith.constant 0 : index
    %c0_4 = arith.constant 0 : index
    %8 = vector.load %arg15[%c0_3, %c0_4] : memref<32x128xbf16, #tpu.memory_space<vmem>>, vector<32x128xbf16>
    %cst = arith.constant dense<0.000000e+00> : vector<128x128xf32>
    %9 = tpu.matmul %7, %8, %cst {dimension_numbers = #tpu.dot_dimension_numbers<[1], [0], [0], [1], [0, 0, 1, 1], [], []>} : vector<128x32xbf16>, vector<32x128xbf16>, vector<128x128xf32> -> vector<128x128xf32>
    %c0_5 = arith.constant 0 : index
    %c0_6 = arith.constant 0 : index
    %10 = vector.load %arg16[%c0_5, %c0_6] : memref<1x128xf32, #tpu.memory_space<vmem>>, vector<1x128xf32>
    %11 = vector.broadcast %10 : vector<1x128xf32> to vector<128x128xf32>
    %12 = arith.addf %9, %11 : vector<128x128xf32>
    %13 = arith.truncf %12 : vector<128x128xf32> to vector<128x128xbf16>
    %c0_7 = arith.constant 0 : index
    %c0_8 = arith.constant 0 : index
    %14 = vector.load %arg17[%c0_7, %c0_8] : memref<128x128xbf16, #tpu.memory_space<vmem>>, vector<128x128xbf16>
    tpu.vector_store %arg17[%c0_7, %c0_8], %13 {strides = array<i32>} : memref<128x128xbf16, #tpu.memory_space<vmem>>, vector<128x128xbf16>,
    return
  }
  func.func @transform_0(%arg0: i32, %arg1: i32, %arg2: i32) -> (i32, i32) {
    %c0_i32 = arith.constant 0 : i32
    %c0_i32_0 = arith.constant 0 : i32
    return %arg0, %c0_i32 : i32, i32
  }
  func.func @transform_1(%arg0: i32, %arg1: i32, %arg2: i32) -> (i32, i32) {
    %c0_i32 = arith.constant 0 : i32
    %c0_i32_0 = arith.constant 0 : i32
    return %arg0, %c0_i32 : i32, i32
  }
  func.func @transform_2(%arg0: i32, %arg1: i32, %arg2: i32) -> (i32, i32) {
    %c0_i32 = arith.constant 0 : i32
    %c0_i32_0 = arith.constant 0 : i32
    %c0_i32_1 = arith.constant 0 : i32
    return %c0_i32, %c0_i32_0 : i32, i32
  }
  func.func @transform_3(%arg0: i32, %arg1: i32, %arg2: i32) -> (i32, i32) {
    %c0_i32 = arith.constant 0 : i32
    %c0_i32_0 = arith.constant 0 : i32
    %c0_i32_1 = arith.constant 0 : i32
    return %c0_i32, %c0_i32_0 : i32, i32
  }
  func.func @transform_4(%arg0: i32, %arg1: i32, %arg2: i32) -> (i32, i32) {
    %c0_i32 = arith.constant 0 : i32
    %c0_i32_0 = arith.constant 0 : i32
    %c0_i32_1 = arith.constant 0 : i32
    return %c0_i32, %c0_i32_0 : i32, i32
  }
  func.func @transform_5(%arg0: i32, %arg1: i32, %arg2: i32) -> (i32, i32) {
    %c0_i32 = arith.constant 0 : i32
    %c0_i32_0 = arith.constant 0 : i32
    %c0_i32_1 = arith.constant 0 : i32
    return %c0_i32, %c0_i32_0 : i32, i32
  }
  func.func @transform_6(%arg0: i32, %arg1: i32, %arg2: i32) -> (i32, i32) {
    %c0_i32 = arith.constant 0 : i32
    %c0_i32_0 = arith.constant 0 : i32
    %c0_i32_1 = arith.constant 0 : i32
    return %c0_i32, %c0_i32_0 : i32, i32
  }
  func.func @transform_7(%arg0: i32, %arg1: i32, %arg2: i32) -> (i32, i32) {
    %c0_i32 = arith.constant 0 : i32
    %c0_i32_0 = arith.constant 0 : i32
    %c0_i32_1 = arith.constant 0 : i32
    return %c0_i32, %c0_i32_0 : i32, i32
  }
  func.func @transform_8(%arg0: i32, %arg1: i32, %arg2: i32) -> (i32, i32) {
    %c0_i32 = arith.constant 0 : i32
    %c0_i32_0 = arith.constant 0 : i32
    %c0_i32_1 = arith.constant 0 : i32
    return %c0_i32, %c0_i32_0 : i32, i32
  }
  func.func @transform_9(%arg0: i32, %arg1: i32, %arg2: i32) -> (i32, i32) {
    %c0_i32 = arith.constant 0 : i32
    %c0_i32_0 = arith.constant 0 : i32
    %c0_i32_1 = arith.constant 0 : i32
    return %c0_i32, %c0_i32_0 : i32, i32
  }
  func.func @transform_10(%arg0: i32, %arg1: i32, %arg2: i32) -> (i32, i32) {
    %c0_i32 = arith.constant 0 : i32
    %c0_i32_0 = arith.constant 0 : i32
    %c0_i32_1 = arith.constant 0 : i32
    return %c0_i32, %c0_i32_0 : i32, i32
  }
  func.func @transform_11(%arg0: i32, %arg1: i32, %arg2: i32) -> (i32, i32) {
    %c0_i32 = arith.constant 0 : i32
    %c0_i32_0 = arith.constant 0 : i32
    %c0_i32_1 = arith.constant 0 : i32
    return %c0_i32, %c0_i32_0 : i32, i32
  }
  func.func @transform_12(%arg0: i32, %arg1: i32, %arg2: i32) -> (i32, i32) {
    %c0_i32 = arith.constant 0 : i32
    %c0_i32_0 = arith.constant 0 : i32
    return %c0_i32, %arg1 : i32, i32
  }
  func.func @transform_13(%arg0: i32, %arg1: i32, %arg2: i32) -> (i32, i32) {
    %c0_i32 = arith.constant 0 : i32
    %c0_i32_0 = arith.constant 0 : i32
    return %c0_i32, %arg1 : i32, i32
  }
  func.func @transform_14(%arg0: i32, %arg1: i32, %arg2: i32) -> (i32, i32) {
    %c1_i32 = arith.constant 1 : i32
    %0 = arith.muli %arg2, %c1_i32 : i32
    %1 = arith.addi %0, %arg1 : i32
    %c0_i32 = arith.constant 0 : i32
    return %arg0, %1 : i32, i32
  }
}

</mosaic_0001>

<llo_original>
// kernel: tpu_custom_call.1
$region0: #{tpu_custom_call.1}
  #allocation0 [shape = 'u32[]', space=smem, size = 0x4, offset = 0x4, fixed_abs, tag = 'smem constant byte address 0x4 - core index']
  #allocation1 [shape = 'u32[144,128]{1,0:T(1,128)}', space=vmem, size = 0x12000, scoped, tag = 'internal scratch']
  #allocation2 [shape = 'bf16[4,128,32]{2,1,0:T(16,128)(2,1)}', space=vmem, size = 0x20000, scoped, tag = 'scratch operand']
  %s0 = inlined_call_operand.vmem [shape: bf16[128,32], index: 0, kind: input, shape index: {}]
  %s1 = inlined_call_operand.vmem [shape: bf16[128,128], index: 1, kind: input, shape index: {}]
  %s2 = inlined_call_operand.vmem [shape: bf16[32,128], index: 2, kind: input, shape index: {}]
  %s3 = inlined_call_operand.vmem [shape: f32[1,128], index: 3, kind: input, shape index: {}]
  %s4 = inlined_call_operand.hbm [shape: bf16[128,128], index: 4, kind: input, shape index: {}]
  %s5 = inlined_call_operand.vmem [shape: f32[1,128], index: 5, kind: input, shape index: {}]
  %s6 = inlined_call_operand.hbm [shape: bf16[128,128], index: 6, kind: input, shape index: {}]
  %s7 = inlined_call_operand.vmem [shape: f32[1,128], index: 7, kind: input, shape index: {}]
  %s8 = inlined_call_operand.hbm [shape: bf16[128,128], index: 8, kind: input, shape index: {}]
  %s9 = inlined_call_operand.vmem [shape: f32[1,128], index: 9, kind: input, shape index: {}]
  %s10 = inlined_call_operand.hbm [shape: bf16[128,128], index: 10, kind: input, shape index: {}]
  %s11 = inlined_call_operand.vmem [shape: f32[1,128], index: 11, kind: input, shape index: {}]
  %s12 = inlined_call_operand.vmem [shape: bf16[32,128], index: 12, kind: input, shape index: {}]
  %s13 = inlined_call_operand.vmem [shape: f32[1,128], index: 13, kind: input, shape index: {}]
  %s14 = inlined_call_operand.hbm [shape: bf16[128,512], index: 14, kind: output, shape index: {}]
  %s15 = sld [smem:[#allocation0]]
  $region109: #{tpu_custom_call.1} parent=0
    _
  %s17 = ssub.s32 1, %s15
  %s18 = scalar_select 0, %s17, %s15
  $region1: #{tpu_custom_call.1} parent=0
    #allocation3 [shape = 'u8[32768]{0}', space=vmem, size = 0x8000, scoped, tag = 'input window, operand 4, single buffered']
    #allocation4 [shape = 's32[2]{0}', space=sflag, size = 0x8, scoped, tag = 'scoped memory for tpu_custom_call.1']
    #allocation5 [shape = 's32[2]{0}', space=sflag, size = 0x8, scoped, tag = 'scoped memory for tpu_custom_call.1']
    #allocation6 [shape = 'u8[32768]{0}', space=vmem, size = 0x8000, scoped, tag = 'input window, operand 6, single buffered']
    #allocation7 [shape = 's32[1]{0}', space=sflag, size = 0x4, scoped, tag = 'scoped memory for tpu_custom_call.1']
    #allocation8 [shape = 'u8[32768]{0}', space=vmem, size = 0x8000, scoped, tag = 'input window, operand 8, single buffered']
    #allocation9 [shape = 'u8[32768]{0}', space=vmem, size = 0x8000, scoped, tag = 'input window, operand 10, single buffered']
    #allocation10 [shape = 's32[1]{0}', space=sflag, size = 0x4, scoped, tag = 'scoped memory for tpu_custom_call.1']
    #allocation11 [shape = 'u8[65536]{0}', space=vmem, size = 0x10000, scoped, tag = 'output window, operand 0']
    %19 = vsyncpa [#allocation4], 0
    %20 = vsyncpa [#allocation7], 0
    %21 = vsyncpa [#allocation10], 0
    %22 = vsyncpa [#allocation5], 0
    %s23 = scalar_lea.sflag [#allocation5], 1
    %24 = vsyncpa %s23, 0
    loop: start=0, step=1, limit=6
    $region2: #{tpu_custom_call.1} parent=1 // loop_pre_header
      _
    $region3: #{tpu_custom_call.1} parent=1 // loop_header
      %s26 = sphi 0, %s30
      %p27 = scmp.ge.s32.totalorder %s26, 6
      %s33 = sphi 0, %s52
      %s34 = sphi 0, %s48
      %s35 = sphi 0, %s44
      %s36 = sphi 0, %s33
      %s37 = sphi 0, %s34
      %s38 = sphi 0, %s35
      %s39 = sphi 0, %s36
      %s40 = sphi 0, %s37
      %s41 = sphi 0, %s38
      %s55 = sphi 0, %s57
      %s58 = sphi 0, %s55
      %s59 = sphi 0, %s58
      %s75 = sphi 0, %s59
      %s81 = sphi 0, %s83
      %s84 = sphi 0, %s81
      %s85 = sphi 0, %s84
      %s101 = sphi 0, %s85
      %s105 = sphi 0, %s105
      %s107 = sphi 0, %s105
      %s108 = sphi 0, %s107
      %s122 = sphi 0, %s108
      %s126 = sphi 0, %s126
      %s128 = sphi 0, %s126
      %s129 = sphi 0, %s128
      %s143 = sphi 0, %s129
      %s147 = sphi 0, %s147
      %s149 = sphi 0, %s147
      %s150 = sphi 0, %s149
      %s164 = sphi 0, %s150
      %s168 = sphi 0, %s168
      %s170 = sphi 0, %s168
      %s171 = sphi 0, %s170
      %s185 = sphi 0, %s171
      %s189 = sphi 0, %s189
      %s191 = sphi 0, %s189
      %s192 = sphi 0, %s191
      %s206 = sphi 0, %s192
      %s210 = sphi 0, %s210
      %s212 = sphi 0, %s210
      %s213 = sphi 0, %s212
      %s227 = sphi 0, %s213
      %s231 = sphi 0, %s231
      %s233 = sphi 0, %s231
      %s234 = sphi 0, %s233
      %s248 = sphi 0, %s234
      %s252 = sphi 0, %s252
      %s254 = sphi 0, %s252
      %s255 = sphi 0, %s254
      %s269 = sphi 0, %s255
      %s273 = sphi 0, %s273
      %s275 = sphi 0, %s273
      %s276 = sphi 0, %s275
      %s290 = sphi 0, %s276
      %s294 = sphi 0, %s294
      %s296 = sphi 0, %s294
      %s297 = sphi 0, %s296
      %s311 = sphi 0, %s297
      %s317 = sphi 0, %s319
      %s320 = sphi 0, %s317
      %s321 = sphi 0, %s320
      %s337 = sphi 0, %s321
      %s343 = sphi 0, %s345
      %s346 = sphi 0, %s343
      %s347 = sphi 0, %s346
      %s363 = sphi 0, %s347
      %s373 = sphi 0, %s375
      %s376 = sphi 0, %s373
      %s377 = sphi 0, %s376
      %s393 = sphi 0, %s377
    $region4: #{tpu_custom_call.1} parent=1 // loop_header_branch
      %29 = sbr.rel (%p27) target = $region8
    $region5: #{tpu_custom_call.1} parent=1 // loop_body
      %s31 = ssub.s32 %s26, 1
      %s32 = ssub.s32 %s26, 2
      %s42 = sadd.s32 1, %s35
      %p43 = scmp.ge.s32.totalorder %s42, 4
      %s44 = scalar_select %p43, 0, %s42
      %s45 = sadd.s32 1, %s34
      %s46 = scalar_select %p43, %s45, %s34
      %p47 = scmp.ge.s32.totalorder %s46, 1
      %s48 = scalar_select %p47, 0, %s46
      %s49 = sadd.s32 1, %s33
      %s50 = scalar_select %p47, %s49, %s33
      %p51 = scmp.ge.s32.totalorder %s50, 1
      %s52 = scalar_select %p51, 0, %s50
      %s53 = ssub.s32 %s33, %s52
      %p54 = scmp.eq.s32.totalorder %s53, 0
      %s56 = sadd.s32 %s55, 1
      %s57 = scalar_select %p54, %s55, %s56
      %p60 = pneg %p54
      %p61 = scmp.eq.s32.totalorder %s26, 3
      %p62 = por %p60, %p61
      %p63 = scmp.ne.s32.totalorder %s55, %s58
      %p64 = scmp.eq.s32.totalorder %s26, 0
      %p65 = por %p63, %p64
      %p66 = scmp.ne.s32.totalorder %s55, %s58
      %p67 = scmp.eq.s32.totalorder %s31, 3
      %p68 = por %p66, %p67
      %p69 = scmp.ne.s32.totalorder %s58, %s59
      %p70 = scmp.eq.s32.totalorder %s31, 0
      %p71 = por %p69, %p70
      %p72 = scmp.ne.s32.totalorder %s58, %s59
      %p73 = scmp.eq.s32.totalorder %s32, 3
      %p74 = por %p72, %p73
      %p76 = scmp.ne.s32.totalorder %s59, %s75
      %p77 = scmp.eq.s32.totalorder %s32, 0
      %p78 = por %p76, %p77
      %s79 = ssub.s32 %s33, %s52
      %p80 = scmp.eq.s32.totalorder %s79, 0
      %s82 = sadd.s32 %s81, 1
      %s83 = scalar_select %p80, %s81, %s82
      %p86 = pneg %p80
      %p87 = scmp.eq.s32.totalorder %s26, 3
      %p88 = por %p86, %p87
      %p89 = scmp.ne.s32.totalorder %s81, %s84
      %p90 = scmp.eq.s32.totalorder %s26, 0
      %p91 = por %p89, %p90
      %p92 = scmp.ne.s32.totalorder %s81, %s84
      %p93 = scmp.eq.s32.totalorder %s31, 3
      %p94 = por %p92, %p93
      %p95 = scmp.ne.s32.totalorder %s84, %s85
      %p96 = scmp.eq.s32.totalorder %s31, 0
      %p97 = por %p95, %p96
      %p98 = scmp.ne.s32.totalorder %s84, %s85
      %p99 = scmp.eq.s32.totalorder %s32, 3
      %p100 = por %p98, %p99
      %p102 = scmp.ne.s32.totalorder %s85, %s101
      %p103 = scmp.eq.s32.totalorder %s32, 0
      %p104 = por %p102, %p103
      %s106 = sadd.s32 %s105, 1
      %p109 = scmp.eq.s32.totalorder %s26, 3
      %p110 = scmp.ne.s32.totalorder %s105, %s107
      %p111 = scmp.eq.s32.totalorder %s26, 0
      %p112 = por %p110, %p111
      %p113 = scmp.ne.s32.totalorder %s105, %s107
      %p114 = scmp.eq.s32.totalorder %s31, 3
      %p115 = por %p113, %p114
      %p116 = scmp.ne.s32.totalorder %s107, %s108
      %p117 = scmp.eq.s32.totalorder %s31, 0
      %p118 = por %p116, %p117
      %p119 = scmp.ne.s32.totalorder %s107, %s108
      %p120 = scmp.eq.s32.totalorder %s32, 3
      %p121 = por %p119, %p120
      %p123 = scmp.ne.s32.totalorder %s108, %s122
      %p124 = scmp.eq.s32.totalorder %s32, 0
      %p125 = por %p123, %p124
      %s127 = sadd.s32 %s126, 1
      %p130 = scmp.eq.s32.totalorder %s26, 3
      %p131 = scmp.ne.s32.totalorder %s126, %s128
      %p132 = scmp.eq.s32.totalorder %s26, 0
      %p133 = por %p131, %p132
      %p134 = scmp.ne.s32.totalorder %s126, %s128
      %p135 = scmp.eq.s32.totalorder %s31, 3
      %p136 = por %p134, %p135
      %p137 = scmp.ne.s32.totalorder %s128, %s129
      %p138 = scmp.eq.s32.totalorder %s31, 0
      %p139 = por %p137, %p138
      %p140 = scmp.ne.s32.totalorder %s128, %s129
      %p141 = scmp.eq.s32.totalorder %s32, 3
      %p142 = por %p140, %p141
      %p144 = scmp.ne.s32.totalorder %s129, %s143
      %p145 = scmp.eq.s32.totalorder %s32, 0
      %p146 = por %p144, %p145
      %s148 = sadd.s32 %s147, 1
      %p151 = scmp.eq.s32.totalorder %s26, 3
      %p152 = scmp.ne.s32.totalorder %s147, %s149
      %p153 = scmp.eq.s32.totalorder %s26, 0
      %p154 = por %p152, %p153
      %p155 = scmp.ne.s32.totalorder %s147, %s149
      %p156 = scmp.eq.s32.totalorder %s31, 3
      %p157 = por %p155, %p156
      %p158 = scmp.ne.s32.totalorder %s149, %s150
      %p159 = scmp.eq.s32.totalorder %s31, 0
      %p160 = por %p158, %p159
      %p161 = scmp.ne.s32.totalorder %s149, %s150
      %p162 = scmp.eq.s32.totalorder %s32, 3
      %p163 = por %p161, %p162
      %p165 = scmp.ne.s32.totalorder %s150, %s164
      %p166 = scmp.eq.s32.totalorder %s32, 0
      %p167 = por %p165, %p166
      %s169 = sadd.s32 %s168, 1
      %p172 = scmp.eq.s32.totalorder %s26, 3
      %p173 = scmp.ne.s32.totalorder %s168, %s170
      %p174 = scmp.eq.s32.totalorder %s26, 0
      %p175 = por %p173, %p174
      %p176 = scmp.ne.s32.totalorder %s168, %s170
      %p177 = scmp.eq.s32.totalorder %s31, 3
      %p178 = por %p176, %p177
      %p179 = scmp.ne.s32.totalorder %s170, %s171
      %p180 = scmp.eq.s32.totalorder %s31, 0
      %p181 = por %p179, %p180
      %p182 = scmp.ne.s32.totalorder %s170, %s171
      %p183 = scmp.eq.s32.totalorder %s32, 3
      %p184 = por %p182, %p183
      %p186 = scmp.ne.s32.totalorder %s171, %s185
      %p187 = scmp.eq.s32.totalorder %s32, 0
      %p188 = por %p186, %p187
      %s190 = sadd.s32 %s189, 1
      %p193 = scmp.eq.s32.totalorder %s26, 3
      %p194 = scmp.ne.s32.totalorder %s189, %s191
      %p195 = scmp.eq.s32.totalorder %s26, 0
      %p196 = por %p194, %p195
      %p197 = scmp.ne.s32.totalorder %s189, %s191
      %p198 = scmp.eq.s32.totalorder %s31, 3
      %p199 = por %p197, %p198
      %p200 = scmp.ne.s32.totalorder %s191, %s192
      %p201 = scmp.eq.s32.totalorder %s31, 0
      %p202 = por %p200, %p201
      %p203 = scmp.ne.s32.totalorder %s191, %s192
      %p204 = scmp.eq.s32.totalorder %s32, 3
      %p205 = por %p203, %p204
      %p207 = scmp.ne.s32.totalorder %s192, %s206
      %p208 = scmp.eq.s32.totalorder %s32, 0
      %p209 = por %p207, %p208
      %s211 = sadd.s32 %s210, 1
      %p214 = scmp.eq.s32.totalorder %s26, 3
      %p215 = scmp.ne.s32.totalorder %s210, %s212
      %p216 = scmp.eq.s32.totalorder %s26, 0
      %p217 = por %p215, %p216
      %p218 = scmp.ne.s32.totalorder %s210, %s212
      %p219 = scmp.eq.s32.totalorder %s31, 3
      %p220 = por %p218, %p219
      %p221 = scmp.ne.s32.totalorder %s212, %s213
      %p222 = scmp.eq.s32.totalorder %s31, 0
      %p223 = por %p221, %p222
      %p224 = scmp.ne.s32.totalorder %s212, %s213
      %p225 = scmp.eq.s32.totalorder %s32, 3
      %p226 = por %p224, %p225
      %p228 = scmp.ne.s32.totalorder %s213, %s227
      %p229 = scmp.eq.s32.totalorder %s32, 0
      %p230 = por %p228, %p229
      %s232 = sadd.s32 %s231, 1
      %p235 = scmp.eq.s32.totalorder %s26, 3
      %p236 = scmp.ne.s32.totalorder %s231, %s233
      %p237 = scmp.eq.s32.totalorder %s26, 0
      %p238 = por %p236, %p237
      %p239 = scmp.ne.s32.totalorder %s231, %s233
      %p240 = scmp.eq.s32.totalorder %s31, 3
      %p241 = por %p239, %p240
      %p242 = scmp.ne.s32.totalorder %s233, %s234
      %p243 = scmp.eq.s32.totalorder %s31, 0
      %p244 = por %p242, %p243
      %p245 = scmp.ne.s32.totalorder %s233, %s234
      %p246 = scmp.eq.s32.totalorder %s32, 3
      %p247 = por %p245, %p246
      %p249 = scmp.ne.s32.totalorder %s234, %s248
      %p250 = scmp.eq.s32.totalorder %s32, 0
      %p251 = por %p249, %p250
      %s253 = sadd.s32 %s252, 1
      %p256 = scmp.eq.s32.totalorder %s26, 3
      %p257 = scmp.ne.s32.totalorder %s252, %s254
      %p258 = scmp.eq.s32.totalorder %s26, 0
      %p259 = por %p257, %p258
      %p260 = scmp.ne.s32.totalorder %s252, %s254
      %p261 = scmp.eq.s32.totalorder %s31, 3
      %p262 = por %p260, %p261
      %p263 = scmp.ne.s32.totalorder %s254, %s255
      %p264 = scmp.eq.s32.totalorder %s31, 0
      %p265 = por %p263, %p264
      %p266 = scmp.ne.s32.totalorder %s254, %s255
      %p267 = scmp.eq.s32.totalorder %s32, 3
      %p268 = por %p266, %p267
      %p270 = scmp.ne.s32.totalorder %s255, %s269
      %p271 = scmp.eq.s32.totalorder %s32, 0
      %p272 = por %p270, %p271
      %s274 = sadd.s32 %s273, 1
      %p277 = scmp.eq.s32.totalorder %s26, 3
      %p278 = scmp.ne.s32.totalorder %s273, %s275
      %p279 = scmp.eq.s32.totalorder %s26, 0
      %p280 = por %p278, %p279
      %p281 = scmp.ne.s32.totalorder %s273, %s275
      %p282 = scmp.eq.s32.totalorder %s31, 3
      %p283 = por %p281, %p282
      %p284 = scmp.ne.s32.totalorder %s275, %s276
      %p285 = scmp.eq.s32.totalorder %s31, 0
      %p286 = por %p284, %p285
      %p287 = scmp.ne.s32.totalorder %s275, %s276
      %p288 = scmp.eq.s32.totalorder %s32, 3
      %p289 = por %p287, %p288
      %p291 = scmp.ne.s32.totalorder %s276, %s290
      %p292 = scmp.eq.s32.totalorder %s32, 0
      %p293 = por %p291, %p292
      %s295 = sadd.s32 %s294, 1
      %p298 = scmp.eq.s32.totalorder %s26, 3
      %p299 = scmp.ne.s32.totalorder %s294, %s296
      %p300 = scmp.eq.s32.totalorder %s26, 0
      %p301 = por %p299, %p300
      %p302 = scmp.ne.s32.totalorder %s294, %s296
      %p303 = scmp.eq.s32.totalorder %s31, 3
      %p304 = por %p302, %p303
      %p305 = scmp.ne.s32.totalorder %s296, %s297
      %p306 = scmp.eq.s32.totalorder %s31, 0
      %p307 = por %p305, %p306
      %p308 = scmp.ne.s32.totalorder %s296, %s297
      %p309 = scmp.eq.s32.totalorder %s32, 3
      %p310 = por %p308, %p309
      %p312 = scmp.ne.s32.totalorder %s297, %s311
      %p313 = scmp.eq.s32.totalorder %s32, 0
      %p314 = por %p312, %p313
      %s315 = ssub.s32 %s34, %s48
      %p316 = scmp.eq.s32.totalorder %s315, 0
      %s318 = sadd.s32 %s317, 1
      %s319 = scalar_select %p316, %s317, %s318
      %p322 = pneg %p316
      %p323 = scmp.eq.s32.totalorder %s26, 3
      %p324 = por %p322, %p323
      %p325 = scmp.ne.s32.totalorder %s317, %s320
      %p326 = scmp.eq.s32.totalorder %s26, 0
      %p327 = por %p325, %p326
      %p328 = scmp.ne.s32.totalorder %s317, %s320
      %p329 = scmp.eq.s32.totalorder %s31, 3
      %p330 = por %p328, %p329
      %p331 = scmp.ne.s32.totalorder %s320, %s321
      %p332 = scmp.eq.s32.totalorder %s31, 0
      %p333 = por %p331, %p332
      %p334 = scmp.ne.s32.totalorder %s320, %s321
      %p335 = scmp.eq.s32.totalorder %s32, 3
      %p336 = por %p334, %p335
      %p338 = scmp.ne.s32.totalorder %s321, %s337
      %p339 = scmp.eq.s32.totalorder %s32, 0
      %p340 = por %p338, %p339
      %s341 = ssub.s32 %s34, %s48
      %p342 = scmp.eq.s32.totalorder %s341, 0
      %s344 = sadd.s32 %s343, 1
      %s345 = scalar_select %p342, %s343, %s344
      %p348 = pneg %p342
      %p349 = scmp.eq.s32.totalorder %s26, 3
      %p350 = por %p348, %p349
      %p351 = scmp.ne.s32.totalorder %s343, %s346
      %p352 = scmp.eq.s32.totalorder %s26, 0
      %p353 = por %p351, %p352
      %p354 = scmp.ne.s32.totalorder %s343, %s346
      %p355 = scmp.eq.s32.totalorder %s31, 3
      %p356 = por %p354, %p355
      %p357 = scmp.ne.s32.totalorder %s346, %s347
      %p358 = scmp.eq.s32.totalorder %s31, 0
      %p359 = por %p357, %p358
      %p360 = scmp.ne.s32.totalorder %s346, %s347
      %p361 = scmp.eq.s32.totalorder %s32, 3
      %p362 = por %p360, %p361
      %p364 = scmp.ne.s32.totalorder %s347, %s363
      %p365 = scmp.eq.s32.totalorder %s32, 0
      %p366 = por %p364, %p365
      %s367 = sadd.s32 %s35, %s34
      %s368 = sadd.s32 %s44, %s48
      %s369 = ssub.s32 %s33, %s52
      %s370 = ssub.s32 %s367, %s368
      %s371 = sor.u32 %s369, %s370
      %p372 = scmp.eq.s32.totalorder %s371, 0
      %s374 = sadd.s32 %s373, 1
      %s375 = scalar_select %p372, %s373, %s374
      %p378 = pneg %p372
      %p379 = scmp.eq.s32.totalorder %s26, 3
      %p380 = por %p378, %p379
      %p381 = scmp.ne.s32.totalorder %s373, %s376
      %p382 = scmp.eq.s32.totalorder %s26, 0
      %p383 = por %p381, %p382
      %p384 = scmp.ne.s32.totalorder %s373, %s376
      %p385 = scmp.eq.s32.totalorder %s31, 3
      %p386 = por %p384, %p385
      %p387 = scmp.ne.s32.totalorder %s376, %s377
      %p388 = scmp.eq.s32.totalorder %s31, 0
      %p389 = por %p387, %p388
      %p390 = scmp.ne.s32.totalorder %s376, %s377
      %p391 = scmp.eq.s32.totalorder %s32, 3
      %p392 = por %p390, %p391
      %p394 = scmp.ne.s32.totalorder %s377, %s393
      %p395 = scmp.eq.s32.totalorder %s32, 0
      %p396 = por %p394, %p395
      %p397 = scmp.le.s32.totalorder 1, %s26
      %p398 = scmp.lt.s32.totalorder %s26, 5
      %p399 = pnand %p397, %p398
      %p400 = pneg %p399
      // Predicated region
      $region9: #{tpu_custom_call.1} parent=5 // pred_check
        _
      $region10: #{tpu_custom_call.1} parent=5 // pred_check_branch
        %402 = sbr.rel (%p399) target = $region12
      $region11: #{tpu_custom_call.1} parent=5 // pred_region
        %s403 = ssub.s32 %s26, 1
        // Predicated region
        $region13: #{tpu_custom_call.1} parent=11 // pred_check
          %p404 = pneg %p71
        $region14: #{tpu_custom_call.1} parent=11 // pred_check_branch
          %406 = sbr.rel (%p404) target = $region16
        $region15: #{tpu_custom_call.1} parent=11 // pred_region
          %s407 = smul.u32 16, %s36
          %p408 = scmp.lt.s32.totalorder %s407, 15
          %s409 = scalar_select %p408, %s407, 15
          %s410 = smul.addr %s409, 4
          %s411 = scalar_lea.vmem %s0, %s410
          %s412 = smul.u32 16, %s36
        $region16: #{tpu_custom_call.1} parent=11 // pred_fallthru
          _
        // Predicated region
        $region17: #{tpu_custom_call.1} parent=11 // pred_check
          %p413 = pneg %p97
        $region18: #{tpu_custom_call.1} parent=11 // pred_check_branch
          %415 = sbr.rel (%p413) target = $region20
        $region19: #{tpu_custom_call.1} parent=11 // pred_region
          %s416 = smul.u32 16, %s36
          %p417 = scmp.lt.s32.totalorder %s416, 15
          %s418 = scalar_select %p417, %s416, 15
          %s419 = smul.addr %s418, 4
          %s420 = scalar_lea.vmem %s1, %s419
          %s421 = smul.u32 16, %s36
        $region20: #{tpu_custom_call.1} parent=11 // pred_fallthru
          _
        // Predicated region
        $region21: #{tpu_custom_call.1} parent=11 // pred_check
          %p422 = pneg %p118
        $region22: #{tpu_custom_call.1} parent=11 // pred_check_branch
          %424 = sbr.rel (%p422) target = $region24
        $region23: #{tpu_custom_call.1} parent=11 // pred_region
          _
        $region24: #{tpu_custom_call.1} parent=11 // pred_fallthru
          _
        // Predicated region
        $region25: #{tpu_custom_call.1} parent=11 // pred_check
          %p425 = pneg %p139
        $region26: #{tpu_custom_call.1} parent=11 // pred_check_branch
          %427 = sbr.rel (%p425) target = $region28
        $region27: #{tpu_custom_call.1} parent=11 // pred_region
          _
        $region28: #{tpu_custom_call.1} parent=11 // pred_fallthru
          _
        // Predicated region
        $region29: #{tpu_custom_call.1} parent=11 // pred_check
          %p428 = pneg %p160
        $region30: #{tpu_custom_call.1} parent=11 // pred_check_branch
          %430 = sbr.rel (%p428) target = $region32
        $region31: #{tpu_custom_call.1} parent=11 // pred_region
          %s432 = ssub.s32 1024, 1024
          %433 = vsyncadd [#allocation4], %s432
          %s434 = sshll.u32 [#allocation3], 4
          %s435 = int_to_ptr.vmem [resolvable:$true] %s434
          %440 = dma.hbm_to_vmem [thread:$0]  %s4, 1024, %s435, [#allocation4], 64, 64, 4
        $region32: #{tpu_custom_call.1} parent=11 // pred_fallthru
          _
        // Predicated region
        $region33: #{tpu_custom_call.1} parent=11 // pred_check
          %p441 = pneg %p181
        $region34: #{tpu_custom_call.1} parent=11 // pred_check_branch
          %443 = sbr.rel (%p441) target = $region36
        $region35: #{tpu_custom_call.1} parent=11 // pred_region
          _
        $region36: #{tpu_custom_call.1} parent=11 // pred_fallthru
          _
        // Predicated region
        $region37: #{tpu_custom_call.1} parent=11 // pred_check
          %p444 = pneg %p202
        $region38: #{tpu_custom_call.1} parent=11 // pred_check_branch
          %446 = sbr.rel (%p444) target = $region40
        $region39: #{tpu_custom_call.1} parent=11 // pred_region
          %s448 = ssub.s32 1024, 1024
          %449 = vsyncadd [#allocation7], %s448
          %s450 = sshll.u32 [#allocation6], 4
          %s451 = int_to_ptr.vmem [resolvable:$true] %s450
          %456 = dma.hbm_to_vmem [thread:$0]  %s6, 1024, %s451, [#allocation7], 64, 64, 4
        $region40: #{tpu_custom_call.1} parent=11 // pred_fallthru
          _
        // Predicated region
        $region41: #{tpu_custom_call.1} parent=11 // pred_check
          %p457 = pneg %p223
        $region42: #{tpu_custom_call.1} parent=11 // pred_check_branch
          %459 = sbr.rel (%p457) target = $region44
        $region43: #{tpu_custom_call.1} parent=11 // pred_region
          _
        $region44: #{tpu_custom_call.1} parent=11 // pred_fallthru
          _
        // Predicated region
        $region45: #{tpu_custom_call.1} parent=11 // pred_check
          %p460 = pneg %p244
        $region46: #{tpu_custom_call.1} parent=11 // pred_check_branch
          %462 = sbr.rel (%p460) target = $region48
        $region47: #{tpu_custom_call.1} parent=11 // pred_region
          %s464 = ssub.s32 1024, 1024
          %465 = vsyncadd [#allocation7], %s464
          %s466 = sshll.u32 [#allocation8], 4
          %s467 = int_to_ptr.vmem [resolvable:$true] %s466
          %472 = dma.hbm_to_vmem [thread:$0]  %s8, 1024, %s467, [#allocation7], 64, 64, 4
        $region48: #{tpu_custom_call.1} parent=11 // pred_fallthru
          _
        // Predicated region
        $region49: #{tpu_custom_call.1} parent=11 // pred_check
          %p473 = pneg %p265
        $region50: #{tpu_custom_call.1} parent=11 // pred_check_branch
          %475 = sbr.rel (%p473) target = $region52
        $region51: #{tpu_custom_call.1} parent=11 // pred_region
          _
        $region52: #{tpu_custom_call.1} parent=11 // pred_fallthru
          _
        // Predicated region
        $region53: #{tpu_custom_call.1} parent=11 // pred_check
          %p476 = pneg %p286
        $region54: #{tpu_custom_call.1} parent=11 // pred_check_branch
          %478 = sbr.rel (%p476) target = $region56
        $region55: #{tpu_custom_call.1} parent=11 // pred_region
          %s480 = ssub.s32 1024, 1024
          %481 = vsyncadd [#allocation10], %s480
          %s482 = sshll.u32 [#allocation9], 4
          %s483 = int_to_ptr.vmem [resolvable:$true] %s482
          %488 = dma.hbm_to_vmem [thread:$0]  %s10, 1024, %s483, [#allocation10], 64, 64, 4
        $region56: #{tpu_custom_call.1} parent=11 // pred_fallthru
          _
        // Predicated region
        $region57: #{tpu_custom_call.1} parent=11 // pred_check
          %p489 = pneg %p307
        $region58: #{tpu_custom_call.1} parent=11 // pred_check_branch
          %491 = sbr.rel (%p489) target = $region60
        $region59: #{tpu_custom_call.1} parent=11 // pred_region
          _
        $region60: #{tpu_custom_call.1} parent=11 // pred_fallthru
          _
        // Predicated region
        $region61: #{tpu_custom_call.1} parent=11 // pred_check
          %p492 = pneg %p333
        $region62: #{tpu_custom_call.1} parent=11 // pred_check_branch
          %494 = sbr.rel (%p492) target = $region64
        $region63: #{tpu_custom_call.1} parent=11 // pred_region
          %p495 = scmp.lt.s32.totalorder %s37, 0
          %s496 = scalar_select %p495, %s37, 0
          %s497 = smul.addr %s496, 4
          %s498 = scalar_lea.vmem %s12, %s497
        $region64: #{tpu_custom_call.1} parent=11 // pred_fallthru
          _
        // Predicated region
        $region65: #{tpu_custom_call.1} parent=11 // pred_check
          %p499 = pneg %p359
        $region66: #{tpu_custom_call.1} parent=11 // pred_check_branch
          %501 = sbr.rel (%p499) target = $region68
        $region67: #{tpu_custom_call.1} parent=11 // pred_region
          %p502 = scmp.lt.s32.totalorder %s37, 0
          %s503 = scalar_select %p502, %s37, 0
          %s504 = scalar_lea.vmem %s13, %s503
        $region68: #{tpu_custom_call.1} parent=11 // pred_fallthru
          _
      $region12: #{tpu_custom_call.1} parent=5 // pred_fallthru
        _
      %p505 = scmp.lt.s32.totalorder %s26, 4
      // Predicated region
      $region69: #{tpu_custom_call.1} parent=5 // pred_check
        %p506 = pneg %p505
      $region70: #{tpu_custom_call.1} parent=5 // pred_check_branch
        %508 = sbr.rel (%p506) target = $region72
      $region71: #{tpu_custom_call.1} parent=5 // pred_region
        _
      $region72: #{tpu_custom_call.1} parent=5 // pred_fallthru
        _
      %p509 = scmp.le.s32.totalorder 1, %s26
      %p510 = scmp.lt.s32.totalorder %s26, 5
      %p511 = pnand %p509, %p510
      %p512 = pneg %p511
      // Predicated region
      $region73: #{tpu_custom_call.1} parent=5 // pred_check
        _
      $region74: #{tpu_custom_call.1} parent=5 // pred_check_branch
        %514 = sbr.rel (%p511) target = $region76
      $region75: #{tpu_custom_call.1} parent=5 // pred_region
        %s515 = ssub.s32 %s26, 1
        // Predicated region
        $region77: #{tpu_custom_call.1} parent=75 // pred_check
          %p516 = pneg %p160
        $region78: #{tpu_custom_call.1} parent=75 // pred_check_branch
          %518 = sbr.rel (%p516) target = $region80
        $region79: #{tpu_custom_call.1} parent=75 // pred_region
          %519 = dma.done [#allocation4], 1024
        $region80: #{tpu_custom_call.1} parent=75 // pred_fallthru
          _
        // Predicated region
        $region81: #{tpu_custom_call.1} parent=75 // pred_check
          %p520 = pneg %p202
        $region82: #{tpu_custom_call.1} parent=75 // pred_check_branch
          %522 = sbr.rel (%p520) target = $region84
        $region83: #{tpu_custom_call.1} parent=75 // pred_region
          %523 = dma.done [#allocation7], 1024
        $region84: #{tpu_custom_call.1} parent=75 // pred_fallthru
          _
        // Predicated region
        $region85: #{tpu_custom_call.1} parent=75 // pred_check
          %p524 = pneg %p244
        $region86: #{tpu_custom_call.1} parent=75 // pred_check_branch
          %526 = sbr.rel (%p524) target = $region88
        $region87: #{tpu_custom_call.1} parent=75 // pred_region
          %527 = dma.done [#allocation7], 1024
        $region88: #{tpu_custom_call.1} parent=75 // pred_fallthru
          _
        // Predicated region
        $region89: #{tpu_custom_call.1} parent=75 // pred_check
          %p528 = pneg %p286
        $region90: #{tpu_custom_call.1} parent=75 // pred_check_branch
          %530 = sbr.rel (%p528) target = $region92
        $region91: #{tpu_custom_call.1} parent=75 // pred_region
          %531 = dma.done [#allocation10], 1024
        $region92: #{tpu_custom_call.1} parent=75 // pred_fallthru
          _
        %s532 = smul.u32 16, %s36
        %p533 = scmp.lt.s32.totalorder %s532, 15
        %s534 = scalar_select %p533, %s532, 15
        %s535 = smul.addr %s534, 4
        %s536 = scalar_lea.vmem %s0, %s535
        %p537 = pneg %p71
        %p538 = pneg %p68
        %s539 = smul.u32 16, %s36
        %p540 = scmp.lt.s32.totalorder %s539, 15
        %s541 = scalar_select %p540, %s539, 15
        %s542 = smul.addr %s541, 4
        %s543 = scalar_lea.vmem %s1, %s542
        %p544 = pneg %p97
        %p545 = pneg %p94
        %p546 = pneg %p118
        %p547 = pneg %p115
        %p548 = pneg %p139
        %p549 = pneg %p136
        %p550 = pneg %p160
        %p551 = pneg %p157
        %p552 = pneg %p181
        %p553 = pneg %p178
        %p554 = pneg %p202
        %p555 = pneg %p199
        %p556 = pneg %p223
        %p557 = pneg %p220
        %p558 = pneg %p244
        %p559 = pneg %p241
        %p560 = pneg %p265
        %p561 = pneg %p262
        %p562 = pneg %p286
        %p563 = pneg %p283
        %p564 = pneg %p307
        %p565 = pneg %p304
        %p566 = scmp.lt.s32.totalorder %s37, 0
        %s567 = scalar_select %p566, %s37, 0
        %s568 = smul.addr %s567, 4
        %s569 = scalar_lea.vmem %s12, %s568
        %p570 = pneg %p333
        %p571 = pneg %p330
        %p572 = scmp.lt.s32.totalorder %s37, 0
        %s573 = scalar_select %p572, %s37, 0
        %s574 = scalar_lea.vmem %s13, %s573
        %p575 = pneg %p359
        %p576 = pneg %p356
        %p577 = pneg %p389
        %p578 = pneg %p386
        %s579 = sand.u32 %s376, 1
        %s580 = scalar_lea.sflag [#allocation5], %s579
        %s581 = sand.u32 %s376, 1
        %s582 = smul.addr %s581, 64
        %s583 = scalar_lea.vmem [#allocation11], %s582
        %s584 = smul.u32 16, %s36
        %p585 = scmp.lt.s32.totalorder %s584, 15
        %s586 = scalar_select %p585, %s584, 15
        %s587 = smul.addr %s586, 4
        %s588 = scalar_lea.vmem %s0, %s587
        %s589 = smul.u32 16, %s36
        %s590 = smul.u32 16, %s36
        %p591 = scmp.lt.s32.totalorder %s590, 15
        %s592 = scalar_select %p591, %s590, 15
        %s593 = smul.addr %s592, 4
        %s594 = scalar_lea.vmem %s1, %s593
        %s595 = smul.u32 16, %s36
        %p596 = scmp.lt.s32.totalorder %s37, 0
        %s597 = scalar_select %p596, %s37, 0
        %s598 = smul.addr %s597, 4
        %s599 = scalar_lea.vmem %s12, %s598
        %p600 = scmp.lt.s32.totalorder %s37, 0
        %s601 = scalar_select %p600, %s37, 0
        %s602 = scalar_lea.vmem %s13, %s601
        %s603 = sadd.s32 %s38, %s37
        %s604 = smul.u32 16, %s36
        %p606 = scmp.eq.s32.totalorder %s37, 0
        %p607 = scmp.eq.s32.totalorder %s38, 0
        %p608 = pnand %p606, %p607
        %p609 = pneg %p608
        // Predicated region
        $region93: #{tpu_custom_call.1} parent=75 // pred_check
          _
        $region94: #{tpu_custom_call.1} parent=75 // pred_check_branch
          %611 = sbr.rel (%p608) target = $region96
        $region95: #{tpu_custom_call.1} parent=75 // pred_region
          %v612 = vld [vmem:[%s588] sm:$0xf]
          %v613 = vld [vmem:[%s588 + $0x4] sm:$0xf]
          %v614 = vld [vmem:[%s588 + $0x8] sm:$0xf]
          %v615 = vld [vmem:[%s588 + $0xc] sm:$0xf]
          %v616 = vld [vmem:[%s588 + $0x10] sm:$0xf]
          %v617 = vld [vmem:[%s588 + $0x14] sm:$0xf]
          %v618 = vld [vmem:[%s588 + $0x18] sm:$0xf]
          %v619 = vld [vmem:[%s588 + $0x1c] sm:$0xf]
          %v620 = vld [vmem:[%s588 + $0x20] sm:$0xf]
          %v621 = vld [vmem:[%s588 + $0x24] sm:$0xf]
          %v622 = vld [vmem:[%s588 + $0x28] sm:$0xf]
          %v623 = vld [vmem:[%s588 + $0x2c] sm:$0xf]
          %v624 = vld [vmem:[%s588 + $0x30] sm:$0xf]
          %v625 = vld [vmem:[%s588 + $0x34] sm:$0xf]
          %v626 = vld [vmem:[%s588 + $0x38] sm:$0xf]
          %v627 = vld [vmem:[%s588 + $0x3c] sm:$0xf]
          %v628 = vunpack.c.l.bf16 %v612
          %v629 = vunpack.c.l.bf16 %v613
          %v630 = vunpack.c.l.bf16 %v614
          %v631 = vunpack.c.l.bf16 %v615
          %v632 = vunpack.c.l.bf16 %v616
          %v633 = vunpack.c.l.bf16 %v617
          %v634 = vunpack.c.l.bf16 %v618
          %v635 = vunpack.c.l.bf16 %v619
          %v636 = vunpack.c.l.bf16 %v620
          %v637 = vunpack.c.l.bf16 %v621
          %v638 = vunpack.c.l.bf16 %v622
          %v639 = vunpack.c.l.bf16 %v623
          %v640 = vunpack.c.l.bf16 %v624
          %v641 = vunpack.c.l.bf16 %v625
          %v642 = vunpack.c.l.bf16 %v626
          %v643 = vunpack.c.l.bf16 %v627
          %v644 = vmul.f32 %v628, 0.5
          %v645 = vmul.f32 %v629, 0.5
          %v646 = vmul.f32 %v630, 0.5
          %v647 = vmul.f32 %v631, 0.5
          %v648 = vmul.f32 %v632, 0.5
          %v649 = vmul.f32 %v633, 0.5
          %v650 = vmul.f32 %v634, 0.5
          %v651 = vmul.f32 %v635, 0.5
          %v652 = vmul.f32 %v636, 0.5
          %v653 = vmul.f32 %v637, 0.5
          %v654 = vmul.f32 %v638, 0.5
          %v655 = vmul.f32 %v639, 0.5
          %v656 = vmul.f32 %v640, 0.5
          %v657 = vmul.f32 %v641, 0.5
          %v658 = vmul.f32 %v642, 0.5
          %v659 = vmul.f32 %v643, 0.5
          %v660 = vmul.f32 %v628, 0.044715
          %v661 = vmul.f32 %v629, 0.044715
          %v662 = vmul.f32 %v630, 0.044715
          %v663 = vmul.f32 %v631, 0.044715
          %v664 = vmul.f32 %v632, 0.044715
          %v665 = vmul.f32 %v633, 0.044715
          %v666 = vmul.f32 %v634, 0.044715
          %v667 = vmul.f32 %v635, 0.044715
          %v668 = vmul.f32 %v636, 0.044715
          %v669 = vmul.f32 %v637, 0.044715
          %v670 = vmul.f32 %v638, 0.044715
          %v671 = vmul.f32 %v639, 0.044715
          %v672 = vmul.f32 %v640, 0.044715
          %v673 = vmul.f32 %v641, 0.044715
          %v674 = vmul.f32 %v642, 0.044715
          %v675 = vmul.f32 %v643, 0.044715
          %v676 = vmul.f32 %v660, %v628
          %v677 = vmul.f32 %v661, %v629
          %v678 = vmul.f32 %v662, %v630
          %v679 = vmul.f32 %v663, %v631
          %v680 = vmul.f32 %v664, %v632
          %v681 = vmul.f32 %v665, %v633
          %v682 = vmul.f32 %v666, %v634
          %v683 = vmul.f32 %v667, %v635
          %v684 = vmul.f32 %v668, %v636
          %v685 = vmul.f32 %v669, %v637
          %v686 = vmul.f32 %v670, %v638
          %v687 = vmul.f32 %v671, %v639
          %v688 = vmul.f32 %v672, %v640
          %v689 = vmul.f32 %v673, %v641
          %v690 = vmul.f32 %v674, %v642
          %v691 = vmul.f32 %v675, %v643
          %v692 = vmul.f32 %v676, %v628
          %v693 = vmul.f32 %v677, %v629
          %v694 = vmul.f32 %v678, %v630
          %v695 = vmul.f32 %v679, %v631
          %v696 = vmul.f32 %v680, %v632
          %v697 = vmul.f32 %v681, %v633
          %v698 = vmul.f32 %v682, %v634
          %v699 = vmul.f32 %v683, %v635
          %v700 = vmul.f32 %v684, %v636
          %v701 = vmul.f32 %v685, %v637
          %v702 = vmul.f32 %v686, %v638
          %v703 = vmul.f32 %v687, %v639
          %v704 = vmul.f32 %v688, %v640
          %v705 = vmul.f32 %v689, %v641
          %v706 = vmul.f32 %v690, %v642
          %v707 = vmul.f32 %v691, %v643
          %v708 = vadd.f32 %v628, %v692
          %v709 = vadd.f32 %v629, %v693
          %v710 = vadd.f32 %v630, %v694
          %v711 = vadd.f32 %v631, %v695
          %v712 = vadd.f32 %v632, %v696
          %v713 = vadd.f32 %v633, %v697
          %v714 = vadd.f32 %v634, %v698
          %v715 = vadd.f32 %v635, %v699
          %v716 = vadd.f32 %v636, %v700
          %v717 = vadd.f32 %v637, %v701
          %v718 = vadd.f32 %v638, %v702
          %v719 = vadd.f32 %v639, %v703
          %v720 = vadd.f32 %v640, %v704
          %v721 = vadd.f32 %v641, %v705
          %v722 = vadd.f32 %v642, %v706
          %v723 = vadd.f32 %v643, %v707
          %v724 = vmul.f32 %v708, 0.7978846
          %v725 = vmul.f32 %v709, 0.7978846
          %v726 = vmul.f32 %v710, 0.7978846
          %v727 = vmul.f32 %v711, 0.7978846
          %v728 = vmul.f32 %v712, 0.7978846
          %v729 = vmul.f32 %v713, 0.7978846
          %v730 = vmul.f32 %v714, 0.7978846
          %v731 = vmul.f32 %v715, 0.7978846
          %v732 = vmul.f32 %v716, 0.7978846
          %v733 = vmul.f32 %v717, 0.7978846
          %v734 = vmul.f32 %v718, 0.7978846
          %v735 = vmul.f32 %v719, 0.7978846
          %v736 = vmul.f32 %v720, 0.7978846
          %v737 = vmul.f32 %v721, 0.7978846
          %v738 = vmul.f32 %v722, 0.7978846
          %v739 = vmul.f32 %v723, 0.7978846
          %v740 = vtanh.pop %v724
          %v741 = vtanh.pop %v725
          %v742 = vtanh.pop %v726
          %v743 = vtanh.pop %v727
          %v744 = vtanh.pop %v728
          %v745 = vtanh.pop %v729
          %v746 = vtanh.pop %v730
          %v747 = vtanh.pop %v731
          %v748 = vtanh.pop %v732
          %v749 = vtanh.pop %v733
          %v750 = vtanh.pop %v734
          %v751 = vtanh.pop %v735
          %v752 = vtanh.pop %v736
          %v753 = vtanh.pop %v737
          %v754 = vtanh.pop %v738
          %v755 = vtanh.pop %v739
          %v756 = vadd.f32 %v740, 1.0
          %v757 = vadd.f32 %v741, 1.0
          %v758 = vadd.f32 %v742, 1.0
          %v759 = vadd.f32 %v743, 1.0
          %v760 = vadd.f32 %v744, 1.0
          %v761 = vadd.f32 %v745, 1.0
          %v762 = vadd.f32 %v746, 1.0
          %v763 = vadd.f32 %v747, 1.0
          %v764 = vadd.f32 %v748, 1.0
          %v765 = vadd.f32 %v749, 1.0
          %v766 = vadd.f32 %v750, 1.0
          %v767 = vadd.f32 %v751, 1.0
          %v768 = vadd.f32 %v752, 1.0
          %v769 = vadd.f32 %v753, 1.0
          %v770 = vadd.f32 %v754, 1.0
          %v771 = vadd.f32 %v755, 1.0
          %v772 = vmul.f32 %v644, %v756
          %v773 = vmul.f32 %v645, %v757
          %v774 = vmul.f32 %v646, %v758
          %v775 = vmul.f32 %v647, %v759
          %v776 = vmul.f32 %v648, %v760
          %v777 = vmul.f32 %v649, %v761
          %v778 = vmul.f32 %v650, %v762
          %v779 = vmul.f32 %v651, %v763
          %v780 = vmul.f32 %v652, %v764
          %v781 = vmul.f32 %v653, %v765
          %v782 = vmul.f32 %v654, %v766
          %v783 = vmul.f32 %v655, %v767
          %v784 = vmul.f32 %v656, %v768
          %v785 = vmul.f32 %v657, %v769
          %v786 = vmul.f32 %v658, %v770
          %v787 = vmul.f32 %v659, %v771
          %v788 = vpack.c.bf16 %v773, %v772
          %v789 = vpack.c.bf16 %v775, %v774
          %v790 = vpack.c.bf16 %v777, %v776
          %v791 = vpack.c.bf16 %v779, %v778
          %v792 = vpack.c.bf16 %v781, %v780
          %v793 = vpack.c.bf16 %v783, %v782
          %v794 = vpack.c.bf16 %v785, %v784
          %v795 = vpack.c.bf16 %v787, %v786
          %v796 = vld [vmem:[%s2] sm:$0xf]
          %v797 = vld [vmem:[%s2 + $0x4] sm:$0xf]
          %v798 = vld [vmem:[%s2 + $0x8] sm:$0xf]
          %v799 = vld [vmem:[%s2 + $0xc] sm:$0xf]
          %v800 = vld [vmem:[%s3] sm:$0x1]
          %v802 = vlaneseq
          %v803 = vshrl.u32 %v802, 7
          %v804 = vsub.s32 0, %v803
          %v805 = vrot.slane %v800, %v804
          %v811 = vunpack.c.l.b16 %v796
          %v812 = vunpack.c.l.b16 %v797
          %v813 = vunpack.c.l.b16 %v798
          %v814 = vunpack.c.l.b16 %v799
          %v815 = vpack.c.b16 %v812, %v811
          %v816 = vpack.c.b16 %v814, %v813
          %vm819 = vcmask 261120
          %v821 = vsel %vm819, %v788, 0
          %v824 = vsel %vm819, %v789, 0
          %v827 = vsel %vm819, %v790, 0
          %v830 = vsel %vm819, %v791, 0
          %v833 = vsel %vm819, %v792, 0
          %v836 = vsel %vm819, %v793, 0
          %v839 = vsel %vm819, %v794, 0
          %v842 = vsel %vm819, %v795, 0
          %844 = vmatprep.subr.bf16.mxu0 0
          %845 = vmatpush1.bf16.msra.mxu0 %v815
          %846 = vmatprep.subr.bf16.mxu0 0
          %847 = vmatpush1.bf16.msra.mxu0 %v816
          %848 = vmatprep.subr.bf16.mxu0 0
          %849 = vmatpush1.bf16.msra.mxu0 0
          %850 = vmatprep.subr.bf16.mxu0 0
          %851 = vmatpush1.bf16.msra.mxu0 0
          %852 = vmatprep.subr.bf16.mxu0 0
          %853 = vmatpush1.bf16.msra.mxu0 0
          %854 = vmatprep.subr.bf16.mxu0 0
          %855 = vmatpush1.bf16.msra.mxu0 0
          %856 = vmatprep.subr.bf16.mxu0 0
          %857 = vmatpush1.bf16.msra.mxu0 0
          %858 = vmatprep.subr.bf16.mxu0 0
          %859 = vmatpush1.bf16.msra.mxu0 0
          %860 = vmatprep.subr.bf16.mxu0 0
          %861 = vmatpush1.bf16.msra.mxu0 0
          %862 = vmatprep.subr.bf16.mxu0 0
          %863 = vmatpush1.bf16.msra.mxu0 0
          %864 = vmatprep.subr.bf16.mxu0 0
          %865 = vmatpush1.bf16.msra.mxu0 0
          %866 = vmatprep.subr.bf16.mxu0 0
          %867 = vmatpush1.bf16.msra.mxu0 0
          %868 = vmatprep.subr.bf16.mxu0 0
          %869 = vmatpush1.bf16.msra.mxu0 0
          %870 = vmatprep.subr.bf16.mxu0 0
          %871 = vmatpush1.bf16.msra.mxu0 0
          %872 = vmatprep.subr.bf16.mxu0 0
          %873 = vmatpush1.bf16.msra.mxu0 0
          %874 = vmatprep.subr.bf16.mxu0 0
          %875 = vmatpush1.bf16.msra.mxu0 0
          %876 = vmatprep.mubr.bf16.mxu0 0
          %877 = vmatmul.mubr.bf16.gmra.mrb[0].mxu0 %v821
          %v878 = vpop.f32.mrb[0].mxu0
          %v879 = vadd.f32 %v805, %v878
          %v880 = vpop.f32.mrb[0].mxu0
          %v881 = vpop.f32.mrb[0].mxu0
          %v882 = vadd.f32 %v805, %v881
          %v883 = vpop.f32.mrb[0].mxu0
          %884 = vmatprep.mubr.bf16.mxu0 0
          %885 = vmatmul.mubr.bf16.gmra.mrb[0].mxu0 %v824
          %v886 = vpop.f32.mrb[0].mxu0
          %v887 = vadd.f32 %v805, %v886
          %v888 = vpop.f32.mrb[0].mxu0
          %v889 = vpop.f32.mrb[0].mxu0
          %v890 = vadd.f32 %v805, %v889
          %v891 = vpop.f32.mrb[0].mxu0
          %892 = vmatprep.mubr.bf16.mxu0 0
          %893 = vmatmul.mubr.bf16.gmra.mrb[0].mxu0 %v827
          %v894 = vpop.f32.mrb[0].mxu0
          %v895 = vadd.f32 %v805, %v894
          %v896 = vpop.f32.mrb[0].mxu0
          %v897 = vpop.f32.mrb[0].mxu0
          %v898 = vadd.f32 %v805, %v897
          %v899 = vpop.f32.mrb[0].mxu0
          %900 = vmatprep.mubr.bf16.mxu0 0
          %901 = vmatmul.mubr.bf16.gmra.mrb[0].mxu0 %v830
          %v902 = vpop.f32.mrb[0].mxu0
          %v903 = vadd.f32 %v805, %v902
          %v904 = vpop.f32.mrb[0].mxu0
          %v905 = vpop.f32.mrb[0].mxu0
          %v906 = vadd.f32 %v805, %v905
          %v907 = vpop.f32.mrb[0].mxu0
          %908 = vmatprep.mubr.bf16.mxu0 0
          %909 = vmatmul.mubr.bf16.gmra.mrb[0].mxu0 %v833
          %v910 = vpop.f32.mrb[0].mxu0
          %v911 = vadd.f32 %v805, %v910
          %v912 = vpop.f32.mrb[0].mxu0
          %v913 = vpop.f32.mrb[0].mxu0
          %v914 = vadd.f32 %v805, %v913
          %v915 = vpop.f32.mrb[0].mxu0
          %916 = vmatprep.mubr.bf16.mxu0 0
          %917 = vmatmul.mubr.bf16.gmra.mrb[0].mxu0 %v836
          %v918 = vpop.f32.mrb[0].mxu0
          %v919 = vadd.f32 %v805, %v918
          %v920 = vpop.f32.mrb[0].mxu0
          %v921 = vpop.f32.mrb[0].mxu0
          %v922 = vadd.f32 %v805, %v921
          %v923 = vpop.f32.mrb[0].mxu0
          %924 = vmatprep.mubr.bf16.mxu0 0
          %925 = vmatmul.mubr.bf16.gmra.mrb[0].mxu0 %v839
          %v926 = vpop.f32.mrb[0].mxu0
          %v927 = vadd.f32 %v805, %v926
          %v928 = vpop.f32.mrb[0].mxu0
          %v929 = vpop.f32.mrb[0].mxu0
          %v930 = vadd.f32 %v805, %v929
          %v931 = vpop.f32.mrb[0].mxu0
          %932 = vmatprep.mubr.bf16.mxu0 0
          %933 = vmatmul.mubr.bf16.gmra.mrb[0].mxu0 %v842
          %v934 = vpop.f32.mrb[0].mxu0
          %v935 = vadd.f32 %v805, %v934
          %v936 = vpop.f32.mrb[0].mxu0
          %v937 = vpop.f32.mrb[0].mxu0
          %v938 = vadd.f32 %v805, %v937
          %v939 = vpop.f32.mrb[0].mxu0
          %940 = vdwg.mxu0
          %v941 = vmul.f32 %v879, 0.5
          %v942 = vmul.f32 %v882, 0.5
          %v943 = vmul.f32 %v887, 0.5
          %v944 = vmul.f32 %v890, 0.5
          %v945 = vmul.f32 %v895, 0.5
          %v946 = vmul.f32 %v898, 0.5
          %v947 = vmul.f32 %v903, 0.5
          %v948 = vmul.f32 %v906, 0.5
          %v949 = vmul.f32 %v911, 0.5
          %v950 = vmul.f32 %v914, 0.5
          %v951 = vmul.f32 %v919, 0.5
          %v952 = vmul.f32 %v922, 0.5
          %v953 = vmul.f32 %v927, 0.5
          %v954 = vmul.f32 %v930, 0.5
          %v955 = vmul.f32 %v935, 0.5
          %v956 = vmul.f32 %v938, 0.5
          %v957 = vmul.f32 %v879, 0.044715
          %v958 = vmul.f32 %v882, 0.044715
          %v959 = vmul.f32 %v887, 0.044715
          %v960 = vmul.f32 %v890, 0.044715
          %v961 = vmul.f32 %v895, 0.044715
          %v962 = vmul.f32 %v898, 0.044715
          %v963 = vmul.f32 %v903, 0.044715
          %v964 = vmul.f32 %v906, 0.044715
          %v965 = vmul.f32 %v911, 0.044715
          %v966 = vmul.f32 %v914, 0.044715
          %v967 = vmul.f32 %v919, 0.044715
          %v968 = vmul.f32 %v922, 0.044715
          %v969 = vmul.f32 %v927, 0.044715
          %v970 = vmul.f32 %v930, 0.044715
          %v971 = vmul.f32 %v935, 0.044715
          %v972 = vmul.f32 %v938, 0.044715
          %v973 = vmul.f32 %v957, %v879
          %v974 = vmul.f32 %v958, %v882
          %v975 = vmul.f32 %v959, %v887
          %v976 = vmul.f32 %v960, %v890
          %v977 = vmul.f32 %v961, %v895
          %v978 = vmul.f32 %v962, %v898
          %v979 = vmul.f32 %v963, %v903
          %v980 = vmul.f32 %v964, %v906
          %v981 = vmul.f32 %v965, %v911
          %v982 = vmul.f32 %v966, %v914
          %v983 = vmul.f32 %v967, %v919
          %v984 = vmul.f32 %v968, %v922
          %v985 = vmul.f32 %v969, %v927
          %v986 = vmul.f32 %v970, %v930
          %v987 = vmul.f32 %v971, %v935
          %v988 = vmul.f32 %v972, %v938
          %v989 = vmul.f32 %v973, %v879
          %v990 = vmul.f32 %v974, %v882
          %v991 = vmul.f32 %v975, %v887
          %v992 = vmul.f32 %v976, %v890
          %v993 = vmul.f32 %v977, %v895
          %v994 = vmul.f32 %v978, %v898
          %v995 = vmul.f32 %v979, %v903
          %v996 = vmul.f32 %v980, %v906
          %v997 = vmul.f32 %v981, %v911
          %v998 = vmul.f32 %v982, %v914
          %v999 = vmul.f32 %v983, %v919
          %v1000 = vmul.f32 %v984, %v922
          %v1001 = vmul.f32 %v985, %v927
          %v1002 = vmul.f32 %v986, %v930
          %v1003 = vmul.f32 %v987, %v935
          %v1004 = vmul.f32 %v988, %v938
          %v1005 = vadd.f32 %v879, %v989
          %v1006 = vadd.f32 %v882, %v990
          %v1007 = vadd.f32 %v887, %v991
          %v1008 = vadd.f32 %v890, %v992
          %v1009 = vadd.f32 %v895, %v993
          %v1010 = vadd.f32 %v898, %v994
          %v1011 = vadd.f32 %v903, %v995
          %v1012 = vadd.f32 %v906, %v996
          %v1013 = vadd.f32 %v911, %v997
          %v1014 = vadd.f32 %v914, %v998
          %v1015 = vadd.f32 %v919, %v999
          %v1016 = vadd.f32 %v922, %v1000
          %v1017 = vadd.f32 %v927, %v1001
          %v1018 = vadd.f32 %v930, %v1002
          %v1019 = vadd.f32 %v935, %v1003
          %v1020 = vadd.f32 %v938, %v1004
          %v1021 = vmul.f32 %v1005, 0.7978846
          %v1022 = vmul.f32 %v1006, 0.7978846
          %v1023 = vmul.f32 %v1007, 0.7978846
          %v1024 = vmul.f32 %v1008, 0.7978846
          %v1025 = vmul.f32 %v1009, 0.7978846
          %v1026 = vmul.f32 %v1010, 0.7978846
          %v1027 = vmul.f32 %v1011, 0.7978846
          %v1028 = vmul.f32 %v1012, 0.7978846
          %v1029 = vmul.f32 %v1013, 0.7978846
          %v1030 = vmul.f32 %v1014, 0.7978846
          %v1031 = vmul.f32 %v1015, 0.7978846
          %v1032 = vmul.f32 %v1016, 0.7978846
          %v1033 = vmul.f32 %v1017, 0.7978846
          %v1034 = vmul.f32 %v1018, 0.7978846
          %v1035 = vmul.f32 %v1019, 0.7978846
          %v1036 = vmul.f32 %v1020, 0.7978846
          %v1037 = vtanh.pop %v1021
          %v1038 = vtanh.pop %v1022
          %v1039 = vtanh.pop %v1023
          %v1040 = vtanh.pop %v1024
          %v1041 = vtanh.pop %v1025
          %v1042 = vtanh.pop %v1026
          %v1043 = vtanh.pop %v1027
          %v1044 = vtanh.pop %v1028
          %v1045 = vtanh.pop %v1029
          %v1046 = vtanh.pop %v1030
          %v1047 = vtanh.pop %v1031
          %v1048 = vtanh.pop %v1032
          %v1049 = vtanh.pop %v1033
          %v1050 = vtanh.pop %v1034
          %v1051 = vtanh.pop %v1035
          %v1052 = vtanh.pop %v1036
          %v1053 = vadd.f32 %v1037, 1.0
          %v1054 = vadd.f32 %v1038, 1.0
          %v1055 = vadd.f32 %v1039, 1.0
          %v1056 = vadd.f32 %v1040, 1.0
          %v1057 = vadd.f32 %v1041, 1.0
          %v1058 = vadd.f32 %v1042, 1.0
          %v1059 = vadd.f32 %v1043, 1.0
          %v1060 = vadd.f32 %v1044, 1.0
          %v1061 = vadd.f32 %v1045, 1.0
          %v1062 = vadd.f32 %v1046, 1.0
          %v1063 = vadd.f32 %v1047, 1.0
          %v1064 = vadd.f32 %v1048, 1.0
          %v1065 = vadd.f32 %v1049, 1.0
          %v1066 = vadd.f32 %v1050, 1.0
          %v1067 = vadd.f32 %v1051, 1.0
          %v1068 = vadd.f32 %v1052, 1.0
          %v1069 = vmul.f32 %v941, %v1053
          %v1070 = vmul.f32 %v942, %v1054
          %v1071 = vmul.f32 %v943, %v1055
          %v1072 = vmul.f32 %v944, %v1056
          %v1073 = vmul.f32 %v945, %v1057
          %v1074 = vmul.f32 %v946, %v1058
          %v1075 = vmul.f32 %v947, %v1059
          %v1076 = vmul.f32 %v948, %v1060
          %v1077 = vmul.f32 %v949, %v1061
          %v1078 = vmul.f32 %v950, %v1062
          %v1079 = vmul.f32 %v951, %v1063
          %v1080 = vmul.f32 %v952, %v1064
          %v1081 = vmul.f32 %v953, %v1065
          %v1082 = vmul.f32 %v954, %v1066
          %v1083 = vmul.f32 %v955, %v1067
          %v1084 = vmul.f32 %v956, %v1068
          %v1085 = vpack.c.bf16 %v1070, %v1069
          %v1086 = vpack.c.bf16 %v1072, %v1071
          %v1087 = vpack.c.bf16 %v1074, %v1073
          %v1088 = vpack.c.bf16 %v1076, %v1075
          %v1089 = vpack.c.bf16 %v1078, %v1077
          %v1090 = vpack.c.bf16 %v1080, %v1079
          %v1091 = vpack.c.bf16 %v1082, %v1081
          %v1092 = vpack.c.bf16 %v1084, %v1083
          %v1093 = vld [vmem:[#allocation3] sm:$0xf]
          %v1094 = vld [vmem:[#allocation3 + $0x4] sm:$0xf]
          %v1095 = vld [vmem:[#allocation3 + $0x8] sm:$0xf]
          %v1096 = vld [vmem:[#allocation3 + $0xc] sm:$0xf]
          %v1097 = vld [vmem:[#allocation3 + $0x10] sm:$0xf]
          %v1098 = vld [vmem:[#allocation3 + $0x14] sm:$0xf]
          %v1099 = vld [vmem:[#allocation3 + $0x18] sm:$0xf]
          %v1100 = vld [vmem:[#allocation3 + $0x1c] sm:$0xf]
          %v1101 = vld [vmem:[#allocation3 + $0x20] sm:$0xf]
          %v1102 = vld [vmem:[#allocation3 + $0x24] sm:$0xf]
          %v1103 = vld [vmem:[#allocation3 + $0x28] sm:$0xf]
          %v1104 = vld [vmem:[#allocation3 + $0x2c] sm:$0xf]
          %v1105 = vld [vmem:[#allocation3 + $0x30] sm:$0xf]
          %v1106 = vld [vmem:[#allocation3 + $0x34] sm:$0xf]
          %v1107 = vld [vmem:[#allocation3 + $0x38] sm:$0xf]
          %v1108 = vld [vmem:[#allocation3 + $0x3c] sm:$0xf]
          %v1109 = vld [vmem:[%s5] sm:$0x1]
          %v1111 = vlaneseq
          %v1112 = vshrl.u32 %v1111, 7
          %v1113 = vsub.s32 0, %v1112
          %v1114 = vrot.slane %v1109, %v1113
          %v1132 = vunpack.c.l.b16 %v1093
          %v1133 = vunpack.c.l.b16 %v1094
          %v1134 = vunpack.c.l.b16 %v1095
          %v1135 = vunpack.c.l.b16 %v1096
          %v1136 = vunpack.c.l.b16 %v1097
          %v1137 = vunpack.c.l.b16 %v1098
          %v1138 = vunpack.c.l.b16 %v1099
          %v1139 = vunpack.c.l.b16 %v1100
          %v1140 = vunpack.c.l.b16 %v1101
          %v1141 = vunpack.c.l.b16 %v1102
          %v1142 = vunpack.c.l.b16 %v1103
          %v1143 = vunpack.c.l.b16 %v1104
          %v1144 = vunpack.c.l.b16 %v1105
          %v1145 = vunpack.c.l.b16 %v1106
          %v1146 = vunpack.c.l.b16 %v1107
          %v1147 = vunpack.c.l.b16 %v1108
          %v1148 = vpack.c.b16 %v1133, %v1132
          %v1149 = vpack.c.b16 %v1135, %v1134
          %v1150 = vpack.c.b16 %v1137, %v1136
          %v1151 = vpack.c.b16 %v1139, %v1138
          %v1152 = vpack.c.b16 %v1141, %v1140
          %v1153 = vpack.c.b16 %v1143, %v1142
          %v1154 = vpack.c.b16 %v1145, %v1144
          %v1155 = vpack.c.b16 %v1147, %v1146
          %1164 = vmatprep.subr.bf16.mxu0 0
          %1165 = vmatpush1.bf16.msra.mxu0 %v1148
          %1166 = vmatprep.subr.bf16.mxu0 0
          %1167 = vmatpush1.bf16.msra.mxu0 %v1149
          %1168 = vmatprep.subr.bf16.mxu0 0
          %1169 = vmatpush1.bf16.msra.mxu0 %v1150
          %1170 = vmatprep.subr.bf16.mxu0 0
          %1171 = vmatpush1.bf16.msra.mxu0 %v1151
          %1172 = vmatprep.subr.bf16.mxu0 0
          %1173 = vmatpush1.bf16.msra.mxu0 %v1152
          %1174 = vmatprep.subr.bf16.mxu0 0
          %1175 = vmatpush1.bf16.msra.mxu0 %v1153
          %1176 = vmatprep.subr.bf16.mxu0 0
          %1177 = vmatpush1.bf16.msra.mxu0 %v1154
          %1178 = vmatprep.subr.bf16.mxu0 0
          %1179 = vmatpush1.bf16.msra.mxu0 %v1155
          %1180 = vmatprep.subr.bf16.mxu0 0
          %1181 = vmatpush1.bf16.msra.mxu0 0
          %1182 = vmatprep.subr.bf16.mxu0 0
          %1183 = vmatpush1.bf16.msra.mxu0 0
          %1184 = vmatprep.subr.bf16.mxu0 0
          %1185 = vmatpush1.bf16.msra.mxu0 0
          %1186 = vmatprep.subr.bf16.mxu0 0
          %1187 = vmatpush1.bf16.msra.mxu0 0
          %1188 = vmatprep.subr.bf16.mxu0 0
          %1189 = vmatpush1.bf16.msra.mxu0 0
          %1190 = vmatprep.subr.bf16.mxu0 0
          %1191 = vmatpush1.bf16.msra.mxu0 0
          %1192 = vmatprep.subr.bf16.mxu0 0
          %1193 = vmatpush1.bf16.msra.mxu0 0
          %1194 = vmatprep.subr.bf16.mxu0 0
          %1195 = vmatpush1.bf16.msra.mxu0 0
          %1196 = vmatprep.mubr.bf16.mxu0 0
          %1197 = vmatmul.mubr.bf16.gmra.mrb[0].mxu0 %v1085
          %v1198 = vpop.f32.mrb[0].mxu0
          %v1199 = vadd.f32 %v1114, %v1198
          %v1200 = vpop.f32.mrb[0].mxu0
          %v1201 = vpop.f32.mrb[0].mxu0
          %v1202 = vadd.f32 %v1114, %v1201
          %v1203 = vpop.f32.mrb[0].mxu0
          %1204 = vmatprep.mubr.bf16.mxu0 0
          %1205 = vmatmul.mubr.bf16.gmra.mrb[0].mxu0 %v1086
          %v1206 = vpop.f32.mrb[0].mxu0
          %v1207 = vadd.f32 %v1114, %v1206
          %v1208 = vpop.f32.mrb[0].mxu0
          %v1209 = vpop.f32.mrb[0].mxu0
          %v1210 = vadd.f32 %v1114, %v1209
          %v1211 = vpop.f32.mrb[0].mxu0
          %1212 = vmatprep.mubr.bf16.mxu0 0
          %1213 = vmatmul.mubr.bf16.gmra.mrb[0].mxu0 %v1087
          %v1214 = vpop.f32.mrb[0].mxu0
          %v1215 = vadd.f32 %v1114, %v1214
          %v1216 = vpop.f32.mrb[0].mxu0
          %v1217 = vpop.f32.mrb[0].mxu0
          %v1218 = vadd.f32 %v1114, %v1217
          %v1219 = vpop.f32.mrb[0].mxu0
          %1220 = vmatprep.mubr.bf16.mxu0 0
          %1221 = vmatmul.mubr.bf16.gmra.mrb[0].mxu0 %v1088
          %v1222 = vpop.f32.mrb[0].mxu0
          %v1223 = vadd.f32 %v1114, %v1222
          %v1224 = vpop.f32.mrb[0].mxu0
          %v1225 = vpop.f32.mrb[0].mxu0
          %v1226 = vadd.f32 %v1114, %v1225
          %v1227 = vpop.f32.mrb[0].mxu0
          %1228 = vmatprep.mubr.bf16.mxu0 0
          %1229 = vmatmul.mubr.bf16.gmra.mrb[0].mxu0 %v1089
          %v1230 = vpop.f32.mrb[0].mxu0
          %v1231 = vadd.f32 %v1114, %v1230
          %v1232 = vpop.f32.mrb[0].mxu0
          %v1233 = vpop.f32.mrb[0].mxu0
          %v1234 = vadd.f32 %v1114, %v1233
          %v1235 = vpop.f32.mrb[0].mxu0
          %1236 = vmatprep.mubr.bf16.mxu0 0
          %1237 = vmatmul.mubr.bf16.gmra.mrb[0].mxu0 %v1090
          %v1238 = vpop.f32.mrb[0].mxu0
          %v1239 = vadd.f32 %v1114, %v1238
          %v1240 = vpop.f32.mrb[0].mxu0
          %v1241 = vpop.f32.mrb[0].mxu0
          %v1242 = vadd.f32 %v1114, %v1241
          %v1243 = vpop.f32.mrb[0].mxu0
          %1244 = vmatprep.mubr.bf16.mxu0 0
          %1245 = vmatmul.mubr.bf16.gmra.mrb[0].mxu0 %v1091
          %v1246 = vpop.f32.mrb[0].mxu0
          %v1247 = vadd.f32 %v1114, %v1246
          %v1248 = vpop.f32.mrb[0].mxu0
          %v1249 = vpop.f32.mrb[0].mxu0
          %v1250 = vadd.f32 %v1114, %v1249
          %v1251 = vpop.f32.mrb[0].mxu0
          %1252 = vmatprep.mubr.bf16.mxu0 0
          %1253 = vmatmul.mubr.bf16.gmra.mrb[0].mxu0 %v1092
          %v1254 = vpop.f32.mrb[0].mxu0
          %v1255 = vadd.f32 %v1114, %v1254
          %v1256 = vpop.f32.mrb[0].mxu0
          %v1257 = vpop.f32.mrb[0].mxu0
          %v1258 = vadd.f32 %v1114, %v1257
          %v1259 = vpop.f32.mrb[0].mxu0
          %1260 = vdwg.mxu0
          %v1261 = vpack.c.bf16 %v1202, %v1199
          %v1262 = vpack.c.bf16 %v1210, %v1207
          %v1263 = vpack.c.bf16 %v1218, %v1215
          %v1264 = vpack.c.bf16 %v1226, %v1223
          %v1265 = vpack.c.bf16 %v1234, %v1231
          %v1266 = vpack.c.bf16 %v1242, %v1239
          %v1267 = vpack.c.bf16 %v1250, %v1247
          %v1268 = vpack.c.bf16 %v1258, %v1255
          %v1269 = vld [vmem:[%s594] sm:$0xf]
          %v1270 = vld [vmem:[%s594 + $0x4] sm:$0xf]
          %v1271 = vld [vmem:[%s594 + $0x8] sm:$0xf]
          %v1272 = vld [vmem:[%s594 + $0xc] sm:$0xf]
          %v1273 = vld [vmem:[%s594 + $0x10] sm:$0xf]
          %v1274 = vld [vmem:[%s594 + $0x14] sm:$0xf]
          %v1275 = vld [vmem:[%s594 + $0x18] sm:$0xf]
          %v1276 = vld [vmem:[%s594 + $0x1c] sm:$0xf]
          %v1277 = vld [vmem:[%s594 + $0x20] sm:$0xf]
          %v1278 = vld [vmem:[%s594 + $0x24] sm:$0xf]
          %v1279 = vld [vmem:[%s594 + $0x28] sm:$0xf]
          %v1280 = vld [vmem:[%s594 + $0x2c] sm:$0xf]
          %v1281 = vld [vmem:[%s594 + $0x30] sm:$0xf]
          %v1282 = vld [vmem:[%s594 + $0x34] sm:$0xf]
          %v1283 = vld [vmem:[%s594 + $0x38] sm:$0xf]
          %v1284 = vld [vmem:[%s594 + $0x3c] sm:$0xf]
          %v1285 = vld [vmem:[#allocation6] sm:$0xf]
          %v1286 = vld [vmem:[#allocation6 + $0x4] sm:$0xf]
          %v1287 = vld [vmem:[#allocation6 + $0x8] sm:$0xf]
          %v1288 = vld [vmem:[#allocation6 + $0xc] sm:$0xf]
          %v1289 = vld [vmem:[#allocation6 + $0x10] sm:$0xf]
          %v1290 = vld [vmem:[#allocation6 + $0x14] sm:$0xf]
          %v1291 = vld [vmem:[#allocation6 + $0x18] sm:$0xf]
          %v1292 = vld [vmem:[#allocation6 + $0x1c] sm:$0xf]
          %v1293 = vld [vmem:[#allocation6 + $0x20] sm:$0xf]
          %v1294 = vld [vmem:[#allocation6 + $0x24] sm:$0xf]
          %v1295 = vld [vmem:[#allocation6 + $0x28] sm:$0xf]
          %v1296 = vld [vmem:[#allocation6 + $0x2c] sm:$0xf]
          %v1297 = vld [vmem:[#allocation6 + $0x30] sm:$0xf]
          %v1298 = vld [vmem:[#allocation6 + $0x34] sm:$0xf]
          %v1299 = vld [vmem:[#allocation6 + $0x38] sm:$0xf]
          %v1300 = vld [vmem:[#allocation6 + $0x3c] sm:$0xf]
          %v1301 = vld [vmem:[%s7] sm:$0x1]
          %v1303 = vlaneseq
          %v1304 = vshrl.u32 %v1303, 7
          %v1305 = vsub.s32 0, %v1304
          %v1306 = vrot.slane %v1301, %v1305
          %v1324 = vunpack.c.l.b16 %v1269
          %v1325 = vunpack.c.l.b16 %v1270
          %v1326 = vunpack.c.l.b16 %v1271
          %v1327 = vunpack.c.l.b16 %v1272
          %v1328 = vunpack.c.l.b16 %v1273
          %v1329 = vunpack.c.l.b16 %v1274
          %v1330 = vunpack.c.l.b16 %v1275
          %v1331 = vunpack.c.l.b16 %v1276
          %v1332 = vunpack.c.l.b16 %v1277
          %v1333 = vunpack.c.l.b16 %v1278
          %v1334 = vunpack.c.l.b16 %v1279
          %v1335 = vunpack.c.l.b16 %v1280
          %v1336 = vunpack.c.l.b16 %v1281
          %v1337 = vunpack.c.l.b16 %v1282
          %v1338 = vunpack.c.l.b16 %v1283
          %v1339 = vunpack.c.l.b16 %v1284
          %v1340 = vpack.c.b16 %v1325, %v1324
          %v1341 = vpack.c.b16 %v1327, %v1326
          %v1342 = vpack.c.b16 %v1329, %v1328
          %v1343 = vpack.c.b16 %v1331, %v1330
          %v1344 = vpack.c.b16 %v1333, %v1332
          %v1345 = vpack.c.b16 %v1335, %v1334
          %v1346 = vpack.c.b16 %v1337, %v1336
          %v1347 = vpack.c.b16 %v1339, %v1338
          %v1372 = vunpack.c.l.b16 %v1285
          %v1373 = vunpack.c.l.b16 %v1286
          %v1374 = vunpack.c.l.b16 %v1287
          %v1375 = vunpack.c.l.b16 %v1288
          %v1376 = vunpack.c.l.b16 %v1289
          %v1377 = vunpack.c.l.b16 %v1290
          %v1378 = vunpack.c.l.b16 %v1291
          %v1379 = vunpack.c.l.b16 %v1292
          %v1380 = vunpack.c.l.b16 %v1293
          %v1381 = vunpack.c.l.b16 %v1294
          %v1382 = vunpack.c.l.b16 %v1295
          %v1383 = vunpack.c.l.b16 %v1296
          %v1384 = vunpack.c.l.b16 %v1297
          %v1385 = vunpack.c.l.b16 %v1298
          %v1386 = vunpack.c.l.b16 %v1299
          %v1387 = vunpack.c.l.b16 %v1300
          %v1388 = vpack.c.b16 %v1373, %v1372
          %v1389 = vpack.c.b16 %v1375, %v1374
          %v1390 = vpack.c.b16 %v1377, %v1376
          %v1391 = vpack.c.b16 %v1379, %v1378
          %v1392 = vpack.c.b16 %v1381, %v1380
          %v1393 = vpack.c.b16 %v1383, %v1382
          %v1394 = vpack.c.b16 %v1385, %v1384
          %v1395 = vpack.c.b16 %v1387, %v1386
          %1404 = vmatprep.subr.bf16.mxu0 0
          %1405 = vmatpush1.bf16.msra.mxu0 %v1388
          %1406 = vmatprep.subr.bf16.mxu0 0
          %1407 = vmatpush1.bf16.msra.mxu0 %v1389
          %1408 = vmatprep.subr.bf16.mxu0 0
          %1409 = vmatpush1.bf16.msra.mxu0 %v1390
          %1410 = vmatprep.subr.bf16.mxu0 0
          %1411 = vmatpush1.bf16.msra.mxu0 %v1391
          %1412 = vmatprep.subr.bf16.mxu0 0
          %1413 = vmatpush1.bf16.msra.mxu0 %v1392
          %1414 = vmatprep.subr.bf16.mxu0 0
          %1415 = vmatpush1.bf16.msra.mxu0 %v1393
          %1416 = vmatprep.subr.bf16.mxu0 0
          %1417 = vmatpush1.bf16.msra.mxu0 %v1394
          %1418 = vmatprep.subr.bf16.mxu0 0
          %1419 = vmatpush1.bf16.msra.mxu0 %v1395
          %1420 = vmatprep.subr.bf16.mxu0 0
          %1421 = vmatpush1.bf16.msra.mxu0 0
          %1422 = vmatprep.subr.bf16.mxu0 0
          %1423 = vmatpush1.bf16.msra.mxu0 0
          %1424 = vmatprep.subr.bf16.mxu0 0
          %1425 = vmatpush1.bf16.msra.mxu0 0
          %1426 = vmatprep.subr.bf16.mxu0 0
          %1427 = vmatpush1.bf16.msra.mxu0 0
          %1428 = vmatprep.subr.bf16.mxu0 0
          %1429 = vmatpush1.bf16.msra.mxu0 0
          %1430 = vmatprep.subr.bf16.mxu0 0
          %1431 = vmatpush1.bf16.msra.mxu0 0
          %1432 = vmatprep.subr.bf16.mxu0 0
          %1433 = vmatpush1.bf16.msra.mxu0 0
          %1434 = vmatprep.subr.bf16.mxu0 0
          %1435 = vmatpush1.bf16.msra.mxu0 0
          %1436 = vmatprep.mubr.bf16.mxu0 0
          %1437 = vmatmul.mubr.bf16.gmra.mrb[0].mxu0 %v1340
          %v1438 = vpop.f32.mrb[0].mxu0
          %v1439 = vadd.f32 %v1306, %v1438
          %v1440 = vpop.f32.mrb[0].mxu0
          %v1441 = vpop.f32.mrb[0].mxu0
          %v1442 = vadd.f32 %v1306, %v1441
          %v1443 = vpop.f32.mrb[0].mxu0
          %1444 = vmatprep.mubr.bf16.mxu0 0
          %1445 = vmatmul.mubr.bf16.gmra.mrb[0].mxu0 %v1341
          %v1446 = vpop.f32.mrb[0].mxu0
          %v1447 = vadd.f32 %v1306, %v1446
          %v1448 = vpop.f32.mrb[0].mxu0
          %v1449 = vpop.f32.mrb[0].mxu0
          %v1450 = vadd.f32 %v1306, %v1449
          %v1451 = vpop.f32.mrb[0].mxu0
          %1452 = vmatprep.mubr.bf16.mxu0 0
          %1453 = vmatmul.mubr.bf16.gmra.mrb[0].mxu0 %v1342
          %v1454 = vpop.f32.mrb[0].mxu0
          %v1455 = vadd.f32 %v1306, %v1454
          %v1456 = vpop.f32.mrb[0].mxu0
          %v1457 = vpop.f32.mrb[0].mxu0
          %v1458 = vadd.f32 %v1306, %v1457
          %v1459 = vpop.f32.mrb[0].mxu0
          %1460 = vmatprep.mubr.bf16.mxu0 0
          %1461 = vmatmul.mubr.bf16.gmra.mrb[0].mxu0 %v1343
          %v1462 = vpop.f32.mrb[0].mxu0
          %v1463 = vadd.f32 %v1306, %v1462
          %v1464 = vpop.f32.mrb[0].mxu0
          %v1465 = vpop.f32.mrb[0].mxu0
          %v1466 = vadd.f32 %v1306, %v1465
          %v1467 = vpop.f32.mrb[0].mxu0
          %1468 = vmatprep.mubr.bf16.mxu0 0
          %1469 = vmatmul.mubr.bf16.gmra.mrb[0].mxu0 %v1344
          %v1470 = vpop.f32.mrb[0].mxu0
          %v1471 = vadd.f32 %v1306, %v1470
          %v1472 = vpop.f32.mrb[0].mxu0
          %v1473 = vpop.f32.mrb[0].mxu0
          %v1474 = vadd.f32 %v1306, %v1473
          %v1475 = vpop.f32.mrb[0].mxu0
          %1476 = vmatprep.mubr.bf16.mxu0 0
          %1477 = vmatmul.mubr.bf16.gmra.mrb[0].mxu0 %v1345
          %v1478 = vpop.f32.mrb[0].mxu0
          %v1479 = vadd.f32 %v1306, %v1478
          %v1480 = vpop.f32.mrb[0].mxu0
          %v1481 = vpop.f32.mrb[0].mxu0
          %v1482 = vadd.f32 %v1306, %v1481
          %v1483 = vpop.f32.mrb[0].mxu0
          %1484 = vmatprep.mubr.bf16.mxu0 0
          %1485 = vmatmul.mubr.bf16.gmra.mrb[0].mxu0 %v1346
          %v1486 = vpop.f32.mrb[0].mxu0
          %v1487 = vadd.f32 %v1306, %v1486
          %v1488 = vpop.f32.mrb[0].mxu0
          %v1489 = vpop.f32.mrb[0].mxu0
          %v1490 = vadd.f32 %v1306, %v1489
          %v1491 = vpop.f32.mrb[0].mxu0
          %1492 = vmatprep.mubr.bf16.mxu0 0
          %1493 = vmatmul.mubr.bf16.gmra.mrb[0].mxu0 %v1347
          %v1494 = vpop.f32.mrb[0].mxu0
          %v1495 = vadd.f32 %v1306, %v1494
          %v1496 = vpop.f32.mrb[0].mxu0
          %v1497 = vpop.f32.mrb[0].mxu0
          %v1498 = vadd.f32 %v1306, %v1497
          %v1499 = vpop.f32.mrb[0].mxu0
          %1500 = vdwg.mxu0
          %v1501 = vmul.f32 %v1439, 0.5
          %v1502 = vmul.f32 %v1442, 0.5
          %v1503 = vmul.f32 %v1447, 0.5
          %v1504 = vmul.f32 %v1450, 0.5
          %v1505 = vmul.f32 %v1455, 0.5
          %v1506 = vmul.f32 %v1458, 0.5
          %v1507 = vmul.f32 %v1463, 0.5
          %v1508 = vmul.f32 %v1466, 0.5
          %v1509 = vmul.f32 %v1471, 0.5
          %v1510 = vmul.f32 %v1474, 0.5
          %v1511 = vmul.f32 %v1479, 0.5
          %v1512 = vmul.f32 %v1482, 0.5
          %v1513 = vmul.f32 %v1487, 0.5
          %v1514 = vmul.f32 %v1490, 0.5
          %v1515 = vmul.f32 %v1495, 0.5
          %v1516 = vmul.f32 %v1498, 0.5
          %v1517 = vmul.f32 %v1439, 0.044715
          %v1518 = vmul.f32 %v1442, 0.044715
          %v1519 = vmul.f32 %v1447, 0.044715
          %v1520 = vmul.f32 %v1450, 0.044715
          %v1521 = vmul.f32 %v1455, 0.044715
          %v1522 = vmul.f32 %v1458, 0.044715
          %v1523 = vmul.f32 %v1463, 0.044715
          %v1524 = vmul.f32 %v1466, 0.044715
          %v1525 = vmul.f32 %v1471, 0.044715
          %v1526 = vmul.f32 %v1474, 0.044715
          %v1527 = vmul.f32 %v1479, 0.044715
          %v1528 = vmul.f32 %v1482, 0.044715
          %v1529 = vmul.f32 %v1487, 0.044715
          %v1530 = vmul.f32 %v1490, 0.044715
          %v1531 = vmul.f32 %v1495, 0.044715
          %v1532 = vmul.f32 %v1498, 0.044715
          %v1533 = vmul.f32 %v1517, %v1439
          %v1534 = vmul.f32 %v1518, %v1442
          %v1535 = vmul.f32 %v1519, %v1447
          %v1536 = vmul.f32 %v1520, %v1450
          %v1537 = vmul.f32 %v1521, %v1455
          %v1538 = vmul.f32 %v1522, %v1458
          %v1539 = vmul.f32 %v1523, %v1463
          %v1540 = vmul.f32 %v1524, %v1466
          %v1541 = vmul.f32 %v1525, %v1471
          %v1542 = vmul.f32 %v1526, %v1474
          %v1543 = vmul.f32 %v1527, %v1479
          %v1544 = vmul.f32 %v1528, %v1482
          %v1545 = vmul.f32 %v1529, %v1487
          %v1546 = vmul.f32 %v1530, %v1490
          %v1547 = vmul.f32 %v1531, %v1495
          %v1548 = vmul.f32 %v1532, %v1498
          %v1549 = vmul.f32 %v1533, %v1439
          %v1550 = vmul.f32 %v1534, %v1442
          %v1551 = vmul.f32 %v1535, %v1447
          %v1552 = vmul.f32 %v1536, %v1450
          %v1553 = vmul.f32 %v1537, %v1455
          %v1554 = vmul.f32 %v1538, %v1458
          %v1555 = vmul.f32 %v1539, %v1463
          %v1556 = vmul.f32 %v1540, %v1466
          %v1557 = vmul.f32 %v1541, %v1471
          %v1558 = vmul.f32 %v1542, %v1474
          %v1559 = vmul.f32 %v1543, %v1479
          %v1560 = vmul.f32 %v1544, %v1482
          %v1561 = vmul.f32 %v1545, %v1487
          %v1562 = vmul.f32 %v1546, %v1490
          %v1563 = vmul.f32 %v1547, %v1495
          %v1564 = vmul.f32 %v1548, %v1498
          %v1565 = vadd.f32 %v1439, %v1549
          %v1566 = vadd.f32 %v1442, %v1550
          %v1567 = vadd.f32 %v1447, %v1551
          %v1568 = vadd.f32 %v1450, %v1552
          %v1569 = vadd.f32 %v1455, %v1553
          %v1570 = vadd.f32 %v1458, %v1554
          %v1571 = vadd.f32 %v1463, %v1555
          %v1572 = vadd.f32 %v1466, %v1556
          %v1573 = vadd.f32 %v1471, %v1557
          %v1574 = vadd.f32 %v1474, %v1558
          %v1575 = vadd.f32 %v1479, %v1559
          %v1576 = vadd.f32 %v1482, %v1560
          %v1577 = vadd.f32 %v1487, %v1561
          %v1578 = vadd.f32 %v1490, %v1562
          %v1579 = vadd.f32 %v1495, %v1563
          %v1580 = vadd.f32 %v1498, %v1564
          %v1581 = vmul.f32 %v1565, 0.7978846
          %v1582 = vmul.f32 %v1566, 0.7978846
          %v1583 = vmul.f32 %v1567, 0.7978846
          %v1584 = vmul.f32 %v1568, 0.7978846
          %v1585 = vmul.f32 %v1569, 0.7978846
          %v1586 = vmul.f32 %v1570, 0.7978846
          %v1587 = vmul.f32 %v1571, 0.7978846
          %v1588 = vmul.f32 %v1572, 0.7978846
          %v1589 = vmul.f32 %v1573, 0.7978846
          %v1590 = vmul.f32 %v1574, 0.7978846
          %v1591 = vmul.f32 %v1575, 0.7978846
          %v1592 = vmul.f32 %v1576, 0.7978846
          %v1593 = vmul.f32 %v1577, 0.7978846
          %v1594 = vmul.f32 %v1578, 0.7978846
          %v1595 = vmul.f32 %v1579, 0.7978846
          %v1596 = vmul.f32 %v1580, 0.7978846
          %v1597 = vtanh.pop %v1581
          %v1598 = vtanh.pop %v1582
          %v1599 = vtanh.pop %v1583
          %v1600 = vtanh.pop %v1584
          %v1601 = vtanh.pop %v1585
          %v1602 = vtanh.pop %v1586
          %v1603 = vtanh.pop %v1587
          %v1604 = vtanh.pop %v1588
          %v1605 = vtanh.pop %v1589
          %v1606 = vtanh.pop %v1590
          %v1607 = vtanh.pop %v1591
          %v1608 = vtanh.pop %v1592
          %v1609 = vtanh.pop %v1593
          %v1610 = vtanh.pop %v1594
          %v1611 = vtanh.pop %v1595
          %v1612 = vtanh.pop %v1596
          %v1613 = vadd.f32 %v1597, 1.0
          %v1614 = vadd.f32 %v1598, 1.0
          %v1615 = vadd.f32 %v1599, 1.0
          %v1616 = vadd.f32 %v1600, 1.0
          %v1617 = vadd.f32 %v1601, 1.0
          %v1618 = vadd.f32 %v1602, 1.0
          %v1619 = vadd.f32 %v1603, 1.0
          %v1620 = vadd.f32 %v1604, 1.0
          %v1621 = vadd.f32 %v1605, 1.0
          %v1622 = vadd.f32 %v1606, 1.0
          %v1623 = vadd.f32 %v1607, 1.0
          %v1624 = vadd.f32 %v1608, 1.0
          %v1625 = vadd.f32 %v1609, 1.0
          %v1626 = vadd.f32 %v1610, 1.0
          %v1627 = vadd.f32 %v1611, 1.0
          %v1628 = vadd.f32 %v1612, 1.0
          %v1629 = vmul.f32 %v1501, %v1613
          %v1630 = vmul.f32 %v1502, %v1614
          %v1631 = vmul.f32 %v1503, %v1615
          %v1632 = vmul.f32 %v1504, %v1616
          %v1633 = vmul.f32 %v1505, %v1617
          %v1634 = vmul.f32 %v1506, %v1618
          %v1635 = vmul.f32 %v1507, %v1619
          %v1636 = vmul.f32 %v1508, %v1620
          %v1637 = vmul.f32 %v1509, %v1621
          %v1638 = vmul.f32 %v1510, %v1622
          %v1639 = vmul.f32 %v1511, %v1623
          %v1640 = vmul.f32 %v1512, %v1624
          %v1641 = vmul.f32 %v1513, %v1625
          %v1642 = vmul.f32 %v1514, %v1626
          %v1643 = vmul.f32 %v1515, %v1627
          %v1644 = vmul.f32 %v1516, %v1628
          %v1645 = vpack.c.bf16 %v1630, %v1629
          %v1646 = vpack.c.bf16 %v1632, %v1631
          %v1647 = vpack.c.bf16 %v1634, %v1633
          %v1648 = vpack.c.bf16 %v1636, %v1635
          %v1649 = vpack.c.bf16 %v1638, %v1637
          %v1650 = vpack.c.bf16 %v1640, %v1639
          %v1651 = vpack.c.bf16 %v1642, %v1641
          %v1652 = vpack.c.bf16 %v1644, %v1643
          %v1653 = vld [vmem:[#allocation8] sm:$0xf]
          %v1654 = vld [vmem:[#allocation8 + $0x4] sm:$0xf]
          %v1655 = vld [vmem:[#allocation8 + $0x8] sm:$0xf]
          %v1656 = vld [vmem:[#allocation8 + $0xc] sm:$0xf]
          %v1657 = vld [vmem:[#allocation8 + $0x10] sm:$0xf]
          %v1658 = vld [vmem:[#allocation8 + $0x14] sm:$0xf]
          %v1659 = vld [vmem:[#allocation8 + $0x18] sm:$0xf]
          %v1660 = vld [vmem:[#allocation8 + $0x1c] sm:$0xf]
          %v1661 = vld [vmem:[#allocation8 + $0x20] sm:$0xf]
          %v1662 = vld [vmem:[#allocation8 + $0x24] sm:$0xf]
          %v1663 = vld [vmem:[#allocation8 + $0x28] sm:$0xf]
          %v1664 = vld [vmem:[#allocation8 + $0x2c] sm:$0xf]
          %v1665 = vld [vmem:[#allocation8 + $0x30] sm:$0xf]
          %v1666 = vld [vmem:[#allocation8 + $0x34] sm:$0xf]
          %v1667 = vld [vmem:[#allocation8 + $0x38] sm:$0xf]
          %v1668 = vld [vmem:[#allocation8 + $0x3c] sm:$0xf]
          %v1669 = vld [vmem:[%s9] sm:$0x1]
          %v1671 = vlaneseq
          %v1672 = vshrl.u32 %v1671, 7
          %v1673 = vsub.s32 0, %v1672
          %v1674 = vrot.slane %v1669, %v1673
          %v1692 = vunpack.c.l.b16 %v1653
          %v1693 = vunpack.c.l.b16 %v1654
          %v1694 = vunpack.c.l.b16 %v1655
          %v1695 = vunpack.c.l.b16 %v1656
          %v1696 = vunpack.c.l.b16 %v1657
          %v1697 = vunpack.c.l.b16 %v1658
          %v1698 = vunpack.c.l.b16 %v1659
          %v1699 = vunpack.c.l.b16 %v1660
          %v1700 = vunpack.c.l.b16 %v1661
          %v1701 = vunpack.c.l.b16 %v1662
          %v1702 = vunpack.c.l.b16 %v1663
          %v1703 = vunpack.c.l.b16 %v1664
          %v1704 = vunpack.c.l.b16 %v1665
          %v1705 = vunpack.c.l.b16 %v1666
          %v1706 = vunpack.c.l.b16 %v1667
          %v1707 = vunpack.c.l.b16 %v1668
          %v1708 = vpack.c.b16 %v1693, %v1692
          %v1709 = vpack.c.b16 %v1695, %v1694
          %v1710 = vpack.c.b16 %v1697, %v1696
          %v1711 = vpack.c.b16 %v1699, %v1698
          %v1712 = vpack.c.b16 %v1701, %v1700
          %v1713 = vpack.c.b16 %v1703, %v1702
          %v1714 = vpack.c.b16 %v1705, %v1704
          %v1715 = vpack.c.b16 %v1707, %v1706
          %1724 = vmatprep.subr.bf16.mxu0 0
          %1725 = vmatpush1.bf16.msra.mxu0 %v1708
          %1726 = vmatprep.subr.bf16.mxu0 0
          %1727 = vmatpush1.bf16.msra.mxu0 %v1709
          %1728 = vmatprep.subr.bf16.mxu0 0
          %1729 = vmatpush1.bf16.msra.mxu0 %v1710
          %1730 = vmatprep.subr.bf16.mxu0 0
          %1731 = vmatpush1.bf16.msra.mxu0 %v1711
          %1732 = vmatprep.subr.bf16.mxu0 0
          %1733 = vmatpush1.bf16.msra.mxu0 %v1712
          %1734 = vmatprep.subr.bf16.mxu0 0
          %1735 = vmatpush1.bf16.msra.mxu0 %v1713
          %1736 = vmatprep.subr.bf16.mxu0 0
          %1737 = vmatpush1.bf16.msra.mxu0 %v1714
          %1738 = vmatprep.subr.bf16.mxu0 0
          %1739 = vmatpush1.bf16.msra.mxu0 %v1715
          %1740 = vmatprep.subr.bf16.mxu0 0
          %1741 = vmatpush1.bf16.msra.mxu0 0
          %1742 = vmatprep.subr.bf16.mxu0 0
          %1743 = vmatpush1.bf16.msra.mxu0 0
          %1744 = vmatprep.subr.bf16.mxu0 0
          %1745 = vmatpush1.bf16.msra.mxu0 0
          %1746 = vmatprep.subr.bf16.mxu0 0
          %1747 = vmatpush1.bf16.msra.mxu0 0
          %1748 = vmatprep.subr.bf16.mxu0 0
          %1749 = vmatpush1.bf16.msra.mxu0 0
          %1750 = vmatprep.subr.bf16.mxu0 0
          %1751 = vmatpush1.bf16.msra.mxu0 0
          %1752 = vmatprep.subr.bf16.mxu0 0
          %1753 = vmatpush1.bf16.msra.mxu0 0
          %1754 = vmatprep.subr.bf16.mxu0 0
          %1755 = vmatpush1.bf16.msra.mxu0 0
          %1756 = vmatprep.mubr.bf16.mxu0 0
          %1757 = vmatmul.mubr.bf16.gmra.mrb[0].mxu0 %v1645
          %v1758 = vpop.f32.mrb[0].mxu0
          %v1759 = vadd.f32 %v1674, %v1758
          %v1760 = vpop.f32.mrb[0].mxu0
          %v1761 = vpop.f32.mrb[0].mxu0
          %v1762 = vadd.f32 %v1674, %v1761
          %v1763 = vpop.f32.mrb[0].mxu0
          %1764 = vmatprep.mubr.bf16.mxu0 0
          %1765 = vmatmul.mubr.bf16.gmra.mrb[0].mxu0 %v1646
          %v1766 = vpop.f32.mrb[0].mxu0
          %v1767 = vadd.f32 %v1674, %v1766
          %v1768 = vpop.f32.mrb[0].mxu0
          %v1769 = vpop.f32.mrb[0].mxu0
          %v1770 = vadd.f32 %v1674, %v1769
          %v1771 = vpop.f32.mrb[0].mxu0
          %1772 = vmatprep.mubr.bf16.mxu0 0
          %1773 = vmatmul.mubr.bf16.gmra.mrb[0].mxu0 %v1647
          %v1774 = vpop.f32.mrb[0].mxu0
          %v1775 = vadd.f32 %v1674, %v1774
          %v1776 = vpop.f32.mrb[0].mxu0
          %v1777 = vpop.f32.mrb[0].mxu0
          %v1778 = vadd.f32 %v1674, %v1777
          %v1779 = vpop.f32.mrb[0].mxu0
          %1780 = vmatprep.mubr.bf16.mxu0 0
          %1781 = vmatmul.mubr.bf16.gmra.mrb[0].mxu0 %v1648
          %v1782 = vpop.f32.mrb[0].mxu0
          %v1783 = vadd.f32 %v1674, %v1782
          %v1784 = vpop.f32.mrb[0].mxu0
          %v1785 = vpop.f32.mrb[0].mxu0
          %v1786 = vadd.f32 %v1674, %v1785
          %v1787 = vpop.f32.mrb[0].mxu0
          %1788 = vmatprep.mubr.bf16.mxu0 0
          %1789 = vmatmul.mubr.bf16.gmra.mrb[0].mxu0 %v1649
          %v1790 = vpop.f32.mrb[0].mxu0
          %v1791 = vadd.f32 %v1674, %v1790
          %v1792 = vpop.f32.mrb[0].mxu0
          %v1793 = vpop.f32.mrb[0].mxu0
          %v1794 = vadd.f32 %v1674, %v1793
          %v1795 = vpop.f32.mrb[0].mxu0
          %1796 = vmatprep.mubr.bf16.mxu0 0
          %1797 = vmatmul.mubr.bf16.gmra.mrb[0].mxu0 %v1650
          %v1798 = vpop.f32.mrb[0].mxu0
          %v1799 = vadd.f32 %v1674, %v1798
          %v1800 = vpop.f32.mrb[0].mxu0
          %v1801 = vpop.f32.mrb[0].mxu0
          %v1802 = vadd.f32 %v1674, %v1801
          %v1803 = vpop.f32.mrb[0].mxu0
          %1804 = vmatprep.mubr.bf16.mxu0 0
          %1805 = vmatmul.mubr.bf16.gmra.mrb[0].mxu0 %v1651
          %v1806 = vpop.f32.mrb[0].mxu0
          %v1807 = vadd.f32 %v1674, %v1806
          %v1808 = vpop.f32.mrb[0].mxu0
          %v1809 = vpop.f32.mrb[0].mxu0
          %v1810 = vadd.f32 %v1674, %v1809
          %v1811 = vpop.f32.mrb[0].mxu0
          %1812 = vmatprep.mubr.bf16.mxu0 0
          %1813 = vmatmul.mubr.bf16.gmra.mrb[0].mxu0 %v1652
          %v1814 = vpop.f32.mrb[0].mxu0
          %v1815 = vadd.f32 %v1674, %v1814
          %v1816 = vpop.f32.mrb[0].mxu0
          %v1817 = vpop.f32.mrb[0].mxu0
          %v1818 = vadd.f32 %v1674, %v1817
          %v1819 = vpop.f32.mrb[0].mxu0
          %1820 = vdwg.mxu0
          %v1821 = vunpack.c.l.bf16 %v1261
          %v1822 = vunpack.c.h.bf16 %v1261
          %v1823 = vunpack.c.l.bf16 %v1262
          %v1824 = vunpack.c.h.bf16 %v1262
          %v1825 = vunpack.c.l.bf16 %v1263
          %v1826 = vunpack.c.h.bf16 %v1263
          %v1827 = vunpack.c.l.bf16 %v1264
          %v1828 = vunpack.c.h.bf16 %v1264
          %v1829 = vunpack.c.l.bf16 %v1265
          %v1830 = vunpack.c.h.bf16 %v1265
          %v1831 = vunpack.c.l.bf16 %v1266
          %v1832 = vunpack.c.h.bf16 %v1266
          %v1833 = vunpack.c.l.bf16 %v1267
          %v1834 = vunpack.c.h.bf16 %v1267
          %v1835 = vunpack.c.l.bf16 %v1268
          %v1836 = vunpack.c.h.bf16 %v1268
          %v1837 = vadd.f32 %v1759, %v1821
          %v1838 = vadd.f32 %v1762, %v1822
          %v1839 = vadd.f32 %v1767, %v1823
          %v1840 = vadd.f32 %v1770, %v1824
          %v1841 = vadd.f32 %v1775, %v1825
          %v1842 = vadd.f32 %v1778, %v1826
          %v1843 = vadd.f32 %v1783, %v1827
          %v1844 = vadd.f32 %v1786, %v1828
          %v1845 = vadd.f32 %v1791, %v1829
          %v1846 = vadd.f32 %v1794, %v1830
          %v1847 = vadd.f32 %v1799, %v1831
          %v1848 = vadd.f32 %v1802, %v1832
          %v1849 = vadd.f32 %v1807, %v1833
          %v1850 = vadd.f32 %v1810, %v1834
          %v1851 = vadd.f32 %v1815, %v1835
          %v1852 = vadd.f32 %v1818, %v1836
          %v1853 = vmul.f32 %v1837, 0.5
          %v1854 = vmul.f32 %v1838, 0.5
          %v1855 = vmul.f32 %v1839, 0.5
          %v1856 = vmul.f32 %v1840, 0.5
          %v1857 = vmul.f32 %v1841, 0.5
          %v1858 = vmul.f32 %v1842, 0.5
          %v1859 = vmul.f32 %v1843, 0.5
          %v1860 = vmul.f32 %v1844, 0.5
          %v1861 = vmul.f32 %v1845, 0.5
          %v1862 = vmul.f32 %v1846, 0.5
          %v1863 = vmul.f32 %v1847, 0.5
          %v1864 = vmul.f32 %v1848, 0.5
          %v1865 = vmul.f32 %v1849, 0.5
          %v1866 = vmul.f32 %v1850, 0.5
          %v1867 = vmul.f32 %v1851, 0.5
          %v1868 = vmul.f32 %v1852, 0.5
          %v1869 = vmul.f32 %v1837, 0.044715
          %v1870 = vmul.f32 %v1838, 0.044715
          %v1871 = vmul.f32 %v1839, 0.044715
          %v1872 = vmul.f32 %v1840, 0.044715
          %v1873 = vmul.f32 %v1841, 0.044715
          %v1874 = vmul.f32 %v1842, 0.044715
          %v1875 = vmul.f32 %v1843, 0.044715
          %v1876 = vmul.f32 %v1844, 0.044715
          %v1877 = vmul.f32 %v1845, 0.044715
          %v1878 = vmul.f32 %v1846, 0.044715
          %v1879 = vmul.f32 %v1847, 0.044715
          %v1880 = vmul.f32 %v1848, 0.044715
          %v1881 = vmul.f32 %v1849, 0.044715
          %v1882 = vmul.f32 %v1850, 0.044715
          %v1883 = vmul.f32 %v1851, 0.044715
          %v1884 = vmul.f32 %v1852, 0.044715
          %v1885 = vmul.f32 %v1869, %v1837
          %v1886 = vmul.f32 %v1870, %v1838
          %v1887 = vmul.f32 %v1871, %v1839
          %v1888 = vmul.f32 %v1872, %v1840
          %v1889 = vmul.f32 %v1873, %v1841
          %v1890 = vmul.f32 %v1874, %v1842
          %v1891 = vmul.f32 %v1875, %v1843
          %v1892 = vmul.f32 %v1876, %v1844
          %v1893 = vmul.f32 %v1877, %v1845
          %v1894 = vmul.f32 %v1878, %v1846
          %v1895 = vmul.f32 %v1879, %v1847
          %v1896 = vmul.f32 %v1880, %v1848
          %v1897 = vmul.f32 %v1881, %v1849
          %v1898 = vmul.f32 %v1882, %v1850
          %v1899 = vmul.f32 %v1883, %v1851
          %v1900 = vmul.f32 %v1884, %v1852
          %v1901 = vmul.f32 %v1885, %v1837
          %v1902 = vmul.f32 %v1886, %v1838
          %v1903 = vmul.f32 %v1887, %v1839
          %v1904 = vmul.f32 %v1888, %v1840
          %v1905 = vmul.f32 %v1889, %v1841
          %v1906 = vmul.f32 %v1890, %v1842
          %v1907 = vmul.f32 %v1891, %v1843
          %v1908 = vmul.f32 %v1892, %v1844
          %v1909 = vmul.f32 %v1893, %v1845
          %v1910 = vmul.f32 %v1894, %v1846
          %v1911 = vmul.f32 %v1895, %v1847
          %v1912 = vmul.f32 %v1896, %v1848
          %v1913 = vmul.f32 %v1897, %v1849
          %v1914 = vmul.f32 %v1898, %v1850
          %v1915 = vmul.f32 %v1899, %v1851
          %v1916 = vmul.f32 %v1900, %v1852
          %v1917 = vadd.f32 %v1837, %v1901
          %v1918 = vadd.f32 %v1838, %v1902
          %v1919 = vadd.f32 %v1839, %v1903
          %v1920 = vadd.f32 %v1840, %v1904
          %v1921 = vadd.f32 %v1841, %v1905
          %v1922 = vadd.f32 %v1842, %v1906
          %v1923 = vadd.f32 %v1843, %v1907
          %v1924 = vadd.f32 %v1844, %v1908
          %v1925 = vadd.f32 %v1845, %v1909
          %v1926 = vadd.f32 %v1846, %v1910
          %v1927 = vadd.f32 %v1847, %v1911
          %v1928 = vadd.f32 %v1848, %v1912
          %v1929 = vadd.f32 %v1849, %v1913
          %v1930 = vadd.f32 %v1850, %v1914
          %v1931 = vadd.f32 %v1851, %v1915
          %v1932 = vadd.f32 %v1852, %v1916
          %v1933 = vmul.f32 %v1917, 0.7978846
          %v1934 = vmul.f32 %v1918, 0.7978846
          %v1935 = vmul.f32 %v1919, 0.7978846
          %v1936 = vmul.f32 %v1920, 0.7978846
          %v1937 = vmul.f32 %v1921, 0.7978846
          %v1938 = vmul.f32 %v1922, 0.7978846
          %v1939 = vmul.f32 %v1923, 0.7978846
          %v1940 = vmul.f32 %v1924, 0.7978846
          %v1941 = vmul.f32 %v1925, 0.7978846
          %v1942 = vmul.f32 %v1926, 0.7978846
          %v1943 = vmul.f32 %v1927, 0.7978846
          %v1944 = vmul.f32 %v1928, 0.7978846
          %v1945 = vmul.f32 %v1929, 0.7978846
          %v1946 = vmul.f32 %v1930, 0.7978846
          %v1947 = vmul.f32 %v1931, 0.7978846
          %v1948 = vmul.f32 %v1932, 0.7978846
          %v1949 = vtanh.pop %v1933
          %v1950 = vtanh.pop %v1934
          %v1951 = vtanh.pop %v1935
          %v1952 = vtanh.pop %v1936
          %v1953 = vtanh.pop %v1937
          %v1954 = vtanh.pop %v1938
          %v1955 = vtanh.pop %v1939
          %v1956 = vtanh.pop %v1940
          %v1957 = vtanh.pop %v1941
          %v1958 = vtanh.pop %v1942
          %v1959 = vtanh.pop %v1943
          %v1960 = vtanh.pop %v1944
          %v1961 = vtanh.pop %v1945
          %v1962 = vtanh.pop %v1946
          %v1963 = vtanh.pop %v1947
          %v1964 = vtanh.pop %v1948
          %v1965 = vadd.f32 %v1949, 1.0
          %v1966 = vadd.f32 %v1950, 1.0
          %v1967 = vadd.f32 %v1951, 1.0
          %v1968 = vadd.f32 %v1952, 1.0
          %v1969 = vadd.f32 %v1953, 1.0
          %v1970 = vadd.f32 %v1954, 1.0
          %v1971 = vadd.f32 %v1955, 1.0
          %v1972 = vadd.f32 %v1956, 1.0
          %v1973 = vadd.f32 %v1957, 1.0
          %v1974 = vadd.f32 %v1958, 1.0
          %v1975 = vadd.f32 %v1959, 1.0
          %v1976 = vadd.f32 %v1960, 1.0
          %v1977 = vadd.f32 %v1961, 1.0
          %v1978 = vadd.f32 %v1962, 1.0
          %v1979 = vadd.f32 %v1963, 1.0
          %v1980 = vadd.f32 %v1964, 1.0
          %v1981 = vmul.f32 %v1853, %v1965
          %v1982 = vmul.f32 %v1854, %v1966
          %v1983 = vmul.f32 %v1855, %v1967
          %v1984 = vmul.f32 %v1856, %v1968
          %v1985 = vmul.f32 %v1857, %v1969
          %v1986 = vmul.f32 %v1858, %v1970
          %v1987 = vmul.f32 %v1859, %v1971
          %v1988 = vmul.f32 %v1860, %v1972
          %v1989 = vmul.f32 %v1861, %v1973
          %v1990 = vmul.f32 %v1862, %v1974
          %v1991 = vmul.f32 %v1863, %v1975
          %v1992 = vmul.f32 %v1864, %v1976
          %v1993 = vmul.f32 %v1865, %v1977
          %v1994 = vmul.f32 %v1866, %v1978
          %v1995 = vmul.f32 %v1867, %v1979
          %v1996 = vmul.f32 %v1868, %v1980
          %v1997 = vpack.c.bf16 %v1982, %v1981
          %v1998 = vpack.c.bf16 %v1984, %v1983
          %v1999 = vpack.c.bf16 %v1986, %v1985
          %v2000 = vpack.c.bf16 %v1988, %v1987
          %v2001 = vpack.c.bf16 %v1990, %v1989
          %v2002 = vpack.c.bf16 %v1992, %v1991
          %v2003 = vpack.c.bf16 %v1994, %v1993
          %v2004 = vpack.c.bf16 %v1996, %v1995
          %v2005 = vld [vmem:[#allocation9] sm:$0xf]
          %v2006 = vld [vmem:[#allocation9 + $0x4] sm:$0xf]
          %v2007 = vld [vmem:[#allocation9 + $0x8] sm:$0xf]
          %v2008 = vld [vmem:[#allocation9 + $0xc] sm:$0xf]
          %v2009 = vld [vmem:[#allocation9 + $0x10] sm:$0xf]
          %v2010 = vld [vmem:[#allocation9 + $0x14] sm:$0xf]
          %v2011 = vld [vmem:[#allocation9 + $0x18] sm:$0xf]
          %v2012 = vld [vmem:[#allocation9 + $0x1c] sm:$0xf]
          %v2013 = vld [vmem:[#allocation9 + $0x20] sm:$0xf]
          %v2014 = vld [vmem:[#allocation9 + $0x24] sm:$0xf]
          %v2015 = vld [vmem:[#allocation9 + $0x28] sm:$0xf]
          %v2016 = vld [vmem:[#allocation9 + $0x2c] sm:$0xf]
          %v2017 = vld [vmem:[#allocation9 + $0x30] sm:$0xf]
          %v2018 = vld [vmem:[#allocation9 + $0x34] sm:$0xf]
          %v2019 = vld [vmem:[#allocation9 + $0x38] sm:$0xf]
          %v2020 = vld [vmem:[#allocation9 + $0x3c] sm:$0xf]
          %v2021 = vld [vmem:[%s11] sm:$0x1]
          %v2023 = vlaneseq
          %v2024 = vshrl.u32 %v2023, 7
          %v2025 = vsub.s32 0, %v2024
          %v2026 = vrot.slane %v2021, %v2025
          %v2044 = vunpack.c.l.b16 %v2005
          %v2045 = vunpack.c.l.b16 %v2006
          %v2046 = vunpack.c.l.b16 %v2007
          %v2047 = vunpack.c.l.b16 %v2008
          %v2048 = vunpack.c.l.b16 %v2009
          %v2049 = vunpack.c.l.b16 %v2010
          %v2050 = vunpack.c.l.b16 %v2011
          %v2051 = vunpack.c.l.b16 %v2012
          %v2052 = vunpack.c.l.b16 %v2013
          %v2053 = vunpack.c.l.b16 %v2014
          %v2054 = vunpack.c.l.b16 %v2015
          %v2055 = vunpack.c.l.b16 %v2016
          %v2056 = vunpack.c.l.b16 %v2017
          %v2057 = vunpack.c.l.b16 %v2018
          %v2058 = vunpack.c.l.b16 %v2019
          %v2059 = vunpack.c.l.b16 %v2020
          %v2060 = vpack.c.b16 %v2045, %v2044
          %v2061 = vpack.c.b16 %v2047, %v2046
          %v2062 = vpack.c.b16 %v2049, %v2048
          %v2063 = vpack.c.b16 %v2051, %v2050
          %v2064 = vpack.c.b16 %v2053, %v2052
          %v2065 = vpack.c.b16 %v2055, %v2054
          %v2066 = vpack.c.b16 %v2057, %v2056
          %v2067 = vpack.c.b16 %v2059, %v2058
          %2076 = vmatprep.subr.bf16.mxu0 0
          %2077 = vmatpush1.bf16.msra.mxu0 %v2060
          %2078 = vmatprep.subr.bf16.mxu0 0
          %2079 = vmatpush1.bf16.msra.mxu0 %v2061
          %2080 = vmatprep.subr.bf16.mxu0 0
          %2081 = vmatpush1.bf16.msra.mxu0 %v2062
          %2082 = vmatprep.subr.bf16.mxu0 0
          %2083 = vmatpush1.bf16.msra.mxu0 %v2063
          %2084 = vmatprep.subr.bf16.mxu0 0
          %2085 = vmatpush1.bf16.msra.mxu0 %v2064
          %2086 = vmatprep.subr.bf16.mxu0 0
          %2087 = vmatpush1.bf16.msra.mxu0 %v2065
          %2088 = vmatprep.subr.bf16.mxu0 0
          %2089 = vmatpush1.bf16.msra.mxu0 %v2066
          %2090 = vmatprep.subr.bf16.mxu0 0
          %2091 = vmatpush1.bf16.msra.mxu0 %v2067
          %2092 = vmatprep.subr.bf16.mxu0 0
          %2093 = vmatpush1.bf16.msra.mxu0 0
          %2094 = vmatprep.subr.bf16.mxu0 0
          %2095 = vmatpush1.bf16.msra.mxu0 0
          %2096 = vmatprep.subr.bf16.mxu0 0
          %2097 = vmatpush1.bf16.msra.mxu0 0
          %2098 = vmatprep.subr.bf16.mxu0 0
          %2099 = vmatpush1.bf16.msra.mxu0 0
          %2100 = vmatprep.subr.bf16.mxu0 0
          %2101 = vmatpush1.bf16.msra.mxu0 0
          %2102 = vmatprep.subr.bf16.mxu0 0
          %2103 = vmatpush1.bf16.msra.mxu0 0
          %2104 = vmatprep.subr.bf16.mxu0 0
          %2105 = vmatpush1.bf16.msra.mxu0 0
          %2106 = vmatprep.subr.bf16.mxu0 0
          %2107 = vmatpush1.bf16.msra.mxu0 0
          %2108 = vmatprep.mubr.bf16.mxu0 0
          %2109 = vmatmul.mubr.bf16.gmra.mrb[0].mxu0 %v1997
          %v2110 = vpop.f32.mrb[0].mxu0
          %v2111 = vadd.f32 %v2026, %v2110
          %v2112 = vpop.f32.mrb[0].mxu0
          %v2113 = vpop.f32.mrb[0].mxu0
          %v2114 = vadd.f32 %v2026, %v2113
          %v2115 = vpop.f32.mrb[0].mxu0
          %2116 = vmatprep.mubr.bf16.mxu0 0
          %2117 = vmatmul.mubr.bf16.gmra.mrb[0].mxu0 %v1998
          %v2118 = vpop.f32.mrb[0].mxu0
          %v2119 = vadd.f32 %v2026, %v2118
          %v2120 = vpop.f32.mrb[0].mxu0
          %v2121 = vpop.f32.mrb[0].mxu0
          %v2122 = vadd.f32 %v2026, %v2121
          %v2123 = vpop.f32.mrb[0].mxu0
          %2124 = vmatprep.mubr.bf16.mxu0 0
          %2125 = vmatmul.mubr.bf16.gmra.mrb[0].mxu0 %v1999
          %v2126 = vpop.f32.mrb[0].mxu0
          %v2127 = vadd.f32 %v2026, %v2126
          %v2128 = vpop.f32.mrb[0].mxu0
          %v2129 = vpop.f32.mrb[0].mxu0
          %v2130 = vadd.f32 %v2026, %v2129
          %v2131 = vpop.f32.mrb[0].mxu0
          %2132 = vmatprep.mubr.bf16.mxu0 0
          %2133 = vmatmul.mubr.bf16.gmra.mrb[0].mxu0 %v2000
          %v2134 = vpop.f32.mrb[0].mxu0
          %v2135 = vadd.f32 %v2026, %v2134
          %v2136 = vpop.f32.mrb[0].mxu0
          %v2137 = vpop.f32.mrb[0].mxu0
          %v2138 = vadd.f32 %v2026, %v2137
          %v2139 = vpop.f32.mrb[0].mxu0
          %2140 = vmatprep.mubr.bf16.mxu0 0
          %2141 = vmatmul.mubr.bf16.gmra.mrb[0].mxu0 %v2001
          %v2142 = vpop.f32.mrb[0].mxu0
          %v2143 = vadd.f32 %v2026, %v2142
          %v2144 = vpop.f32.mrb[0].mxu0
          %v2145 = vpop.f32.mrb[0].mxu0
          %v2146 = vadd.f32 %v2026, %v2145
          %v2147 = vpop.f32.mrb[0].mxu0
          %2148 = vmatprep.mubr.bf16.mxu0 0
          %2149 = vmatmul.mubr.bf16.gmra.mrb[0].mxu0 %v2002
          %v2150 = vpop.f32.mrb[0].mxu0
          %v2151 = vadd.f32 %v2026, %v2150
          %v2152 = vpop.f32.mrb[0].mxu0
          %v2153 = vpop.f32.mrb[0].mxu0
          %v2154 = vadd.f32 %v2026, %v2153
          %v2155 = vpop.f32.mrb[0].mxu0
          %2156 = vmatprep.mubr.bf16.mxu0 0
          %2157 = vmatmul.mubr.bf16.gmra.mrb[0].mxu0 %v2003
          %v2158 = vpop.f32.mrb[0].mxu0
          %v2159 = vadd.f32 %v2026, %v2158
          %v2160 = vpop.f32.mrb[0].mxu0
          %v2161 = vpop.f32.mrb[0].mxu0
          %v2162 = vadd.f32 %v2026, %v2161
          %v2163 = vpop.f32.mrb[0].mxu0
          %2164 = vmatprep.mubr.bf16.mxu0 0
          %2165 = vmatmul.mubr.bf16.gmra.mrb[0].mxu0 %v2004
          %v2166 = vpop.f32.mrb[0].mxu0
          %v2167 = vadd.f32 %v2026, %v2166
          %v2168 = vpop.f32.mrb[0].mxu0
          %v2169 = vpop.f32.mrb[0].mxu0
          %v2170 = vadd.f32 %v2026, %v2169
          %v2171 = vpop.f32.mrb[0].mxu0
          %2172 = vdwg.mxu0
          %v2173 = vmul.f32 %v2111, 0.5
          %v2174 = vmul.f32 %v2114, 0.5
          %v2175 = vmul.f32 %v2119, 0.5
          %v2176 = vmul.f32 %v2122, 0.5
          %v2177 = vmul.f32 %v2127, 0.5
          %v2178 = vmul.f32 %v2130, 0.5
          %v2179 = vmul.f32 %v2135, 0.5
          %v2180 = vmul.f32 %v2138, 0.5
          %v2181 = vmul.f32 %v2143, 0.5
          %v2182 = vmul.f32 %v2146, 0.5
          %v2183 = vmul.f32 %v2151, 0.5
          %v2184 = vmul.f32 %v2154, 0.5
          %v2185 = vmul.f32 %v2159, 0.5
          %v2186 = vmul.f32 %v2162, 0.5
          %v2187 = vmul.f32 %v2167, 0.5
          %v2188 = vmul.f32 %v2170, 0.5
          %v2189 = vmul.f32 %v2111, 0.044715
          %v2190 = vmul.f32 %v2114, 0.044715
          %v2191 = vmul.f32 %v2119, 0.044715
          %v2192 = vmul.f32 %v2122, 0.044715
          %v2193 = vmul.f32 %v2127, 0.044715
          %v2194 = vmul.f32 %v2130, 0.044715
          %v2195 = vmul.f32 %v2135, 0.044715
          %v2196 = vmul.f32 %v2138, 0.044715
          %v2197 = vmul.f32 %v2143, 0.044715
          %v2198 = vmul.f32 %v2146, 0.044715
          %v2199 = vmul.f32 %v2151, 0.044715
          %v2200 = vmul.f32 %v2154, 0.044715
          %v2201 = vmul.f32 %v2159, 0.044715
          %v2202 = vmul.f32 %v2162, 0.044715
          %v2203 = vmul.f32 %v2167, 0.044715
          %v2204 = vmul.f32 %v2170, 0.044715
          %v2205 = vmul.f32 %v2189, %v2111
          %v2206 = vmul.f32 %v2190, %v2114
          %v2207 = vmul.f32 %v2191, %v2119
          %v2208 = vmul.f32 %v2192, %v2122
          %v2209 = vmul.f32 %v2193, %v2127
          %v2210 = vmul.f32 %v2194, %v2130
          %v2211 = vmul.f32 %v2195, %v2135
          %v2212 = vmul.f32 %v2196, %v2138
          %v2213 = vmul.f32 %v2197, %v2143
          %v2214 = vmul.f32 %v2198, %v2146
          %v2215 = vmul.f32 %v2199, %v2151
          %v2216 = vmul.f32 %v2200, %v2154
          %v2217 = vmul.f32 %v2201, %v2159
          %v2218 = vmul.f32 %v2202, %v2162
          %v2219 = vmul.f32 %v2203, %v2167
          %v2220 = vmul.f32 %v2204, %v2170
          %v2221 = vmul.f32 %v2205, %v2111
          %v2222 = vmul.f32 %v2206, %v2114
          %v2223 = vmul.f32 %v2207, %v2119
          %v2224 = vmul.f32 %v2208, %v2122
          %v2225 = vmul.f32 %v2209, %v2127
          %v2226 = vmul.f32 %v2210, %v2130
          %v2227 = vmul.f32 %v2211, %v2135
          %v2228 = vmul.f32 %v2212, %v2138
          %v2229 = vmul.f32 %v2213, %v2143
          %v2230 = vmul.f32 %v2214, %v2146
          %v2231 = vmul.f32 %v2215, %v2151
          %v2232 = vmul.f32 %v2216, %v2154
          %v2233 = vmul.f32 %v2217, %v2159
          %v2234 = vmul.f32 %v2218, %v2162
          %v2235 = vmul.f32 %v2219, %v2167
          %v2236 = vmul.f32 %v2220, %v2170
          %v2237 = vadd.f32 %v2111, %v2221
          %v2238 = vadd.f32 %v2114, %v2222
          %v2239 = vadd.f32 %v2119, %v2223
          %v2240 = vadd.f32 %v2122, %v2224
          %v2241 = vadd.f32 %v2127, %v2225
          %v2242 = vadd.f32 %v2130, %v2226
          %v2243 = vadd.f32 %v2135, %v2227
          %v2244 = vadd.f32 %v2138, %v2228
          %v2245 = vadd.f32 %v2143, %v2229
          %v2246 = vadd.f32 %v2146, %v2230
          %v2247 = vadd.f32 %v2151, %v2231
          %v2248 = vadd.f32 %v2154, %v2232
          %v2249 = vadd.f32 %v2159, %v2233
          %v2250 = vadd.f32 %v2162, %v2234
          %v2251 = vadd.f32 %v2167, %v2235
          %v2252 = vadd.f32 %v2170, %v2236
          %v2253 = vmul.f32 %v2237, 0.7978846
          %v2254 = vmul.f32 %v2238, 0.7978846
          %v2255 = vmul.f32 %v2239, 0.7978846
          %v2256 = vmul.f32 %v2240, 0.7978846
          %v2257 = vmul.f32 %v2241, 0.7978846
          %v2258 = vmul.f32 %v2242, 0.7978846
          %v2259 = vmul.f32 %v2243, 0.7978846
          %v2260 = vmul.f32 %v2244, 0.7978846
          %v2261 = vmul.f32 %v2245, 0.7978846
          %v2262 = vmul.f32 %v2246, 0.7978846
          %v2263 = vmul.f32 %v2247, 0.7978846
          %v2264 = vmul.f32 %v2248, 0.7978846
          %v2265 = vmul.f32 %v2249, 0.7978846
          %v2266 = vmul.f32 %v2250, 0.7978846
          %v2267 = vmul.f32 %v2251, 0.7978846
          %v2268 = vmul.f32 %v2252, 0.7978846
          %v2269 = vtanh.pop %v2253
          %v2270 = vtanh.pop %v2254
          %v2271 = vtanh.pop %v2255
          %v2272 = vtanh.pop %v2256
          %v2273 = vtanh.pop %v2257
          %v2274 = vtanh.pop %v2258
          %v2275 = vtanh.pop %v2259
          %v2276 = vtanh.pop %v2260
          %v2277 = vtanh.pop %v2261
          %v2278 = vtanh.pop %v2262
          %v2279 = vtanh.pop %v2263
          %v2280 = vtanh.pop %v2264
          %v2281 = vtanh.pop %v2265
          %v2282 = vtanh.pop %v2266
          %v2283 = vtanh.pop %v2267
          %v2284 = vtanh.pop %v2268
          %v2285 = vadd.f32 %v2269, 1.0
          %v2286 = vadd.f32 %v2270, 1.0
          %v2287 = vadd.f32 %v2271, 1.0
          %v2288 = vadd.f32 %v2272, 1.0
          %v2289 = vadd.f32 %v2273, 1.0
          %v2290 = vadd.f32 %v2274, 1.0
          %v2291 = vadd.f32 %v2275, 1.0
          %v2292 = vadd.f32 %v2276, 1.0
          %v2293 = vadd.f32 %v2277, 1.0
          %v2294 = vadd.f32 %v2278, 1.0
          %v2295 = vadd.f32 %v2279, 1.0
          %v2296 = vadd.f32 %v2280, 1.0
          %v2297 = vadd.f32 %v2281, 1.0
          %v2298 = vadd.f32 %v2282, 1.0
          %v2299 = vadd.f32 %v2283, 1.0
          %v2300 = vadd.f32 %v2284, 1.0
          %v2301 = vmul.f32 %v2173, %v2285
          %v2302 = vmul.f32 %v2174, %v2286
          %v2303 = vmul.f32 %v2175, %v2287
          %v2304 = vmul.f32 %v2176, %v2288
          %v2305 = vmul.f32 %v2177, %v2289
          %v2306 = vmul.f32 %v2178, %v2290
          %v2307 = vmul.f32 %v2179, %v2291
          %v2308 = vmul.f32 %v2180, %v2292
          %v2309 = vmul.f32 %v2181, %v2293
          %v2310 = vmul.f32 %v2182, %v2294
          %v2311 = vmul.f32 %v2183, %v2295
          %v2312 = vmul.f32 %v2184, %v2296
          %v2313 = vmul.f32 %v2185, %v2297
          %v2314 = vmul.f32 %v2186, %v2298
          %v2315 = vmul.f32 %v2187, %v2299
          %v2316 = vmul.f32 %v2188, %v2300
          %v2317 = vpack.c.bf16 %v2302, %v2301
          %v2318 = vpack.c.bf16 %v2304, %v2303
          %v2319 = vpack.c.bf16 %v2306, %v2305
          %v2320 = vpack.c.bf16 %v2308, %v2307
          %v2321 = vpack.c.bf16 %v2310, %v2309
          %v2322 = vpack.c.bf16 %v2312, %v2311
          %v2323 = vpack.c.bf16 %v2314, %v2313
          %v2324 = vpack.c.bf16 %v2316, %v2315
          %2325 = vst.msk [vmem:[#allocation2] sm:$0xff] %vm819, %v2317
          %2326 = vst.msk [vmem:[#allocation2 + $0x8] sm:$0xff] %vm819, %v2318
          %2327 = vst.msk [vmem:[#allocation2 + $0x10] sm:$0xff] %vm819, %v2319
          %2328 = vst.msk [vmem:[#allocation2 + $0x18] sm:$0xff] %vm819, %v2320
          %2329 = vst.msk [vmem:[#allocation2 + $0x20] sm:$0xff] %vm819, %v2321
          %2330 = vst.msk [vmem:[#allocation2 + $0x28] sm:$0xff] %vm819, %v2322
          %2331 = vst.msk [vmem:[#allocation2 + $0x30] sm:$0xff] %vm819, %v2323
          %2332 = vst.msk [vmem:[#allocation2 + $0x38] sm:$0xff] %vm819, %v2324
          %2341 = vrot.lane.b32.xlu0 %v2317, 96
          %v2342 = vpop.permute.xlu0 %2341
          %2343 = vrot.lane.b32.xlu0 %v2318, 96
          %v2344 = vpop.permute.xlu0 %2343
          %2345 = vrot.lane.b32.xlu0 %v2319, 96
          %v2346 = vpop.permute.xlu0 %2345
          %2347 = vrot.lane.b32.xlu0 %v2320, 96
          %v2348 = vpop.permute.xlu0 %2347
          %2349 = vrot.lane.b32.xlu0 %v2321, 96
          %v2350 = vpop.permute.xlu0 %2349
          %2351 = vrot.lane.b32.xlu0 %v2322, 96
          %v2352 = vpop.permute.xlu0 %2351
          %2353 = vrot.lane.b32.xlu0 %v2323, 96
          %v2354 = vpop.permute.xlu0 %2353
          %2355 = vrot.lane.b32.xlu0 %v2324, 96
          %v2356 = vpop.permute.xlu0 %2355
          %s2365 = scalar_lea.vmem [#allocation2], 64
          %2366 = vst.msk [vmem:[%s2365] sm:$0xff] %vm819, %v2342
          %2367 = vst.msk [vmem:[%s2365 + $0x8] sm:$0xff] %vm819, %v2344
          %2368 = vst.msk [vmem:[%s2365 + $0x10] sm:$0xff] %vm819, %v2346
          %2369 = vst.msk [vmem:[%s2365 + $0x18] sm:$0xff] %vm819, %v2348
          %2370 = vst.msk [vmem:[%s2365 + $0x20] sm:$0xff] %vm819, %v2350
          %2371 = vst.msk [vmem:[%s2365 + $0x28] sm:$0xff] %vm819, %v2352
          %2372 = vst.msk [vmem:[%s2365 + $0x30] sm:$0xff] %vm819, %v2354
          %2373 = vst.msk [vmem:[%s2365 + $0x38] sm:$0xff] %vm819, %v2356
          %2374 = vrot.lane.b32.xlu0 %v2317, 64
          %v2375 = vpop.permute.xlu0 %2374
          %2376 = vrot.lane.b32.xlu0 %v2318, 64
          %v2377 = vpop.permute.xlu0 %2376
          %2378 = vrot.lane.b32.xlu0 %v2319, 64
          %v2379 = vpop.permute.xlu0 %2378
          %2380 = vrot.lane.b32.xlu0 %v2320, 64
          %v2381 = vpop.permute.xlu0 %2380
          %2382 = vrot.lane.b32.xlu0 %v2321, 64
          %v2383 = vpop.permute.xlu0 %2382
          %2384 = vrot.lane.b32.xlu0 %v2322, 64
          %v2385 = vpop.permute.xlu0 %2384
          %2386 = vrot.lane.b32.xlu0 %v2323, 64
          %v2387 = vpop.permute.xlu0 %2386
          %2388 = vrot.lane.b32.xlu0 %v2324, 64
          %v2389 = vpop.permute.xlu0 %2388
          %s2398 = scalar_lea.vmem [#allocation2], 128
          %2399 = vst.msk [vmem:[%s2398] sm:$0xff] %vm819, %v2375
          %2400 = vst.msk [vmem:[%s2398 + $0x8] sm:$0xff] %vm819, %v2377
          %2401 = vst.msk [vmem:[%s2398 + $0x10] sm:$0xff] %vm819, %v2379
          %2402 = vst.msk [vmem:[%s2398 + $0x18] sm:$0xff] %vm819, %v2381
          %2403 = vst.msk [vmem:[%s2398 + $0x20] sm:$0xff] %vm819, %v2383
          %2404 = vst.msk [vmem:[%s2398 + $0x28] sm:$0xff] %vm819, %v2385
          %2405 = vst.msk [vmem:[%s2398 + $0x30] sm:$0xff] %vm819, %v2387
          %2406 = vst.msk [vmem:[%s2398 + $0x38] sm:$0xff] %vm819, %v2389
          %2407 = vrot.lane.b32.xlu0 %v2317, 32
          %v2408 = vpop.permute.xlu0 %2407
          %2409 = vrot.lane.b32.xlu0 %v2318, 32
          %v2410 = vpop.permute.xlu0 %2409
          %2411 = vrot.lane.b32.xlu0 %v2319, 32
          %v2412 = vpop.permute.xlu0 %2411
          %2413 = vrot.lane.b32.xlu0 %v2320, 32
          %v2414 = vpop.permute.xlu0 %2413
          %2415 = vrot.lane.b32.xlu0 %v2321, 32
          %v2416 = vpop.permute.xlu0 %2415
          %2417 = vrot.lane.b32.xlu0 %v2322, 32
          %v2418 = vpop.permute.xlu0 %2417
          %2419 = vrot.lane.b32.xlu0 %v2323, 32
          %v2420 = vpop.permute.xlu0 %2419
          %2421 = vrot.lane.b32.xlu0 %v2324, 32
          %v2422 = vpop.permute.xlu0 %2421
          %s2431 = scalar_lea.vmem [#allocation2], 192
          %2432 = vst.msk [vmem:[%s2431] sm:$0xff] %vm819, %v2408
          %2433 = vst.msk [vmem:[%s2431 + $0x8] sm:$0xff] %vm819, %v2410
          %2434 = vst.msk [vmem:[%s2431 + $0x10] sm:$0xff] %vm819, %v2412
          %2435 = vst.msk [vmem:[%s2431 + $0x18] sm:$0xff] %vm819, %v2414
          %2436 = vst.msk [vmem:[%s2431 + $0x20] sm:$0xff] %vm819, %v2416
          %2437 = vst.msk [vmem:[%s2431 + $0x28] sm:$0xff] %vm819, %v2418
          %2438 = vst.msk [vmem:[%s2431 + $0x30] sm:$0xff] %vm819, %v2420
          %2439 = vst.msk [vmem:[%s2431 + $0x38] sm:$0xff] %vm819, %v2422
        $region96: #{tpu_custom_call.1} parent=75 // pred_fallthru
          _
        %s2440 = smul.u32 %s38, 8
        %s2441 = smul.addr %s2440, 8
        %s2442 = scalar_lea.vmem [#allocation2], %s2441
        %v2443 = vld [vmem:[%s2442] sm:$0xff]
        %v2444 = vld [vmem:[%s2442 + $0x8] sm:$0xff]
        %v2445 = vld [vmem:[%s2442 + $0x10] sm:$0xff]
        %v2446 = vld [vmem:[%s2442 + $0x18] sm:$0xff]
        %v2447 = vld [vmem:[%s2442 + $0x20] sm:$0xff]
        %v2448 = vld [vmem:[%s2442 + $0x28] sm:$0xff]
        %v2449 = vld [vmem:[%s2442 + $0x30] sm:$0xff]
        %v2450 = vld [vmem:[%s2442 + $0x38] sm:$0xff]
        %v2451 = vld [vmem:[%s599] sm:$0xf]
        %v2452 = vld [vmem:[%s599 + $0x4] sm:$0xf]
        %v2453 = vld [vmem:[%s599 + $0x8] sm:$0xf]
        %v2454 = vld [vmem:[%s599 + $0xc] sm:$0xf]
        %v2455 = vld [vmem:[%s602] sm:$0x1]
        %v2457 = vlaneseq
        %v2458 = vshrl.u32 %v2457, 7
        %v2459 = vsub.s32 0, %v2458
        %v2460 = vrot.slane %v2455, %v2459
        %v2466 = vunpack.c.l.b16 %v2451
        %v2467 = vunpack.c.l.b16 %v2452
        %v2468 = vunpack.c.l.b16 %v2453
        %v2469 = vunpack.c.l.b16 %v2454
        %v2470 = vpack.c.b16 %v2467, %v2466
        %v2471 = vpack.c.b16 %v2469, %v2468
        %vm2474 = vcmask 261120
        %v2476 = vsel %vm2474, %v2443, 0
        %v2479 = vsel %vm2474, %v2444, 0
        %v2482 = vsel %vm2474, %v2445, 0
        %v2485 = vsel %vm2474, %v2446, 0
        %v2488 = vsel %vm2474, %v2447, 0
        %v2491 = vsel %vm2474, %v2448, 0
        %v2494 = vsel %vm2474, %v2449, 0
        %v2497 = vsel %vm2474, %v2450, 0
        %2499 = vmatprep.subr.bf16.mxu0 0
        %2500 = vmatpush1.bf16.msra.mxu0 %v2470
        %2501 = vmatprep.subr.bf16.mxu0 0
        %2502 = vmatpush1.bf16.msra.mxu0 %v2471
        %2503 = vmatprep.subr.bf16.mxu0 0
        %2504 = vmatpush1.bf16.msra.mxu0 0
        %2505 = vmatprep.subr.bf16.mxu0 0
        %2506 = vmatpush1.bf16.msra.mxu0 0
        %2507 = vmatprep.subr.bf16.mxu0 0
        %2508 = vmatpush1.bf16.msra.mxu0 0
        %2509 = vmatprep.subr.bf16.mxu0 0
        %2510 = vmatpush1.bf16.msra.mxu0 0
        %2511 = vmatprep.subr.bf16.mxu0 0
        %2512 = vmatpush1.bf16.msra.mxu0 0
        %2513 = vmatprep.subr.bf16.mxu0 0
        %2514 = vmatpush1.bf16.msra.mxu0 0
        %2515 = vmatprep.subr.bf16.mxu0 0
        %2516 = vmatpush1.bf16.msra.mxu0 0
        %2517 = vmatprep.subr.bf16.mxu0 0
        %2518 = vmatpush1.bf16.msra.mxu0 0
        %2519 = vmatprep.subr.bf16.mxu0 0
        %2520 = vmatpush1.bf16.msra.mxu0 0
        %2521 = vmatprep.subr.bf16.mxu0 0
        %2522 = vmatpush1.bf16.msra.mxu0 0
        %2523 = vmatprep.subr.bf16.mxu0 0
        %2524 = vmatpush1.bf16.msra.mxu0 0
        %2525 = vmatprep.subr.bf16.mxu0 0
        %2526 = vmatpush1.bf16.msra.mxu0 0
        %2527 = vmatprep.subr.bf16.mxu0 0
        %2528 = vmatpush1.bf16.msra.mxu0 0
        %2529 = vmatprep.subr.bf16.mxu0 0
        %2530 = vmatpush1.bf16.msra.mxu0 0
        %2531 = vmatprep.mubr.bf16.mxu0 0
        %2532 = vmatmul.mubr.bf16.gmra.mrb[0].mxu0 %v2476
        %v2533 = vpop.f32.mrb[0].mxu0
        %v2534 = vadd.f32 %v2460, %v2533
        %v2535 = vpop.f32.mrb[0].mxu0
        %v2536 = vpop.f32.mrb[0].mxu0
        %v2537 = vadd.f32 %v2460, %v2536
        %v2538 = vpop.f32.mrb[0].mxu0
        %2539 = vmatprep.mubr.bf16.mxu0 0
        %2540 = vmatmul.mubr.bf16.gmra.mrb[0].mxu0 %v2479
        %v2541 = vpop.f32.mrb[0].mxu0
        %v2542 = vadd.f32 %v2460, %v2541
        %v2543 = vpop.f32.mrb[0].mxu0
        %v2544 = vpop.f32.mrb[0].mxu0
        %v2545 = vadd.f32 %v2460, %v2544
        %v2546 = vpop.f32.mrb[0].mxu0
        %2547 = vmatprep.mubr.bf16.mxu0 0
        %2548 = vmatmul.mubr.bf16.gmra.mrb[0].mxu0 %v2482
        %v2549 = vpop.f32.mrb[0].mxu0
        %v2550 = vadd.f32 %v2460, %v2549
        %v2551 = vpop.f32.mrb[0].mxu0
        %v2552 = vpop.f32.mrb[0].mxu0
        %v2553 = vadd.f32 %v2460, %v2552
        %v2554 = vpop.f32.mrb[0].mxu0
        %2555 = vmatprep.mubr.bf16.mxu0 0
        %2556 = vmatmul.mubr.bf16.gmra.mrb[0].mxu0 %v2485
        %v2557 = vpop.f32.mrb[0].mxu0
        %v2558 = vadd.f32 %v2460, %v2557
        %v2559 = vpop.f32.mrb[0].mxu0
        %v2560 = vpop.f32.mrb[0].mxu0
        %v2561 = vadd.f32 %v2460, %v2560
        %v2562 = vpop.f32.mrb[0].mxu0
        %2563 = vmatprep.mubr.bf16.mxu0 0
        %2564 = vmatmul.mubr.bf16.gmra.mrb[0].mxu0 %v2488
        %v2565 = vpop.f32.mrb[0].mxu0
        %v2566 = vadd.f32 %v2460, %v2565
        %v2567 = vpop.f32.mrb[0].mxu0
        %v2568 = vpop.f32.mrb[0].mxu0
        %v2569 = vadd.f32 %v2460, %v2568
        %v2570 = vpop.f32.mrb[0].mxu0
        %2571 = vmatprep.mubr.bf16.mxu0 0
        %2572 = vmatmul.mubr.bf16.gmra.mrb[0].mxu0 %v2491
        %v2573 = vpop.f32.mrb[0].mxu0
        %v2574 = vadd.f32 %v2460, %v2573
        %v2575 = vpop.f32.mrb[0].mxu0
        %v2576 = vpop.f32.mrb[0].mxu0
        %v2577 = vadd.f32 %v2460, %v2576
        %v2578 = vpop.f32.mrb[0].mxu0
        %2579 = vmatprep.mubr.bf16.mxu0 0
        %2580 = vmatmul.mubr.bf16.gmra.mrb[0].mxu0 %v2494
        %v2581 = vpop.f32.mrb[0].mxu0
        %v2582 = vadd.f32 %v2460, %v2581
        %v2583 = vpop.f32.mrb[0].mxu0
        %v2584 = vpop.f32.mrb[0].mxu0
        %v2585 = vadd.f32 %v2460, %v2584
        %v2586 = vpop.f32.mrb[0].mxu0
        %2587 = vmatprep.mubr.bf16.mxu0 0
        %2588 = vmatmul.mubr.bf16.gmra.mrb[0].mxu0 %v2497
        %v2589 = vpop.f32.mrb[0].mxu0
        %v2590 = vadd.f32 %v2460, %v2589
        %v2591 = vpop.f32.mrb[0].mxu0
        %v2592 = vpop.f32.mrb[0].mxu0
        %v2593 = vadd.f32 %v2460, %v2592
        %v2594 = vpop.f32.mrb[0].mxu0
        %2595 = vdwg.mxu0
        %v2596 = vpack.c.bf16 %v2537, %v2534
        %v2597 = vpack.c.bf16 %v2545, %v2542
        %v2598 = vpack.c.bf16 %v2553, %v2550
        %v2599 = vpack.c.bf16 %v2561, %v2558
        %v2600 = vpack.c.bf16 %v2569, %v2566
        %v2601 = vpack.c.bf16 %v2577, %v2574
        %v2602 = vpack.c.bf16 %v2585, %v2582
        %v2603 = vpack.c.bf16 %v2593, %v2590
        %v2612 = vunpack.c.l.b16 %v2596
        %v2613 = vunpack.c.h.b16 %v2596
        %v2614 = vunpack.c.l.b16 %v2597
        %v2615 = vunpack.c.h.b16 %v2597
        %v2616 = vunpack.c.l.b16 %v2598
        %v2617 = vunpack.c.h.b16 %v2598
        %v2618 = vunpack.c.l.b16 %v2599
        %v2619 = vunpack.c.h.b16 %v2599
        %v2620 = vunpack.c.l.b16 %v2600
        %v2621 = vunpack.c.h.b16 %v2600
        %v2622 = vunpack.c.l.b16 %v2601
        %v2623 = vunpack.c.h.b16 %v2601
        %v2624 = vunpack.c.l.b16 %v2602
        %v2625 = vunpack.c.h.b16 %v2602
        %v2626 = vunpack.c.l.b16 %v2603
        %v2627 = vunpack.c.h.b16 %v2603
        %v2628 = vpack.c.b16 %v2612, %v2612
        %v2629 = vpack.c.b16 %v2613, %v2613
        %v2630 = vpack.c.b16 %v2614, %v2614
        %v2631 = vpack.c.b16 %v2615, %v2615
        %v2632 = vpack.c.b16 %v2616, %v2616
        %v2633 = vpack.c.b16 %v2617, %v2617
        %v2634 = vpack.c.b16 %v2618, %v2618
        %v2635 = vpack.c.b16 %v2619, %v2619
        %v2636 = vpack.c.b16 %v2620, %v2620
        %v2637 = vpack.c.b16 %v2621, %v2621
        %v2638 = vpack.c.b16 %v2622, %v2622
        %v2639 = vpack.c.b16 %v2623, %v2623
        %v2640 = vpack.c.b16 %v2624, %v2624
        %v2641 = vpack.c.b16 %v2625, %v2625
        %v2642 = vpack.c.b16 %v2626, %v2626
        %v2643 = vpack.c.b16 %v2627, %v2627
        %2660 = vst [vmem:[%s583] sm:$0xf] %v2628
        %2661 = vst [vmem:[%s583 + $0x4] sm:$0xf] %v2629
        %2662 = vst [vmem:[%s583 + $0x8] sm:$0xf] %v2630
        %2663 = vst [vmem:[%s583 + $0xc] sm:$0xf] %v2631
        %2664 = vst [vmem:[%s583 + $0x10] sm:$0xf] %v2632
        %2665 = vst [vmem:[%s583 + $0x14] sm:$0xf] %v2633
        %2666 = vst [vmem:[%s583 + $0x18] sm:$0xf] %v2634
        %2667 = vst [vmem:[%s583 + $0x1c] sm:$0xf] %v2635
        %2668 = vst [vmem:[%s583 + $0x20] sm:$0xf] %v2636
        %2669 = vst [vmem:[%s583 + $0x24] sm:$0xf] %v2637
        %2670 = vst [vmem:[%s583 + $0x28] sm:$0xf] %v2638
        %2671 = vst [vmem:[%s583 + $0x2c] sm:$0xf] %v2639
        %2672 = vst [vmem:[%s583 + $0x30] sm:$0xf] %v2640
        %2673 = vst [vmem:[%s583 + $0x34] sm:$0xf] %v2641
        %2674 = vst [vmem:[%s583 + $0x38] sm:$0xf] %v2642
        %2675 = vst [vmem:[%s583 + $0x3c] sm:$0xf] %v2643
        %s2676 = sand.u32 %s376, 1
        %s2677 = scalar_lea.sflag [#allocation5], %s2676
        %s2678 = sand.u32 %s376, 1
        %s2679 = smul.addr %s2678, 64
        %s2680 = scalar_lea.vmem [#allocation11], %s2679
        // Predicated region
        $region97: #{tpu_custom_call.1} parent=75 // pred_check
          %p2681 = pneg %p386
        $region98: #{tpu_custom_call.1} parent=75 // pred_check_branch
          %2683 = sbr.rel (%p2681) target = $region100
        $region99: #{tpu_custom_call.1} parent=75 // pred_region
          %s2684 = sadd.s32 %s38, %s37
          %s2685 = smul.u32 16, %s36
          %s2687 = ssub.s32 1024, 1024
          %2688 = vsyncadd %s2677, %s2687
          %s2689 = smul.addr %s2685, 4
          %s2690 = sadd.s32 %s2684, %s2689
          %s2691 = smul.addr %s2690, 64
          %s2692 = scalar_lea.hbm %s14, %s2691
          %s2693 = sshll.u32 %s2680, 4
          %s2694 = int_to_ptr.vmem [resolvable:$true] %s2693
          %2699 = dma.vmem_to_hbm [thread:$0]  %s2694, 1024, %s2692, %s2677, 64, 256, 4
        $region100: #{tpu_custom_call.1} parent=75 // pred_fallthru
          _
      $region76: #{tpu_custom_call.1} parent=5 // pred_fallthru
        _
      %p2700 = scmp.le.s32.totalorder 2, %s26
      // Predicated region
      $region101: #{tpu_custom_call.1} parent=5 // pred_check
        %p2701 = pneg %p2700
      $region102: #{tpu_custom_call.1} parent=5 // pred_check_branch
        %2703 = sbr.rel (%p2701) target = $region104
      $region103: #{tpu_custom_call.1} parent=5 // pred_region
        %s2704 = ssub.s32 %s26, 2
        // Predicated region
        $region105: #{tpu_custom_call.1} parent=103 // pred_check
          %p2705 = pneg %p392
        $region106: #{tpu_custom_call.1} parent=103 // pred_check_branch
          %2707 = sbr.rel (%p2705) target = $region108
        $region107: #{tpu_custom_call.1} parent=103 // pred_region
          %s2708 = sand.u32 %s377, 1
          %s2709 = scalar_lea.sflag [#allocation5], %s2708
          %s2710 = sand.u32 %s377, 1
          %s2711 = smul.addr %s2710, 64
          %s2712 = scalar_lea.vmem [#allocation11], %s2711
          %2713 = dma.done %s2709, 1024
        $region108: #{tpu_custom_call.1} parent=103 // pred_fallthru
          _
      $region104: #{tpu_custom_call.1} parent=5 // pred_fallthru
        _
    $region6: #{tpu_custom_call.1} parent=1 // loop_footer
      %s30 = sadd.s32 1, %s26
    $region7: #{tpu_custom_call.1} parent=1 // loop_footer_branch
      %25 = sbr.rel target = $region3
    $region8: #{tpu_custom_call.1} parent=1 // loop_exit
      _
    %2714 = vsyncpa [#allocation4], 1
    %s2715 = scalar_lea.sflag [#allocation4], 1
    %2716 = vsyncpa %s2715, 1
    %2717 = vsyncpa [#allocation7], 1
    %2718 = vsyncpa [#allocation10], 1
    %2719 = vsyncpa [#allocation5], 1
    %s2720 = scalar_lea.sflag [#allocation5], 1
    %2721 = vsyncpa %s2720, 1

// kernel: tpu_custom_call.1
$region0: #{tpu_custom_call.1}
  #allocation0 [shape = 'u32[]', space=smem, size = 0x4, offset = 0x4, fixed_abs, tag = 'smem constant byte address 0x4 - core index']
  #allocation1 [shape = 'u32[144,128]{1,0:T(1,128)}', space=vmem, size = 0x12000, scoped, tag = 'internal scratch']
  #allocation2 [shape = 'bf16[4,128,32]{2,1,0:T(16,128)(2,1)}', space=vmem, size = 0x20000, scoped, tag = 'scratch operand']
  %s0 = inlined_call_operand.vmem [shape: bf16[128,32], index: 0, kind: input, shape index: {}]
  %s1 = inlined_call_operand.vmem [shape: bf16[128,128], index: 1, kind: input, shape index: {}]
  %s2 = inlined_call_operand.vmem [shape: bf16[32,128], index: 2, kind: input, shape index: {}]
  %s3 = inlined_call_operand.vmem [shape: f32[1,128], index: 3, kind: input, shape index: {}]
  %s4 = inlined_call_operand.hbm [shape: bf16[128,128], index: 4, kind: input, shape index: {}]
  %s5 = inlined_call_operand.vmem [shape: f32[1,128], index: 5, kind: input, shape index: {}]
  %s6 = inlined_call_operand.hbm [shape: bf16[128,128], index: 6, kind: input, shape index: {}]
  %s7 = inlined_call_operand.vmem [shape: f32[1,128], index: 7, kind: input, shape index: {}]
  %s8 = inlined_call_operand.hbm [shape: bf16[128,128], index: 8, kind: input, shape index: {}]
  %s9 = inlined_call_operand.vmem [shape: f32[1,128], index: 9, kind: input, shape index: {}]
  %s10 = inlined_call_operand.hbm [shape: bf16[128,128], index: 10, kind: input, shape index: {}]
  %s11 = inlined_call_operand.vmem [shape: f32[1,128], index: 11, kind: input, shape index: {}]
  %s12 = inlined_call_operand.vmem [shape: bf16[32,128], index: 12, kind: input, shape index: {}]
  %s13 = inlined_call_operand.vmem [shape: f32[1,128], index: 13, kind: input, shape index: {}]
  %s14 = inlined_call_operand.hbm [shape: bf16[128,512], index: 14, kind: output, shape index: {}]
  %s15 = sld [smem:[#allocation0]]
  $region109: #{tpu_custom_call.1} parent=0
    _
  %s17 = ssub.s32 1, %s15
  %s18 = scalar_select 0, %s17, %s15
  $region1: #{tpu_custom_call.1} parent=0
    #allocation3 [shape = 'u8[32768]{0}', space=vmem, size = 0x8000, scoped, tag = 'input window, operand 4, single buffered']
    #allocation4 [shape = 's32[2]{0}', space=sflag, size = 0x8, scoped, tag = 'scoped memory for tpu_custom_call.1']
    #allocation5 [shape = 's32[2]{0}', space=sflag, size = 0x8, scoped, tag = 'scoped memory for tpu_custom_call.1']
    #allocation6 [shape = 'u8[32768]{0}', space=vmem, size = 0x8000, scoped, tag = 'input window, operand 6, single buffered']
    #allocation7 [shape = 's32[1]{0}', space=sflag, size = 0x4, scoped, tag = 'scoped memory for tpu_custom_call.1']
    #allocation8 [shape = 'u8[32768]{0}', space=vmem, size = 0x8000, scoped, tag = 'input window, operand 8, single buffered']
    #allocation9 [shape = 'u8[32768]{0}', space=vmem, size = 0x8000, scoped, tag = 'input window, operand 10, single buffered']
    #allocation10 [shape = 's32[1]{0}', space=sflag, size = 0x4, scoped, tag = 'scoped memory for tpu_custom_call.1']
    #allocation11 [shape = 'u8[65536]{0}', space=vmem, size = 0x10000, scoped, tag = 'output window, operand 0']
    %19 = vsyncpa [#allocation4], 0
    %20 = vsyncpa [#allocation7], 0
    %21 = vsyncpa [#allocation10], 0
    %22 = vsyncpa [#allocation5], 0
    %s23 = scalar_lea.sflag [#allocation5], 1
    %24 = vsyncpa %s23, 0
    loop: start=0, step=1, limit=6
    $region2: #{tpu_custom_call.1} parent=1 // loop_pre_header
      _
    $region3: #{tpu_custom_call.1} parent=1 // loop_header
      %s26 = sphi 0, %s30
      %p27 = scmp.ge.s32.totalorder %s26, 6
      %s33 = sphi 0, %s52
      %s34 = sphi 0, %s48
      %s35 = sphi 0, %s44
      %s36 = sphi 0, %s33
      %s37 = sphi 0, %s34
      %s38 = sphi 0, %s35
      %s39 = sphi 0, %s36
      %s40 = sphi 0, %s37
      %s41 = sphi 0, %s38
      %s55 = sphi 0, %s57
      %s58 = sphi 0, %s55
      %s59 = sphi 0, %s58
      %s75 = sphi 0, %s59
      %s81 = sphi 0, %s83
      %s84 = sphi 0, %s81
      %s85 = sphi 0, %s84
      %s101 = sphi 0, %s85
      %s105 = sphi 0, %s105
      %s107 = sphi 0, %s105
      %s108 = sphi 0, %s107
      %s122 = sphi 0, %s108
      %s126 = sphi 0, %s126
      %s128 = sphi 0, %s126
      %s129 = sphi 0, %s128
      %s143 = sphi 0, %s129
      %s147 = sphi 0, %s147
      %s149 = sphi 0, %s147
      %s150 = sphi 0, %s149
      %s164 = sphi 0, %s150
      %s168 = sphi 0, %s168
      %s170 = sphi 0, %s168
      %s171 = sphi 0, %s170
      %s185 = sphi 0, %s171
      %s189 = sphi 0, %s189
      %s191 = sphi 0, %s189
      %s192 = sphi 0, %s191
      %s206 = sphi 0, %s192
      %s210 = sphi 0, %s210
      %s212 = sphi 0, %s210
      %s213 = sphi 0, %s212
      %s227 = sphi 0, %s213
      %s231 = sphi 0, %s231
      %s233 = sphi 0, %s231
      %s234 = sphi 0, %s233
      %s248 = sphi 0, %s234
      %s252 = sphi 0, %s252
      %s254 = sphi 0, %s252
      %s255 = sphi 0, %s254
      %s269 = sphi 0, %s255
      %s273 = sphi 0, %s273
      %s275 = sphi 0, %s273
      %s276 = sphi 0, %s275
      %s290 = sphi 0, %s276
      %s294 = sphi 0, %s294
      %s296 = sphi 0, %s294
      %s297 = sphi 0, %s296
      %s311 = sphi 0, %s297
      %s317 = sphi 0, %s319
      %s320 = sphi 0, %s317
      %s321 = sphi 0, %s320
      %s337 = sphi 0, %s321
      %s343 = sphi 0, %s345
      %s346 = sphi 0, %s343
      %s347 = sphi 0, %s346
      %s363 = sphi 0, %s347
      %s373 = sphi 0, %s375
      %s376 = sphi 0, %s373
      %s377 = sphi 0, %s376
      %s393 = sphi 0, %s377
    $region4: #{tpu_custom_call.1} parent=1 // loop_header_branch
      %29 = sbr.rel (%p27) target = $region8
    $region5: #{tpu_custom_call.1} parent=1 // loop_body
      %s31 = ssub.s32 %s26, 1
      %s32 = ssub.s32 %s26, 2
      %s42 = sadd.s32 1, %s35
      %p43 = scmp.ge.s32.totalorder %s42, 4
      %s44 = scalar_select %p43, 0, %s42
      %s45 = sadd.s32 1, %s34
      %s46 = scalar_select %p43, %s45, %s34
      %p47 = scmp.ge.s32.totalorder %s46, 1
      %s48 = scalar_select %p47, 0, %s46
      %s49 = sadd.s32 1, %s33
      %s50 = scalar_select %p47, %s49, %s33
      %p51 = scmp.ge.s32.totalorder %s50, 1
      %s52 = scalar_select %p51, 0, %s50
      %s53 = ssub.s32 %s33, %s52
      %p54 = scmp.eq.s32.totalorder %s53, 0
      %s56 = sadd.s32 %s55, 1
      %s57 = scalar_select %p54, %s55, %s56
      %p60 = pneg %p54
      %p61 = scmp.eq.s32.totalorder %s26, 3
      %p62 = por %p60, %p61
      %p63 = scmp.ne.s32.totalorder %s55, %s58
      %p64 = scmp.eq.s32.totalorder %s26, 0
      %p65 = por %p63, %p64
      %p66 = scmp.ne.s32.totalorder %s55, %s58
      %p67 = scmp.eq.s32.totalorder %s31, 3
      %p68 = por %p66, %p67
      %p69 = scmp.ne.s32.totalorder %s58, %s59
      %p70 = scmp.eq.s32.totalorder %s31, 0
      %p71 = por %p69, %p70
      %p72 = scmp.ne.s32.totalorder %s58, %s59
      %p73 = scmp.eq.s32.totalorder %s32, 3
      %p74 = por %p72, %p73
      %p76 = scmp.ne.s32.totalorder %s59, %s75
      %p77 = scmp.eq.s32.totalorder %s32, 0
      %p78 = por %p76, %p77
      %s79 = ssub.s32 %s33, %s52
      %p80 = scmp.eq.s32.totalorder %s79, 0
      %s82 = sadd.s32 %s81, 1
      %s83 = scalar_select %p80, %s81, %s82
      %p86 = pneg %p80
      %p87 = scmp.eq.s32.totalorder %s26, 3
      %p88 = por %p86, %p87
      %p89 = scmp.ne.s32.totalorder %s81, %s84
      %p90 = scmp.eq.s32.totalorder %s26, 0
      %p91 = por %p89, %p90
      %p92 = scmp.ne.s32.totalorder %s81, %s84
      %p93 = scmp.eq.s32.totalorder %s31, 3
      %p94 = por %p92, %p93
      %p95 = scmp.ne.s32.totalorder %s84, %s85
      %p96 = scmp.eq.s32.totalorder %s31, 0
      %p97 = por %p95, %p96
      %p98 = scmp.ne.s32.totalorder %s84, %s85
      %p99 = scmp.eq.s32.totalorder %s32, 3
      %p100 = por %p98, %p99
      %p102 = scmp.ne.s32.totalorder %s85, %s101
      %p103 = scmp.eq.s32.totalorder %s32, 0
      %p104 = por %p102, %p103
      %s106 = sadd.s32 %s105, 1
      %p109 = scmp.eq.s32.totalorder %s26, 3
      %p110 = scmp.ne.s32.totalorder %s105, %s107
      %p111 = scmp.eq.s32.totalorder %s26, 0
      %p112 = por %p110, %p111
      %p113 = scmp.ne.s32.totalorder %s105, %s107
      %p114 = scmp.eq.s32.totalorder %s31, 3
      %p115 = por %p113, %p114
      %p116 = scmp.ne.s32.totalorder %s107, %s108
      %p117 = scmp.eq.s32.totalorder %s31, 0
      %p118 = por %p116, %p117
      %p119 = scmp.ne.s32.totalorder %s107, %s108
      %p120 = scmp.eq.s32.totalorder %s32, 3
      %p121 = por %p119, %p120
      %p123 = scmp.ne.s32.totalorder %s108, %s122
      %p124 = scmp.eq.s32.totalorder %s32, 0
      %p125 = por %p123, %p124
      %s127 = sadd.s32 %s126, 1
      %p130 = scmp.eq.s32.totalorder %s26, 3
      %p131 = scmp.ne.s32.totalorder %s126, %s128
      %p132 = scmp.eq.s32.totalorder %s26, 0
      %p133 = por %p131, %p132
      %p134 = scmp.ne.s32.totalorder %s126, %s128
      %p135 = scmp.eq.s32.totalorder %s31, 3
      %p136 = por %p134, %p135
      %p137 = scmp.ne.s32.totalorder %s128, %s129
      %p138 = scmp.eq.s32.totalorder %s31, 0
      %p139 = por %p137, %p138
      %p140 = scmp.ne.s32.totalorder %s128, %s129
      %p141 = scmp.eq.s32.totalorder %s32, 3
      %p142 = por %p140, %p141
      %p144 = scmp.ne.s32.totalorder %s129, %s143
      %p145 = scmp.eq.s32.totalorder %s32, 0
      %p146 = por %p144, %p145
      %s148 = sadd.s32 %s147, 1
      %p151 = scmp.eq.s32.totalorder %s26, 3
      %p152 = scmp.ne.s32.totalorder %s147, %s149
      %p153 = scmp.eq.s32.totalorder %s26, 0
      %p154 = por %p152, %p153
      %p155 = scmp.ne.s32.totalorder %s147, %s149
      %p156 = scmp.eq.s32.totalorder %s31, 3
      %p157 = por %p155, %p156
      %p158 = scmp.ne.s32.totalorder %s149, %s150
      %p159 = scmp.eq.s32.totalorder %s31, 0
      %p160 = por %p158, %p159
      %p161 = scmp.ne.s32.totalorder %s149, %s150
      %p162 = scmp.eq.s32.totalorder %s32, 3
      %p163 = por %p161, %p162
      %p165 = scmp.ne.s32.totalorder %s150, %s164
      %p166 = scmp.eq.s32.totalorder %s32, 0
      %p167 = por %p165, %p166
      %s169 = sadd.s32 %s168, 1
      %p172 = scmp.eq.s32.totalorder %s26, 3
      %p173 = scmp.ne.s32.totalorder %s168, %s170
      %p174 = scmp.eq.s32.totalorder %s26, 0
      %p175 = por %p173, %p174
      %p176 = scmp.ne.s32.totalorder %s168, %s170
      %p177 = scmp.eq.s32.totalorder %s31, 3
      %p178 = por %p176, %p177
      %p179 = scmp.ne.s32.totalorder %s170, %s171
      %p180 = scmp.eq.s32.totalorder %s31, 0
      %p181 = por %p179, %p180
      %p182 = scmp.ne.s32.totalorder %s170, %s171
      %p183 = scmp.eq.s32.totalorder %s32, 3
      %p184 = por %p182, %p183
      %p186 = scmp.ne.s32.totalorder %s171, %s185
      %p187 = scmp.eq.s32.totalorder %s32, 0
      %p188 = por %p186, %p187
      %s190 = sadd.s32 %s189, 1
      %p193 = scmp.eq.s32.totalorder %s26, 3
      %p194 = scmp.ne.s32.totalorder %s189, %s191
      %p195 = scmp.eq.s32.totalorder %s26, 0
      %p196 = por %p194, %p195
      %p197 = scmp.ne.s32.totalorder %s189, %s191
      %p198 = scmp.eq.s32.totalorder %s31, 3
      %p199 = por %p197, %p198
      %p200 = scmp.ne.s32.totalorder %s191, %s192
      %p201 = scmp.eq.s32.totalorder %s31, 0
      %p202 = por %p200, %p201
      %p203 = scmp.ne.s32.totalorder %s191, %s192
      %p204 = scmp.eq.s32.totalorder %s32, 3
      %p205 = por %p203, %p204
      %p207 = scmp.ne.s32.totalorder %s192, %s206
      %p208 = scmp.eq.s32.totalorder %s32, 0
      %p209 = por %p207, %p208
      %s211 = sadd.s32 %s210, 1
      %p214 = scmp.eq.s32.totalorder %s26, 3
      %p215 = scmp.ne.s32.totalorder %s210, %s212
      %p216 = scmp.eq.s32.totalorder %s26, 0
      %p217 = por %p215, %p216
      %p218 = scmp.ne.s32.totalorder %s210, %s212
      %p219 = scmp.eq.s32.totalorder %s31, 3
      %p220 = por %p218, %p219
      %p221 = scmp.ne.s32.totalorder %s212, %s213
      %p222 = scmp.eq.s32.totalorder %s31, 0
      %p223 = por %p221, %p222
      %p224 = scmp.ne.s32.totalorder %s212, %s213
      %p225 = scmp.eq.s32.totalorder %s32, 3
      %p226 = por %p224, %p225
      %p228 = scmp.ne.s32.totalorder %s213, %s227
      %p229 = scmp.eq.s32.totalorder %s32, 0
      %p230 = por %p228, %p229
      %s232 = sadd.s32 %s231, 1
      %p235 = scmp.eq.s32.totalorder %s26, 3
      %p236 = scmp.ne.s32.totalorder %s231, %s233
      %p237 = scmp.eq.s32.totalorder %s26, 0
      %p238 = por %p236, %p237
      %p239 = scmp.ne.s32.totalorder %s231, %s233
      %p240 = scmp.eq.s32.totalorder %s31, 3
      %p241 = por %p239, %p240
      %p242 = scmp.ne.s32.totalorder %s233, %s234
      %p243 = scmp.eq.s32.totalorder %s31, 0
      %p244 = por %p242, %p243
      %p245 = scmp.ne.s32.totalorder %s233, %s234
      %p246 = scmp.eq.s32.totalorder %s32, 3
      %p247 = por %p245, %p246
      %p249 = scmp.ne.s32.totalorder %s234, %s248
      %p250 = scmp.eq.s32.totalorder %s32, 0
      %p251 = por %p249, %p250
      %s253 = sadd.s32 %s252, 1
      %p256 = scmp.eq.s32.totalorder %s26, 3
      %p257 = scmp.ne.s32.totalorder %s252, %s254
      %p258 = scmp.eq.s32.totalorder %s26, 0
      %p259 = por %p257, %p258
      %p260 = scmp.ne.s32.totalorder %s252, %s254
      %p261 = scmp.eq.s32.totalorder %s31, 3
      %p262 = por %p260, %p261
      %p263 = scmp.ne.s32.totalorder %s254, %s255
      %p264 = scmp.eq.s32.totalorder %s31, 0
      %p265 = por %p263, %p264
      %p266 = scmp.ne.s32.totalorder %s254, %s255
      %p267 = scmp.eq.s32.totalorder %s32, 3
      %p268 = por %p266, %p267
      %p270 = scmp.ne.s32.totalorder %s255, %s269
      %p271 = scmp.eq.s32.totalorder %s32, 0
      %p272 = por %p270, %p271
      %s274 = sadd.s32 %s273, 1
      %p277 = scmp.eq.s32.totalorder %s26, 3
      %p278 = scmp.ne.s32.totalorder %s273, %s275
      %p279 = scmp.eq.s32.totalorder %s26, 0
      %p280 = por %p278, %p279
      %p281 = scmp.ne.s32.totalorder %s273, %s275
      %p282 = scmp.eq.s32.totalorder %s31, 3
      %p283 = por %p281, %p282
      %p284 = scmp.ne.s32.totalorder %s275, %s276
      %p285 = scmp.eq.s32.totalorder %s31, 0
      %p286 = por %p284, %p285
      %p287 = scmp.ne.s32.totalorder %s275, %s276
      %p288 = scmp.eq.s32.totalorder %s32, 3
      %p289 = por %p287, %p288
      %p291 = scmp.ne.s32.totalorder %s276, %s290
      %p292 = scmp.eq.s32.totalorder %s32, 0
      %p293 = por %p291, %p292
      %s295 = sadd.s32 %s294, 1
      %p298 = scmp.eq.s32.totalorder %s26, 3
      %p299 = scmp.ne.s32.totalorder %s294, %s296
      %p300 = scmp.eq.s32.totalorder %s26, 0
      %p301 = por %p299, %p300
      %p302 = scmp.ne.s32.totalorder %s294, %s296
      %p303 = scmp.eq.s32.totalorder %s31, 3
      %p304 = por %p302, %p303
      %p305 = scmp.ne.s32.totalorder %s296, %s297
      %p306 = scmp.eq.s32.totalorder %s31, 0
      %p307 = por %p305, %p306
      %p308 = scmp.ne.s32.totalorder %s296, %s297
      %p309 = scmp.eq.s32.totalorder %s32, 3
      %p310 = por %p308, %p309
      %p312 = scmp.ne.s32.totalorder %s297, %s311
      %p313 = scmp.eq.s32.totalorder %s32, 0
      %p314 = por %p312, %p313
      %s315 = ssub.s32 %s34, %s48
      %p316 = scmp.eq.s32.totalorder %s315, 0
      %s318 = sadd.s32 %s317, 1
      %s319 = scalar_select %p316, %s317, %s318
      %p322 = pneg %p316
      %p323 = scmp.eq.s32.totalorder %s26, 3
      %p324 = por %p322, %p323
      %p325 = scmp.ne.s32.totalorder %s317, %s320
      %p326 = scmp.eq.s32.totalorder %s26, 0
      %p327 = por %p325, %p326
      %p328 = scmp.ne.s32.totalorder %s317, %s320
      %p329 = scmp.eq.s32.totalorder %s31, 3
      %p330 = por %p328, %p329
      %p331 = scmp.ne.s32.totalorder %s320, %s321
      %p332 = scmp.eq.s32.totalorder %s31, 0
      %p333 = por %p331, %p332
      %p334 = scmp.ne.s32.totalorder %s320, %s321
      %p335 = scmp.eq.s32.totalorder %s32, 3
      %p336 = por %p334, %p335
      %p338 = scmp.ne.s32.totalorder %s321, %s337
      %p339 = scmp.eq.s32.totalorder %s32, 0
      %p340 = por %p338, %p339
      %s341 = ssub.s32 %s34, %s48
      %p342 = scmp.eq.s32.totalorder %s341, 0
      %s344 = sadd.s32 %s343, 1
      %s345 = scalar_select %p342, %s343, %s344
      %p348 = pneg %p342
      %p349 = scmp.eq.s32.totalorder %s26, 3
      %p350 = por %p348, %p349
      %p351 = scmp.ne.s32.totalorder %s343, %s346
      %p352 = scmp.eq.s32.totalorder %s26, 0
      %p353 = por %p351, %p352
      %p354 = scmp.ne.s32.totalorder %s343, %s346
      %p355 = scmp.eq.s32.totalorder %s31, 3
      %p356 = por %p354, %p355
      %p357 = scmp.ne.s32.totalorder %s346, %s347
      %p358 = scmp.eq.s32.totalorder %s31, 0
      %p359 = por %p357, %p358
      %p360 = scmp.ne.s32.totalorder %s346, %s347
      %p361 = scmp.eq.s32.totalorder %s32, 3
      %p362 = por %p360, %p361
      %p364 = scmp.ne.s32.totalorder %s347, %s363
      %p365 = scmp.eq.s32.totalorder %s32, 0
      %p366 = por %p364, %p365
      %s367 = sadd.s32 %s35, %s34
      %s368 = sadd.s32 %s44, %s48
      %s369 = ssub.s32 %s33, %s52
      %s370 = ssub.s32 %s367, %s368
      %s371 = sor.u32 %s369, %s370
      %p372 = scmp.eq.s32.totalorder %s371, 0
      %s374 = sadd.s32 %s373, 1
      %s375 = scalar_select %p372, %s373, %s374
      %p378 = pneg %p372
      %p379 = scmp.eq.s32.totalorder %s26, 3
      %p380 = por %p378, %p379
      %p381 = scmp.ne.s32.totalorder %s373, %s376
      %p382 = scmp.eq.s32.totalorder %s26, 0
      %p383 = por %p381, %p382
      %p384 = scmp.ne.s32.totalorder %s373, %s376
      %p385 = scmp.eq.s32.totalorder %s31, 3
      %p386 = por %p384, %p385
      %p387 = scmp.ne.s32.totalorder %s376, %s377
      %p388 = scmp.eq.s32.totalorder %s31, 0
      %p389 = por %p387, %p388
      %p390 = scmp.ne.s32.totalorder %s376, %s377
      %p391 = scmp.eq.s32.totalorder %s32, 3
      %p392 = por %p390, %p391
      %p394 = scmp.ne.s32.totalorder %s377, %s393
      %p395 = scmp.eq.s32.totalorder %s32, 0
      %p396 = por %p394, %p395
      %p397 = scmp.le.s32.totalorder 1, %s26
      %p398 = scmp.lt.s32.totalorder %s26, 5
      %p399 = pnand %p397, %p398
      %p400 = pneg %p399
      // Predicated region
      $region9: #{tpu_custom_call.1} parent=5 // pred_check
        _
      $region10: #{tpu_custom_call.1} parent=5 // pred_check_branch
        %402 = sbr.rel (%p399) target = $region12
      $region11: #{tpu_custom_call.1} parent=5 // pred_region
        %s403 = ssub.s32 %s26, 1
        // Predicated region
        $region13: #{tpu_custom_call.1} parent=11 // pred_check
          %p404 = pneg %p71
        $region14: #{tpu_custom_call.1} parent=11 // pred_check_branch
          %406 = sbr.rel (%p404) target = $region16
        $region15: #{tpu_custom_call.1} parent=11 // pred_region
          %s407 = smul.u32 16, %s36
          %p408 = scmp.lt.s32.totalorder %s407, 15
          %s409 = scalar_select %p408, %s407, 15
          %s410 = smul.addr %s409, 4
          %s411 = scalar_lea.vmem %s0, %s410
          %s412 = smul.u32 16, %s36
        $region16: #{tpu_custom_call.1} parent=11 // pred_fallthru
          _
        // Predicated region
        $region17: #{tpu_custom_call.1} parent=11 // pred_check
          %p413 = pneg %p97
        $region18: #{tpu_custom_call.1} parent=11 // pred_check_branch
          %415 = sbr.rel (%p413) target = $region20
        $region19: #{tpu_custom_call.1} parent=11 // pred_region
          %s416 = smul.u32 16, %s36
          %p417 = scmp.lt.s32.totalorder %s416, 15
          %s418 = scalar_select %p417, %s416, 15
          %s419 = smul.addr %s418, 4
          %s420 = scalar_lea.vmem %s1, %s419
          %s421 = smul.u32 16, %s36
        $region20: #{tpu_custom_call.1} parent=11 // pred_fallthru
          _
        // Predicated region
        $region21: #{tpu_custom_call.1} parent=11 // pred_check
          %p422 = pneg %p118
        $region22: #{tpu_custom_call.1} parent=11 // pred_check_branch
          %424 = sbr.rel (%p422) target = $region24
        $region23: #{tpu_custom_call.1} parent=11 // pred_region
          _
        $region24: #{tpu_custom_call.1} parent=11 // pred_fallthru
          _
        // Predicated region
        $region25: #{tpu_custom_call.1} parent=11 // pred_check
          %p425 = pneg %p139
        $region26: #{tpu_custom_call.1} parent=11 // pred_check_branch
          %427 = sbr.rel (%p425) target = $region28
        $region27: #{tpu_custom_call.1} parent=11 // pred_region
          _
        $region28: #{tpu_custom_call.1} parent=11 // pred_fallthru
          _
        // Predicated region
        $region29: #{tpu_custom_call.1} parent=11 // pred_check
          %p428 = pneg %p160
        $region30: #{tpu_custom_call.1} parent=11 // pred_check_branch
          %430 = sbr.rel (%p428) target = $region32
        $region31: #{tpu_custom_call.1} parent=11 // pred_region
          %s432 = ssub.s32 1024, 1024
          %433 = vsyncadd [#allocation4], %s432
          %s434 = sshll.u32 [#allocation3], 4
          %s435 = int_to_ptr.vmem [resolvable:$true] %s434
          %440 = dma.hbm_to_vmem [thread:$0]  %s4, 1024, %s435, [#allocation4], 64, 64, 4
        $region32: #{tpu_custom_call.1} parent=11 // pred_fallthru
          _
        // Predicated region
        $region33: #{tpu_custom_call.1} parent=11 // pred_check
          %p441 = pneg %p181
        $region34: #{tpu_custom_call.1} parent=11 // pred_check_branch
          %443 = sbr.rel (%p441) target = $region36
        $region35: #{tpu_custom_call.1} parent=11 // pred_region
          _
        $region36: #{tpu_custom_call.1} parent=11 // pred_fallthru
          _
        // Predicated region
        $region37: #{tpu_custom_call.1} parent=11 // pred_check
          %p444 = pneg %p202
        $region38: #{tpu_custom_call.1} parent=11 // pred_check_branch
          %446 = sbr.rel (%p444) target = $region40
        $region39: #{tpu_custom_call.1} parent=11 // pred_region
          %s448 = ssub.s32 1024, 1024
          %449 = vsyncadd [#allocation7], %s448
          %s450 = sshll.u32 [#allocation6], 4
          %s451 = int_to_ptr.vmem [resolvable:$true] %s450
          %456 = dma.hbm_to_vmem [thread:$0]  %s6, 1024, %s451, [#allocation7], 64, 64, 4
        $region40: #{tpu_custom_call.1} parent=11 // pred_fallthru
          _
        // Predicated region
        $region41: #{tpu_custom_call.1} parent=11 // pred_check
          %p457 = pneg %p223
        $region42: #{tpu_custom_call.1} parent=11 // pred_check_branch
          %459 = sbr.rel (%p457) target = $region44
        $region43: #{tpu_custom_call.1} parent=11 // pred_region
          _
        $region44: #{tpu_custom_call.1} parent=11 // pred_fallthru
          _
        // Predicated region
        $region45: #{tpu_custom_call.1} parent=11 // pred_check
          %p460 = pneg %p244
        $region46: #{tpu_custom_call.1} parent=11 // pred_check_branch
          %462 = sbr.rel (%p460) target = $region48
        $region47: #{tpu_custom_call.1} parent=11 // pred_region
          %s464 = ssub.s32 1024, 1024
          %465 = vsyncadd [#allocation7], %s464
          %s466 = sshll.u32 [#allocation8], 4
          %s467 = int_to_ptr.vmem [resolvable:$true] %s466
          %472 = dma.hbm_to_vmem [thread:$0]  %s8, 1024, %s467, [#allocation7], 64, 64, 4
        $region48: #{tpu_custom_call.1} parent=11 // pred_fallthru
          _
        // Predicated region
        $region49: #{tpu_custom_call.1} parent=11 // pred_check
          %p473 = pneg %p265
        $region50: #{tpu_custom_call.1} parent=11 // pred_check_branch
          %475 = sbr.rel (%p473) target = $region52
        $region51: #{tpu_custom_call.1} parent=11 // pred_region
          _
        $region52: #{tpu_custom_call.1} parent=11 // pred_fallthru
          _
        // Predicated region
        $region53: #{tpu_custom_call.1} parent=11 // pred_check
          %p476 = pneg %p286
        $region54: #{tpu_custom_call.1} parent=11 // pred_check_branch
          %478 = sbr.rel (%p476) target = $region56
        $region55: #{tpu_custom_call.1} parent=11 // pred_region
          %s480 = ssub.s32 1024, 1024
          %481 = vsyncadd [#allocation10], %s480
          %s482 = sshll.u32 [#allocation9], 4
          %s483 = int_to_ptr.vmem [resolvable:$true] %s482
          %488 = dma.hbm_to_vmem [thread:$0]  %s10, 1024, %s483, [#allocation10], 64, 64, 4
        $region56: #{tpu_custom_call.1} parent=11 // pred_fallthru
          _
        // Predicated region
        $region57: #{tpu_custom_call.1} parent=11 // pred_check
          %p489 = pneg %p307
        $region58: #{tpu_custom_call.1} parent=11 // pred_check_branch
          %491 = sbr.rel (%p489) target = $region60
        $region59: #{tpu_custom_call.1} parent=11 // pred_region
          _
        $region60: #{tpu_custom_call.1} parent=11 // pred_fallthru
          _
        // Predicated region
        $region61: #{tpu_custom_call.1} parent=11 // pred_check
          %p492 = pneg %p333
        $region62: #{tpu_custom_call.1} parent=11 // pred_check_branch
          %494 = sbr.rel (%p492) target = $region64
        $region63: #{tpu_custom_call.1} parent=11 // pred_region
          %p495 = scmp.lt.s32.totalorder %s37, 0
          %s496 = scalar_select %p495, %s37, 0
          %s497 = smul.addr %s496, 4
          %s498 = scalar_lea.vmem %s12, %s497
        $region64: #{tpu_custom_call.1} parent=11 // pred_fallthru
          _
        // Predicated region
        $region65: #{tpu_custom_call.1} parent=11 // pred_check
          %p499 = pneg %p359
        $region66: #{tpu_custom_call.1} parent=11 // pred_check_branch
          %501 = sbr.rel (%p499) target = $region68
        $region67: #{tpu_custom_call.1} parent=11 // pred_region
          %p502 = scmp.lt.s32.totalorder %s37, 0
          %s503 = scalar_select %p502, %s37, 0
          %s504 = scalar_lea.vmem %s13, %s503
        $region68: #{tpu_custom_call.1} parent=11 // pred_fallthru
          _
      $region12: #{tpu_custom_call.1} parent=5 // pred_fallthru
        _
      %p505 = scmp.lt.s32.totalorder %s26, 4
      // Predicated region
      $region69: #{tpu_custom_call.1} parent=5 // pred_check
        %p506 = pneg %p505
      $region70: #{tpu_custom_call.1} parent=5 // pred_check_branch
        %508 = sbr.rel (%p506) target = $region72
      $region71: #{tpu_custom_call.1} parent=5 // pred_region
        _
      $region72: #{tpu_custom_call.1} parent=5 // pred_fallthru
        _
      %p509 = scmp.le.s32.totalorder 1, %s26
      %p510 = scmp.lt.s32.totalorder %s26, 5
      %p511 = pnand %p509, %p510
      %p512 = pneg %p511
      // Predicated region
      $region73: #{tpu_custom_call.1} parent=5 // pred_check
        _
      $region74: #{tpu_custom_call.1} parent=5 // pred_check_branch
        %514 = sbr.rel (%p511) target = $region76
      $region75: #{tpu_custom_call.1} parent=5 // pred_region
        %s515 = ssub.s32 %s26, 1
        // Predicated region
        $region77: #{tpu_custom_call.1} parent=75 // pred_check
          %p516 = pneg %p160
        $region78: #{tpu_custom_call.1} parent=75 // pred_check_branch
          %518 = sbr.rel (%p516) target = $region80
        $region79: #{tpu_custom_call.1} parent=75 // pred_region
          %519 = dma.done [#allocation4], 1024
        $region80: #{tpu_custom_call.1} parent=75 // pred_fallthru
          _
        // Predicated region
        $region81: #{tpu_custom_call.1} parent=75 // pred_check
          %p520 = pneg %p202
        $region82: #{tpu_custom_call.1} parent=75 // pred_check_branch
          %522 = sbr.rel (%p520) target = $region84
        $region83: #{tpu_custom_call.1} parent=75 // pred_region
          %523 = dma.done [#allocation7], 1024
        $region84: #{tpu_custom_call.1} parent=75 // pred_fallthru
          _
        // Predicated region
        $region85: #{tpu_custom_call.1} parent=75 // pred_check
          %p524 = pneg %p244
        $region86: #{tpu_custom_call.1} parent=75 // pred_check_branch
          %526 = sbr.rel (%p524) target = $region88
        $region87: #{tpu_custom_call.1} parent=75 // pred_region
          %527 = dma.done [#allocation7], 1024
        $region88: #{tpu_custom_call.1} parent=75 // pred_fallthru
          _
        // Predicated region
        $region89: #{tpu_custom_call.1} parent=75 // pred_check
          %p528 = pneg %p286
        $region90: #{tpu_custom_call.1} parent=75 // pred_check_branch
          %530 = sbr.rel (%p528) target = $region92
        $region91: #{tpu_custom_call.1} parent=75 // pred_region
          %531 = dma.done [#allocation10], 1024
        $region92: #{tpu_custom_call.1} parent=75 // pred_fallthru
          _
        %s532 = smul.u32 16, %s36
        %p533 = scmp.lt.s32.totalorder %s532, 15
        %s534 = scalar_select %p533, %s532, 15
        %s535 = smul.addr %s534, 4
        %s536 = scalar_lea.vmem %s0, %s535
        %p537 = pneg %p71
        %p538 = pneg %p68
        %s539 = smul.u32 16, %s36
        %p540 = scmp.lt.s32.totalorder %s539, 15
        %s541 = scalar_select %p540, %s539, 15
        %s542 = smul.addr %s541, 4
        %s543 = scalar_lea.vmem %s1, %s542
        %p544 = pneg %p97
        %p545 = pneg %p94
        %p546 = pneg %p118
        %p547 = pneg %p115
        %p548 = pneg %p139
        %p549 = pneg %p136
        %p550 = pneg %p160
        %p551 = pneg %p157
        %p552 = pneg %p181
        %p553 = pneg %p178
        %p554 = pneg %p202
        %p555 = pneg %p199
        %p556 = pneg %p223
        %p557 = pneg %p220
        %p558 = pneg %p244
        %p559 = pneg %p241
        %p560 = pneg %p265
        %p561 = pneg %p262
        %p562 = pneg %p286
        %p563 = pneg %p283
        %p564 = pneg %p307
        %p565 = pneg %p304
        %p566 = scmp.lt.s32.totalorder %s37, 0
        %s567 = scalar_select %p566, %s37, 0
        %s568 = smul.addr %s567, 4
        %s569 = scalar_lea.vmem %s12, %s568
        %p570 = pneg %p333
        %p571 = pneg %p330
        %p572 = scmp.lt.s32.totalorder %s37, 0
        %s573 = scalar_select %p572, %s37, 0
        %s574 = scalar_lea.vmem %s13, %s573
        %p575 = pneg %p359
        %p576 = pneg %p356
        %p577 = pneg %p389
        %p578 = pneg %p386
        %s579 = sand.u32 %s376, 1
        %s580 = scalar_lea.sflag [#allocation5], %s579
        %s581 = sand.u32 %s376, 1
        %s582 = smul.addr %s581, 64
        %s583 = scalar_lea.vmem [#allocation11], %s582
        %s584 = smul.u32 16, %s36
        %p585 = scmp.lt.s32.totalorder %s584, 15
        %s586 = scalar_select %p585, %s584, 15
        %s587 = smul.addr %s586, 4
        %s588 = scalar_lea.vmem %s0, %s587
        %s589 = smul.u32 16, %s36
        %s590 = smul.u32 16, %s36
        %p591 = scmp.lt.s32.totalorder %s590, 15
        %s592 = scalar_select %p591, %s590, 15
        %s593 = smul.addr %s592, 4
        %s594 = scalar_lea.vmem %s1, %s593
        %s595 = smul.u32 16, %s36
        %p596 = scmp.lt.s32.totalorder %s37, 0
        %s597 = scalar_select %p596, %s37, 0
        %s598 = smul.addr %s597, 4
        %s599 = scalar_lea.vmem %s12, %s598
        %p600 = scmp.lt.s32.totalorder %s37, 0
        %s601 = scalar_select %p600, %s37, 0
        %s602 = scalar_lea.vmem %s13, %s601
        %s603 = sadd.s32 %s38, %s37
        %s604 = smul.u32 16, %s36
        %p606 = scmp.eq.s32.totalorder %s37, 0
        %p607 = scmp.eq.s32.totalorder %s38, 0
        %p608 = pnand %p606, %p607
        %p609 = pneg %p608
        // Predicated region
        $region93: #{tpu_custom_call.1} parent=75 // pred_check
          _
        $region94: #{tpu_custom_call.1} parent=75 // pred_check_branch
          %611 = sbr.rel (%p608) target = $region96
        $region95: #{tpu_custom_call.1} parent=75 // pred_region
          %v612 = vld [vmem:[%s588] sm:$0xf]
          %v613 = vld [vmem:[%s588 + $0x4] sm:$0xf]
          %v614 = vld [vmem:[%s588 + $0x8] sm:$0xf]
          %v615 = vld [vmem:[%s588 + $0xc] sm:$0xf]
          %v616 = vld [vmem:[%s588 + $0x10] sm:$0xf]
          %v617 = vld [vmem:[%s588 + $0x14] sm:$0xf]
          %v618 = vld [vmem:[%s588 + $0x18] sm:$0xf]
          %v619 = vld [vmem:[%s588 + $0x1c] sm:$0xf]
          %v620 = vld [vmem:[%s588 + $0x20] sm:$0xf]
          %v621 = vld [vmem:[%s588 + $0x24] sm:$0xf]
          %v622 = vld [vmem:[%s588 + $0x28] sm:$0xf]
          %v623 = vld [vmem:[%s588 + $0x2c] sm:$0xf]
          %v624 = vld [vmem:[%s588 + $0x30] sm:$0xf]
          %v625 = vld [vmem:[%s588 + $0x34] sm:$0xf]
          %v626 = vld [vmem:[%s588 + $0x38] sm:$0xf]
          %v627 = vld [vmem:[%s588 + $0x3c] sm:$0xf]
          %v628 = vunpack.c.l.bf16 %v612
          %v629 = vunpack.c.l.bf16 %v613
          %v630 = vunpack.c.l.bf16 %v614
          %v631 = vunpack.c.l.bf16 %v615
          %v632 = vunpack.c.l.bf16 %v616
          %v633 = vunpack.c.l.bf16 %v617
          %v634 = vunpack.c.l.bf16 %v618
          %v635 = vunpack.c.l.bf16 %v619
          %v636 = vunpack.c.l.bf16 %v620
          %v637 = vunpack.c.l.bf16 %v621
          %v638 = vunpack.c.l.bf16 %v622
          %v639 = vunpack.c.l.bf16 %v623
          %v640 = vunpack.c.l.bf16 %v624
          %v641 = vunpack.c.l.bf16 %v625
          %v642 = vunpack.c.l.bf16 %v626
          %v643 = vunpack.c.l.bf16 %v627
          %v644 = vmul.f32 %v628, 0.5
          %v645 = vmul.f32 %v629, 0.5
          %v646 = vmul.f32 %v630, 0.5
          %v647 = vmul.f32 %v631, 0.5
          %v648 = vmul.f32 %v632, 0.5
          %v649 = vmul.f32 %v633, 0.5
          %v650 = vmul.f32 %v634, 0.5
          %v651 = vmul.f32 %v635, 0.5
          %v652 = vmul.f32 %v636, 0.5
          %v653 = vmul.f32 %v637, 0.5
          %v654 = vmul.f32 %v638, 0.5
          %v655 = vmul.f32 %v639, 0.5
          %v656 = vmul.f32 %v640, 0.5
          %v657 = vmul.f32 %v641, 0.5
          %v658 = vmul.f32 %v642, 0.5
          %v659 = vmul.f32 %v643, 0.5
          %v660 = vmul.f32 %v628, 0.044715
          %v661 = vmul.f32 %v629, 0.044715
          %v662 = vmul.f32 %v630, 0.044715
          %v663 = vmul.f32 %v631, 0.044715
          %v664 = vmul.f32 %v632, 0.044715
          %v665 = vmul.f32 %v633, 0.044715
          %v666 = vmul.f32 %v634, 0.044715
          %v667 = vmul.f32 %v635, 0.044715
          %v668 = vmul.f32 %v636, 0.044715
          %v669 = vmul.f32 %v637, 0.044715
          %v670 = vmul.f32 %v638, 0.044715
          %v671 = vmul.f32 %v639, 0.044715
          %v672 = vmul.f32 %v640, 0.044715
          %v673 = vmul.f32 %v641, 0.044715
          %v674 = vmul.f32 %v642, 0.044715
          %v675 = vmul.f32 %v643, 0.044715
          %v676 = vmul.f32 %v660, %v628
          %v677 = vmul.f32 %v661, %v629
          %v678 = vmul.f32 %v662, %v630
          %v679 = vmul.f32 %v663, %v631
          %v680 = vmul.f32 %v664, %v632
          %v681 = vmul.f32 %v665, %v633
          %v682 = vmul.f32 %v666, %v634
          %v683 = vmul.f32 %v667, %v635
          %v684 = vmul.f32 %v668, %v636
          %v685 = vmul.f32 %v669, %v637
          %v686 = vmul.f32 %v670, %v638
          %v687 = vmul.f32 %v671, %v639
          %v688 = vmul.f32 %v672, %v640
          %v689 = vmul.f32 %v673, %v641
          %v690 = vmul.f32 %v674, %v642
          %v691 = vmul.f32 %v675, %v643
          %v692 = vmul.f32 %v676, %v628
          %v693 = vmul.f32 %v677, %v629
          %v694 = vmul.f32 %v678, %v630
          %v695 = vmul.f32 %v679, %v631
          %v696 = vmul.f32 %v680, %v632
          %v697 = vmul.f32 %v681, %v633
          %v698 = vmul.f32 %v682, %v634
          %v699 = vmul.f32 %v683, %v635
          %v700 = vmul.f32 %v684, %v636
          %v701 = vmul.f32 %v685, %v637
          %v702 = vmul.f32 %v686, %v638
          %v703 = vmul.f32 %v687, %v639
          %v704 = vmul.f32 %v688, %v640
          %v705 = vmul.f32 %v689, %v641
          %v706 = vmul.f32 %v690, %v642
          %v707 = vmul.f32 %v691, %v643
          %v708 = vadd.f32 %v628, %v692
          %v709 = vadd.f32 %v629, %v693
          %v710 = vadd.f32 %v630, %v694
          %v711 = vadd.f32 %v631, %v695
          %v712 = vadd.f32 %v632, %v696
          %v713 = vadd.f32 %v633, %v697
          %v714 = vadd.f32 %v634, %v698
          %v715 = vadd.f32 %v635, %v699
          %v716 = vadd.f32 %v636, %v700
          %v717 = vadd.f32 %v637, %v701
          %v718 = vadd.f32 %v638, %v702
          %v719 = vadd.f32 %v639, %v703
          %v720 = vadd.f32 %v640, %v704
          %v721 = vadd.f32 %v641, %v705
          %v722 = vadd.f32 %v642, %v706
          %v723 = vadd.f32 %v643, %v707
          %v724 = vmul.f32 %v708, 0.7978846
          %v725 = vmul.f32 %v709, 0.7978846
          %v726 = vmul.f32 %v710, 0.7978846
          %v727 = vmul.f32 %v711, 0.7978846
          %v728 = vmul.f32 %v712, 0.7978846
          %v729 = vmul.f32 %v713, 0.7978846
          %v730 = vmul.f32 %v714, 0.7978846
          %v731 = vmul.f32 %v715, 0.7978846
          %v732 = vmul.f32 %v716, 0.7978846
          %v733 = vmul.f32 %v717, 0.7978846
          %v734 = vmul.f32 %v718, 0.7978846
          %v735 = vmul.f32 %v719, 0.7978846
          %v736 = vmul.f32 %v720, 0.7978846
          %v737 = vmul.f32 %v721, 0.7978846
          %v738 = vmul.f32 %v722, 0.7978846
          %v739 = vmul.f32 %v723, 0.7978846
          %v740 = vtanh.pop %v724
          %v741 = vtanh.pop %v725
          %v742 = vtanh.pop %v726
          %v743 = vtanh.pop %v727
          %v744 = vtanh.pop %v728
          %v745 = vtanh.pop %v729
          %v746 = vtanh.pop %v730
          %v747 = vtanh.pop %v731
          %v748 = vtanh.pop %v732
          %v749 = vtanh.pop %v733
          %v750 = vtanh.pop %v734
          %v751 = vtanh.pop %v735
          %v752 = vtanh.pop %v736
          %v753 = vtanh.pop %v737
          %v754 = vtanh.pop %v738
          %v755 = vtanh.pop %v739
          %v756 = vadd.f32 %v740, 1.0
          %v757 = vadd.f32 %v741, 1.0
          %v758 = vadd.f32 %v742, 1.0
          %v759 = vadd.f32 %v743, 1.0
          %v760 = vadd.f32 %v744, 1.0
          %v761 = vadd.f32 %v745, 1.0
          %v762 = vadd.f32 %v746, 1.0
          %v763 = vadd.f32 %v747, 1.0
          %v764 = vadd.f32 %v748, 1.0
          %v765 = vadd.f32 %v749, 1.0
          %v766 = vadd.f32 %v750, 1.0
          %v767 = vadd.f32 %v751, 1.0
          %v768 = vadd.f32 %v752, 1.0
          %v769 = vadd.f32 %v753, 1.0
          %v770 = vadd.f32 %v754, 1.0
          %v771 = vadd.f32 %v755, 1.0
          %v772 = vmul.f32 %v644, %v756
          %v773 = vmul.f32 %v645, %v757
          %v774 = vmul.f32 %v646, %v758
          %v775 = vmul.f32 %v647, %v759
          %v776 = vmul.f32 %v648, %v760
          %v777 = vmul.f32 %v649, %v761
          %v778 = vmul.f32 %v650, %v762
          %v779 = vmul.f32 %v651, %v763
          %v780 = vmul.f32 %v652, %v764
          %v781 = vmul.f32 %v653, %v765
          %v782 = vmul.f32 %v654, %v766
          %v783 = vmul.f32 %v655, %v767
          %v784 = vmul.f32 %v656, %v768
          %v785 = vmul.f32 %v657, %v769
          %v786 = vmul.f32 %v658, %v770
          %v787 = vmul.f32 %v659, %v771
          %v788 = vpack.c.bf16 %v773, %v772
          %v789 = vpack.c.bf16 %v775, %v774
          %v790 = vpack.c.bf16 %v777, %v776
          %v791 = vpack.c.bf16 %v779, %v778
          %v792 = vpack.c.bf16 %v781, %v780
          %v793 = vpack.c.bf16 %v783, %v782
          %v794 = vpack.c.bf16 %v785, %v784
          %v795 = vpack.c.bf16 %v787, %v786
          %v796 = vld [vmem:[%s2] sm:$0xf]
          %v797 = vld [vmem:[%s2 + $0x4] sm:$0xf]
          %v798 = vld [vmem:[%s2 + $0x8] sm:$0xf]
          %v799 = vld [vmem:[%s2 + $0xc] sm:$0xf]
          %v800 = vld [vmem:[%s3] sm:$0x1]
          %v802 = vlaneseq
          %v803 = vshrl.u32 %v802, 7
          %v804 = vsub.s32 0, %v803
          %v805 = vrot.slane %v800, %v804
          %v811 = vunpack.c.l.b16 %v796
          %v812 = vunpack.c.l.b16 %v797
          %v813 = vunpack.c.l.b16 %v798
          %v814 = vunpack.c.l.b16 %v799
          %v815 = vpack.c.b16 %v812, %v811
          %v816 = vpack.c.b16 %v814, %v813
          %vm819 = vcmask 261120
          %v821 = vsel %vm819, %v788, 0
          %v824 = vsel %vm819, %v789, 0
          %v827 = vsel %vm819, %v790, 0
          %v830 = vsel %vm819, %v791, 0
          %v833 = vsel %vm819, %v792, 0
          %v836 = vsel %vm819, %v793, 0
          %v839 = vsel %vm819, %v794, 0
          %v842 = vsel %vm819, %v795, 0
          %844 = vmatprep.subr.bf16.mxu0 0
          %845 = vmatpush1.bf16.msra.mxu0 %v815
          %846 = vmatprep.subr.bf16.mxu0 0
          %847 = vmatpush1.bf16.msra.mxu0 %v816
          %848 = vmatprep.subr.bf16.mxu0 0
          %849 = vmatpush1.bf16.msra.mxu0 0
          %850 = vmatprep.subr.bf16.mxu0 0
          %851 = vmatpush1.bf16.msra.mxu0 0
          %852 = vmatprep.subr.bf16.mxu0 0
          %853 = vmatpush1.bf16.msra.mxu0 0
          %854 = vmatprep.subr.bf16.mxu0 0
          %855 = vmatpush1.bf16.msra.mxu0 0
          %856 = vmatprep.subr.bf16.mxu0 0
          %857 = vmatpush1.bf16.msra.mxu0 0
          %858 = vmatprep.subr.bf16.mxu0 0
          %859 = vmatpush1.bf16.msra.mxu0 0
          %860 = vmatprep.subr.bf16.mxu0 0
          %861 = vmatpush1.bf16.msra.mxu0 0
          %862 = vmatprep.subr.bf16.mxu0 0
          %863 = vmatpush1.bf16.msra.mxu0 0
          %864 = vmatprep.subr.bf16.mxu0 0
          %865 = vmatpush1.bf16.msra.mxu0 0
          %866 = vmatprep.subr.bf16.mxu0 0
          %867 = vmatpush1.bf16.msra.mxu0 0
          %868 = vmatprep.subr.bf16.mxu0 0
          %869 = vmatpush1.bf16.msra.mxu0 0
          %870 = vmatprep.subr.bf16.mxu0 0
          %871 = vmatpush1.bf16.msra.mxu0 0
          %872 = vmatprep.subr.bf16.mxu0 0
          %873 = vmatpush1.bf16.msra.mxu0 0
          %874 = vmatprep.subr.bf16.mxu0 0
          %875 = vmatpush1.bf16.msra.mxu0 0
          %876 = vmatprep.mubr.bf16.mxu0 0
          %877 = vmatmul.mubr.bf16.gmra.mrb[0].mxu0 %v821
          %v878 = vpop.f32.mrb[0].mxu0
          %v879 = vadd.f32 %v805, %v878
          %v880 = vpop.f32.mrb[0].mxu0
          %v881 = vpop.f32.mrb[0].mxu0
          %v882 = vadd.f32 %v805, %v881
          %v883 = vpop.f32.mrb[0].mxu0
          %884 = vmatprep.mubr.bf16.mxu0 0
          %885 = vmatmul.mubr.bf16.gmra.mrb[0].mxu0 %v824
          %v886 = vpop.f32.mrb[0].mxu0
          %v887 = vadd.f32 %v805, %v886
          %v888 = vpop.f32.mrb[0].mxu0
          %v889 = vpop.f32.mrb[0].mxu0
          %v890 = vadd.f32 %v805, %v889
          %v891 = vpop.f32.mrb[0].mxu0
          %892 = vmatprep.mubr.bf16.mxu0 0
          %893 = vmatmul.mubr.bf16.gmra.mrb[0].mxu0 %v827
          %v894 = vpop.f32.mrb[0].mxu0
          %v895 = vadd.f32 %v805, %v894
          %v896 = vpop.f32.mrb[0].mxu0
          %v897 = vpop.f32.mrb[0].mxu0
          %v898 = vadd.f32 %v805, %v897
          %v899 = vpop.f32.mrb[0].mxu0
          %900 = vmatprep.mubr.bf16.mxu0 0
          %901 = vmatmul.mubr.bf16.gmra.mrb[0].mxu0 %v830
          %v902 = vpop.f32.mrb[0].mxu0
          %v903 = vadd.f32 %v805, %v902
          %v904 = vpop.f32.mrb[0].mxu0
          %v905 = vpop.f32.mrb[0].mxu0
          %v906 = vadd.f32 %v805, %v905
          %v907 = vpop.f32.mrb[0].mxu0
          %908 = vmatprep.mubr.bf16.mxu0 0
          %909 = vmatmul.mubr.bf16.gmra.mrb[0].mxu0 %v833
          %v910 = vpop.f32.mrb[0].mxu0
          %v911 = vadd.f32 %v805, %v910
          %v912 = vpop.f32.mrb[0].mxu0
          %v913 = vpop.f32.mrb[0].mxu0
          %v914 = vadd.f32 %v805, %v913
          %v915 = vpop.f32.mrb[0].mxu0
          %916 = vmatprep.mubr.bf16.mxu0 0
          %917 = vmatmul.mubr.bf16.gmra.mrb[0].mxu0 %v836
          %v918 = vpop.f32.mrb[0].mxu0
          %v919 = vadd.f32 %v805, %v918
          %v920 = vpop.f32.mrb[0].mxu0
          %v921 = vpop.f32.mrb[0].mxu0
          %v922 = vadd.f32 %v805, %v921
          %v923 = vpop.f32.mrb[0].mxu0
          %924 = vmatprep.mubr.bf16.mxu0 0
          %925 = vmatmul.mubr.bf16.gmra.mrb[0].mxu0 %v839
          %v926 = vpop.f32.mrb[0].mxu0
          %v927 = vadd.f32 %v805, %v926
          %v928 = vpop.f32.mrb[0].mxu0
          %v929 = vpop.f32.mrb[0].mxu0
          %v930 = vadd.f32 %v805, %v929
          %v931 = vpop.f32.mrb[0].mxu0
          %932 = vmatprep.mubr.bf16.mxu0 0
          %933 = vmatmul.mubr.bf16.gmra.mrb[0].mxu0 %v842
          %v934 = vpop.f32.mrb[0].mxu0
          %v935 = vadd.f32 %v805, %v934
          %v936 = vpop.f32.mrb[0].mxu0
          %v937 = vpop.f32.mrb[0].mxu0
          %v938 = vadd.f32 %v805, %v937
          %v939 = vpop.f32.mrb[0].mxu0
          %940 = vdwg.mxu0
          %v941 = vmul.f32 %v879, 0.5
          %v942 = vmul.f32 %v882, 0.5
          %v943 = vmul.f32 %v887, 0.5
          %v944 = vmul.f32 %v890, 0.5
          %v945 = vmul.f32 %v895, 0.5
          %v946 = vmul.f32 %v898, 0.5
          %v947 = vmul.f32 %v903, 0.5
          %v948 = vmul.f32 %v906, 0.5
          %v949 = vmul.f32 %v911, 0.5
          %v950 = vmul.f32 %v914, 0.5
          %v951 = vmul.f32 %v919, 0.5
          %v952 = vmul.f32 %v922, 0.5
          %v953 = vmul.f32 %v927, 0.5
          %v954 = vmul.f32 %v930, 0.5
          %v955 = vmul.f32 %v935, 0.5
          %v956 = vmul.f32 %v938, 0.5
          %v957 = vmul.f32 %v879, 0.044715
          %v958 = vmul.f32 %v882, 0.044715
          %v959 = vmul.f32 %v887, 0.044715
          %v960 = vmul.f32 %v890, 0.044715
          %v961 = vmul.f32 %v895, 0.044715
          %v962 = vmul.f32 %v898, 0.044715
          %v963 = vmul.f32 %v903, 0.044715
          %v964 = vmul.f32 %v906, 0.044715
          %v965 = vmul.f32 %v911, 0.044715
          %v966 = vmul.f32 %v914, 0.044715
          %v967 = vmul.f32 %v919, 0.044715
          %v968 = vmul.f32 %v922, 0.044715
          %v969 = vmul.f32 %v927, 0.044715
          %v970 = vmul.f32 %v930, 0.044715
          %v971 = vmul.f32 %v935, 0.044715
          %v972 = vmul.f32 %v938, 0.044715
          %v973 = vmul.f32 %v957, %v879
          %v974 = vmul.f32 %v958, %v882
          %v975 = vmul.f32 %v959, %v887
          %v976 = vmul.f32 %v960, %v890
          %v977 = vmul.f32 %v961, %v895
          %v978 = vmul.f32 %v962, %v898
          %v979 = vmul.f32 %v963, %v903
          %v980 = vmul.f32 %v964, %v906
          %v981 = vmul.f32 %v965, %v911
          %v982 = vmul.f32 %v966, %v914
          %v983 = vmul.f32 %v967, %v919
          %v984 = vmul.f32 %v968, %v922
          %v985 = vmul.f32 %v969, %v927
          %v986 = vmul.f32 %v970, %v930
          %v987 = vmul.f32 %v971, %v935
          %v988 = vmul.f32 %v972, %v938
          %v989 = vmul.f32 %v973, %v879
          %v990 = vmul.f32 %v974, %v882
          %v991 = vmul.f32 %v975, %v887
          %v992 = vmul.f32 %v976, %v890
          %v993 = vmul.f32 %v977, %v895
          %v994 = vmul.f32 %v978, %v898
          %v995 = vmul.f32 %v979, %v903
          %v996 = vmul.f32 %v980, %v906
          %v997 = vmul.f32 %v981, %v911
          %v998 = vmul.f32 %v982, %v914
          %v999 = vmul.f32 %v983, %v919
          %v1000 = vmul.f32 %v984, %v922
          %v1001 = vmul.f32 %v985, %v927
          %v1002 = vmul.f32 %v986, %v930
          %v1003 = vmul.f32 %v987, %v935
          %v1004 = vmul.f32 %v988, %v938
          %v1005 = vadd.f32 %v879, %v989
          %v1006 = vadd.f32 %v882, %v990
          %v1007 = vadd.f32 %v887, %v991
          %v1008 = vadd.f32 %v890, %v992
          %v1009 = vadd.f32 %v895, %v993
          %v1010 = vadd.f32 %v898, %v994
          %v1011 = vadd.f32 %v903, %v995
          %v1012 = vadd.f32 %v906, %v996
          %v1013 = vadd.f32 %v911, %v997
          %v1014 = vadd.f32 %v914, %v998
          %v1015 = vadd.f32 %v919, %v999
          %v1016 = vadd.f32 %v922, %v1000
          %v1017 = vadd.f32 %v927, %v1001
          %v1018 = vadd.f32 %v930, %v1002
          %v1019 = vadd.f32 %v935, %v1003
          %v1020 = vadd.f32 %v938, %v1004
          %v1021 = vmul.f32 %v1005, 0.7978846
          %v1022 = vmul.f32 %v1006, 0.7978846
          %v1023 = vmul.f32 %v1007, 0.7978846
          %v1024 = vmul.f32 %v1008, 0.7978846
          %v1025 = vmul.f32 %v1009, 0.7978846
          %v1026 = vmul.f32 %v1010, 0.7978846
          %v1027 = vmul.f32 %v1011, 0.7978846
          %v1028 = vmul.f32 %v1012, 0.7978846
          %v1029 = vmul.f32 %v1013, 0.7978846
          %v1030 = vmul.f32 %v1014, 0.7978846
          %v1031 = vmul.f32 %v1015, 0.7978846
          %v1032 = vmul.f32 %v1016, 0.7978846
          %v1033 = vmul.f32 %v1017, 0.7978846
          %v1034 = vmul.f32 %v1018, 0.7978846
          %v1035 = vmul.f32 %v1019, 0.7978846
          %v1036 = vmul.f32 %v1020, 0.7978846
          %v1037 = vtanh.pop %v1021
          %v1038 = vtanh.pop %v1022
          %v1039 = vtanh.pop %v1023
          %v1040 = vtanh.pop %v1024
          %v1041 = vtanh.pop %v1025
          %v1042 = vtanh.pop %v1026
          %v1043 = vtanh.pop %v1027
          %v1044 = vtanh.pop %v1028
          %v1045 = vtanh.pop %v1029
          %v1046 = vtanh.pop %v1030
          %v1047 = vtanh.pop %v1031
          %v1048 = vtanh.pop %v1032
          %v1049 = vtanh.pop %v1033
          %v1050 = vtanh.pop %v1034
          %v1051 = vtanh.pop %v1035
          %v1052 = vtanh.pop %v1036
          %v1053 = vadd.f32 %v1037, 1.0
          %v1054 = vadd.f32 %v1038, 1.0
          %v1055 = vadd.f32 %v1039, 1.0
          %v1056 = vadd.f32 %v1040, 1.0
          %v1057 = vadd.f32 %v1041, 1.0
          %v1058 = vadd.f32 %v1042, 1.0
          %v1059 = vadd.f32 %v1043, 1.0
          %v1060 = vadd.f32 %v1044, 1.0
          %v1061 = vadd.f32 %v1045, 1.0
          %v1062 = vadd.f32 %v1046, 1.0
          %v1063 = vadd.f32 %v1047, 1.0
          %v1064 = vadd.f32 %v1048, 1.0
          %v1065 = vadd.f32 %v1049, 1.0
          %v1066 = vadd.f32 %v1050, 1.0
          %v1067 = vadd.f32 %v1051, 1.0
          %v1068 = vadd.f32 %v1052, 1.0
          %v1069 = vmul.f32 %v941, %v1053
          %v1070 = vmul.f32 %v942, %v1054
          %v1071 = vmul.f32 %v943, %v1055
          %v1072 = vmul.f32 %v944, %v1056
          %v1073 = vmul.f32 %v945, %v1057
          %v1074 = vmul.f32 %v946, %v1058
          %v1075 = vmul.f32 %v947, %v1059
          %v1076 = vmul.f32 %v948, %v1060
          %v1077 = vmul.f32 %v949, %v1061
          %v1078 = vmul.f32 %v950, %v1062
          %v1079 = vmul.f32 %v951, %v1063
          %v1080 = vmul.f32 %v952, %v1064
          %v1081 = vmul.f32 %v953, %v1065
          %v1082 = vmul.f32 %v954, %v1066
          %v1083 = vmul.f32 %v955, %v1067
          %v1084 = vmul.f32 %v956, %v1068
          %v1085 = vpack.c.bf16 %v1070, %v1069
          %v1086 = vpack.c.bf16 %v1072, %v1071
          %v1087 = vpack.c.bf16 %v1074, %v1073
          %v1088 = vpack.c.bf16 %v1076, %v1075
          %v1089 = vpack.c.bf16 %v1078, %v1077
          %v1090 = vpack.c.bf16 %v1080, %v1079
          %v1091 = vpack.c.bf16 %v1082, %v1081
          %v1092 = vpack.c.bf16 %v1084, %v1083
          %v1093 = vld [vmem:[#allocation3] sm:$0xf]
          %v1094 = vld [vmem:[#allocation3 + $0x4] sm:$0xf]
          %v1095 = vld [vmem:[#allocation3 + $0x8] sm:$0xf]
          %v1096 = vld [vmem:[#allocation3 + $0xc] sm:$0xf]
          %v1097 = vld [vmem:[#allocation3 + $0x10] sm:$0xf]
          %v1098 = vld [vmem:[#allocation3 + $0x14] sm:$0xf]
          %v1099 = vld [vmem:[#allocation3 + $0x18] sm:$0xf]
          %v1100 = vld [vmem:[#allocation3 + $0x1c] sm:$0xf]
          %v1101 = vld [vmem:[#allocation3 + $0x20] sm:$0xf]
          %v1102 = vld [vmem:[#allocation3 + $0x24] sm:$0xf]
          %v1103 = vld [vmem:[#allocation3 + $0x28] sm:$0xf]
          %v1104 = vld [vmem:[#allocation3 + $0x2c] sm:$0xf]
          %v1105 = vld [vmem:[#allocation3 + $0x30] sm:$0xf]
          %v1106 = vld [vmem:[#allocation3 + $0x34] sm:$0xf]
          %v1107 = vld [vmem:[#allocation3 + $0x38] sm:$0xf]
          %v1108 = vld [vmem:[#allocation3 + $0x3c] sm:$0xf]
          %v1109 = vld [vmem:[%s5] sm:$0x1]
          %v1111 = vlaneseq
          %v1112 = vshrl.u32 %v1111, 7
          %v1113 = vsub.s32 0, %v1112
          %v1114 = vrot.slane %v1109, %v1113
          %v1132 = vunpack.c.l.b16 %v1093
          %v1133 = vunpack.c.l.b16 %v1094
          %v1134 = vunpack.c.l.b16 %v1095
          %v1135 = vunpack.c.l.b16 %v1096
          %v1136 = vunpack.c.l.b16 %v1097
          %v1137 = vunpack.c.l.b16 %v1098
          %v1138 = vunpack.c.l.b16 %v1099
          %v1139 = vunpack.c.l.b16 %v1100
          %v1140 = vunpack.c.l.b16 %v1101
          %v1141 = vunpack.c.l.b16 %v1102
          %v1142 = vunpack.c.l.b16 %v1103
          %v1143 = vunpack.c.l.b16 %v1104
          %v1144 = vunpack.c.l.b16 %v1105
          %v1145 = vunpack.c.l.b16 %v1106
          %v1146 = vunpack.c.l.b16 %v1107
          %v1147 = vunpack.c.l.b16 %v1108
          %v1148 = vpack.c.b16 %v1133, %v1132
          %v1149 = vpack.c.b16 %v1135, %v1134
          %v1150 = vpack.c.b16 %v1137, %v1136
          %v1151 = vpack.c.b16 %v1139, %v1138
          %v1152 = vpack.c.b16 %v1141, %v1140
          %v1153 = vpack.c.b16 %v1143, %v1142
          %v1154 = vpack.c.b16 %v1145, %v1144
          %v1155 = vpack.c.b16 %v1147, %v1146
          %1164 = vmatprep.subr.bf16.mxu0 0
          %1165 = vmatpush1.bf16.msra.mxu0 %v1148
          %1166 = vmatprep.subr.bf16.mxu0 0
          %1167 = vmatpush1.bf16.msra.mxu0 %v1149
          %1168 = vmatprep.subr.bf16.mxu0 0
          %1169 = vmatpush1.bf16.msra.mxu0 %v1150
          %1170 = vmatprep.subr.bf16.mxu0 0
          %1171 = vmatpush1.bf16.msra.mxu0 %v1151
          %1172 = vmatprep.subr.bf16.mxu0 0
          %1173 = vmatpush1.bf16.msra.mxu0 %v1152
          %1174 = vmatprep.subr.bf16.mxu0 0
          %1175 = vmatpush1.bf16.msra.mxu0 %v1153
          %1176 = vmatprep.subr.bf16.mxu0 0
          %1177 = vmatpush1.bf16.msra.mxu0 %v1154
          %1178 = vmatprep.subr.bf16.mxu0 0
          %1179 = vmatpush1.bf16.msra.mxu0 %v1155
          %1180 = vmatprep.subr.bf16.mxu0 0
          %1181 = vmatpush1.bf16.msra.mxu0 0
          %1182 = vmatprep.subr.bf16.mxu0 0
          %1183 = vmatpush1.bf16.msra.mxu0 0
          %1184 = vmatprep.subr.bf16.mxu0 0
          %1185 = vmatpush1.bf16.msra.mxu0 0
          %1186 = vmatprep.subr.bf16.mxu0 0
          %1187 = vmatpush1.bf16.msra.mxu0 0
          %1188 = vmatprep.subr.bf16.mxu0 0
          %1189 = vmatpush1.bf16.msra.mxu0 0
          %1190 = vmatprep.subr.bf16.mxu0 0
          %1191 = vmatpush1.bf16.msra.mxu0 0
          %1192 = vmatprep.subr.bf16.mxu0 0
          %1193 = vmatpush1.bf16.msra.mxu0 0
          %1194 = vmatprep.subr.bf16.mxu0 0
          %1195 = vmatpush1.bf16.msra.mxu0 0
          %1196 = vmatprep.mubr.bf16.mxu0 0
          %1197 = vmatmul.mubr.bf16.gmra.mrb[0].mxu0 %v1085
          %v1198 = vpop.f32.mrb[0].mxu0
          %v1199 = vadd.f32 %v1114, %v1198
          %v1200 = vpop.f32.mrb[0].mxu0
          %v1201 = vpop.f32.mrb[0].mxu0
          %v1202 = vadd.f32 %v1114, %v1201
          %v1203 = vpop.f32.mrb[0].mxu0
          %1204 = vmatprep.mubr.bf16.mxu0 0
          %1205 = vmatmul.mubr.bf16.gmra.mrb[0].mxu0 %v1086
          %v1206 = vpop.f32.mrb[0].mxu0
          %v1207 = vadd.f32 %v1114, %v1206
          %v1208 = vpop.f32.mrb[0].mxu0
          %v1209 = vpop.f32.mrb[0].mxu0
          %v1210 = vadd.f32 %v1114, %v1209
          %v1211 = vpop.f32.mrb[0].mxu0
          %1212 = vmatprep.mubr.bf16.mxu0 0
          %1213 = vmatmul.mubr.bf16.gmra.mrb[0].mxu0 %v1087
          %v1214 = vpop.f32.mrb[0].mxu0
          %v1215 = vadd.f32 %v1114, %v1214
          %v1216 = vpop.f32.mrb[0].mxu0
          %v1217 = vpop.f32.mrb[0].mxu0
          %v1218 = vadd.f32 %v1114, %v1217
          %v1219 = vpop.f32.mrb[0].mxu0
          %1220 = vmatprep.mubr.bf16.mxu0 0
          %1221 = vmatmul.mubr.bf16.gmra.mrb[0].mxu0 %v1088
          %v1222 = vpop.f32.mrb[0].mxu0
          %v1223 = vadd.f32 %v1114, %v1222
          %v1224 = vpop.f32.mrb[0].mxu0
          %v1225 = vpop.f32.mrb[0].mxu0
          %v1226 = vadd.f32 %v1114, %v1225
          %v1227 = vpop.f32.mrb[0].mxu0
          %1228 = vmatprep.mubr.bf16.mxu0 0
          %1229 = vmatmul.mubr.bf16.gmra.mrb[0].mxu0 %v1089
          %v1230 = vpop.f32.mrb[0].mxu0
          %v1231 = vadd.f32 %v1114, %v1230
          %v1232 = vpop.f32.mrb[0].mxu0
          %v1233 = vpop.f32.mrb[0].mxu0
          %v1234 = vadd.f32 %v1114, %v1233
          %v1235 = vpop.f32.mrb[0].mxu0
          %1236 = vmatprep.mubr.bf16.mxu0 0
          %1237 = vmatmul.mubr.bf16.gmra.mrb[0].mxu0 %v1090
          %v1238 = vpop.f32.mrb[0].mxu0
          %v1239 = vadd.f32 %v1114, %v1238
          %v1240 = vpop.f32.mrb[0].mxu0
          %v1241 = vpop.f32.mrb[0].mxu0
          %v1242 = vadd.f32 %v1114, %v1241
          %v1243 = vpop.f32.mrb[0].mxu0
          %1244 = vmatprep.mubr.bf16.mxu0 0
          %1245 = vmatmul.mubr.bf16.gmra.mrb[0].mxu0 %v1091
          %v1246 = vpop.f32.mrb[0].mxu0
          %v1247 = vadd.f32 %v1114, %v1246
          %v1248 = vpop.f32.mrb[0].mxu0
          %v1249 = vpop.f32.mrb[0].mxu0
          %v1250 = vadd.f32 %v1114, %v1249
          %v1251 = vpop.f32.mrb[0].mxu0
          %1252 = vmatprep.mubr.bf16.mxu0 0
          %1253 = vmatmul.mubr.bf16.gmra.mrb[0].mxu0 %v1092
          %v1254 = vpop.f32.mrb[0].mxu0
          %v1255 = vadd.f32 %v1114, %v1254
          %v1256 = vpop.f32.mrb[0].mxu0
          %v1257 = vpop.f32.mrb[0].mxu0
          %v1258 = vadd.f32 %v1114, %v1257
          %v1259 = vpop.f32.mrb[0].mxu0
          %1260 = vdwg.mxu0
          %v1261 = vpack.c.bf16 %v1202, %v1199
          %v1262 = vpack.c.bf16 %v1210, %v1207
          %v1263 = vpack.c.bf16 %v1218, %v1215
          %v1264 = vpack.c.bf16 %v1226, %v1223
          %v1265 = vpack.c.bf16 %v1234, %v1231
          %v1266 = vpack.c.bf16 %v1242, %v1239
          %v1267 = vpack.c.bf16 %v1250, %v1247
          %v1268 = vpack.c.bf16 %v1258, %v1255
          %v1269 = vld [vmem:[%s594] sm:$0xf]
          %v1270 = vld [vmem:[%s594 + $0x4] sm:$0xf]
          %v1271 = vld [vmem:[%s594 + $0x8] sm:$0xf]
          %v1272 = vld [vmem:[%s594 + $0xc] sm:$0xf]
          %v1273 = vld [vmem:[%s594 + $0x10] sm:$0xf]
          %v1274 = vld [vmem:[%s594 + $0x14] sm:$0xf]
          %v1275 = vld [vmem:[%s594 + $0x18] sm:$0xf]
          %v1276 = vld [vmem:[%s594 + $0x1c] sm:$0xf]
          %v1277 = vld [vmem:[%s594 + $0x20] sm:$0xf]
          %v1278 = vld [vmem:[%s594 + $0x24] sm:$0xf]
          %v1279 = vld [vmem:[%s594 + $0x28] sm:$0xf]
          %v1280 = vld [vmem:[%s594 + $0x2c] sm:$0xf]
          %v1281 = vld [vmem:[%s594 + $0x30] sm:$0xf]
          %v1282 = vld [vmem:[%s594 + $0x34] sm:$0xf]
          %v1283 = vld [vmem:[%s594 + $0x38] sm:$0xf]
          %v1284 = vld [vmem:[%s594 + $0x3c] sm:$0xf]
          %v1285 = vld [vmem:[#allocation6] sm:$0xf]
          %v1286 = vld [vmem:[#allocation6 + $0x4] sm:$0xf]
          %v1287 = vld [vmem:[#allocation6 + $0x8] sm:$0xf]
          %v1288 = vld [vmem:[#allocation6 + $0xc] sm:$0xf]
          %v1289 = vld [vmem:[#allocation6 + $0x10] sm:$0xf]
          %v1290 = vld [vmem:[#allocation6 + $0x14] sm:$0xf]
          %v1291 = vld [vmem:[#allocation6 + $0x18] sm:$0xf]
          %v1292 = vld [vmem:[#allocation6 + $0x1c] sm:$0xf]
          %v1293 = vld [vmem:[#allocation6 + $0x20] sm:$0xf]
          %v1294 = vld [vmem:[#allocation6 + $0x24] sm:$0xf]
          %v1295 = vld [vmem:[#allocation6 + $0x28] sm:$0xf]
          %v1296 = vld [vmem:[#allocation6 + $0x2c] sm:$0xf]
          %v1297 = vld [vmem:[#allocation6 + $0x30] sm:$0xf]
          %v1298 = vld [vmem:[#allocation6 + $0x34] sm:$0xf]
          %v1299 = vld [vmem:[#allocation6 + $0x38] sm:$0xf]
          %v1300 = vld [vmem:[#allocation6 + $0x3c] sm:$0xf]
          %v1301 = vld [vmem:[%s7] sm:$0x1]
          %v1303 = vlaneseq
          %v1304 = vshrl.u32 %v1303, 7
          %v1305 = vsub.s32 0, %v1304
          %v1306 = vrot.slane %v1301, %v1305
          %v1324 = vunpack.c.l.b16 %v1269
          %v1325 = vunpack.c.l.b16 %v1270
          %v1326 = vunpack.c.l.b16 %v1271
          %v1327 = vunpack.c.l.b16 %v1272
          %v1328 = vunpack.c.l.b16 %v1273
          %v1329 = vunpack.c.l.b16 %v1274
          %v1330 = vunpack.c.l.b16 %v1275
          %v1331 = vunpack.c.l.b16 %v1276
          %v1332 = vunpack.c.l.b16 %v1277
          %v1333 = vunpack.c.l.b16 %v1278
          %v1334 = vunpack.c.l.b16 %v1279
          %v1335 = vunpack.c.l.b16 %v1280
          %v1336 = vunpack.c.l.b16 %v1281
          %v1337 = vunpack.c.l.b16 %v1282
          %v1338 = vunpack.c.l.b16 %v1283
          %v1339 = vunpack.c.l.b16 %v1284
          %v1340 = vpack.c.b16 %v1325, %v1324
          %v1341 = vpack.c.b16 %v1327, %v1326
          %v1342 = vpack.c.b16 %v1329, %v1328
          %v1343 = vpack.c.b16 %v1331, %v1330
          %v1344 = vpack.c.b16 %v1333, %v1332
          %v1345 = vpack.c.b16 %v1335, %v1334
          %v1346 = vpack.c.b16 %v1337, %v1336
          %v1347 = vpack.c.b16 %v1339, %v1338
          %v1372 = vunpack.c.l.b16 %v1285
          %v1373 = vunpack.c.l.b16 %v1286
          %v1374 = vunpack.c.l.b16 %v1287
          %v1375 = vunpack.c.l.b16 %v1288
          %v1376 = vunpack.c.l.b16 %v1289
          %v1377 = vunpack.c.l.b16 %v1290
          %v1378 = vunpack.c.l.b16 %v1291
          %v1379 = vunpack.c.l.b16 %v1292
          %v1380 = vunpack.c.l.b16 %v1293
          %v1381 = vunpack.c.l.b16 %v1294
          %v1382 = vunpack.c.l.b16 %v1295
          %v1383 = vunpack.c.l.b16 %v1296
          %v1384 = vunpack.c.l.b16 %v1297
          %v1385 = vunpack.c.l.b16 %v1298
          %v1386 = vunpack.c.l.b16 %v1299
          %v1387 = vunpack.c.l.b16 %v1300
          %v1388 = vpack.c.b16 %v1373, %v1372
          %v1389 = vpack.c.b16 %v1375, %v1374
          %v1390 = vpack.c.b16 %v1377, %v1376
          %v1391 = vpack.c.b16 %v1379, %v1378
          %v1392 = vpack.c.b16 %v1381, %v1380
          %v1393 = vpack.c.b16 %v1383, %v1382
          %v1394 = vpack.c.b16 %v1385, %v1384
          %v1395 = vpack.c.b16 %v1387, %v1386
          %1404 = vmatprep.subr.bf16.mxu0 0
          %1405 = vmatpush1.bf16.msra.mxu0 %v1388
          %1406 = vmatprep.subr.bf16.mxu0 0
          %1407 = vmatpush1.bf16.msra.mxu0 %v1389
          %1408 = vmatprep.subr.bf16.mxu0 0
          %1409 = vmatpush1.bf16.msra.mxu0 %v1390
          %1410 = vmatprep.subr.bf16.mxu0 0
          %1411 = vmatpush1.bf16.msra.mxu0 %v1391
          %1412 = vmatprep.subr.bf16.mxu0 0
          %1413 = vmatpush1.bf16.msra.mxu0 %v1392
          %1414 = vmatprep.subr.bf16.mxu0 0
          %1415 = vmatpush1.bf16.msra.mxu0 %v1393
          %1416 = vmatprep.subr.bf16.mxu0 0
          %1417 = vmatpush1.bf16.msra.mxu0 %v1394
          %1418 = vmatprep.subr.bf16.mxu0 0
          %1419 = vmatpush1.bf16.msra.mxu0 %v1395
          %1420 = vmatprep.subr.bf16.mxu0 0
          %1421 = vmatpush1.bf16.msra.mxu0 0
          %1422 = vmatprep.subr.bf16.mxu0 0
          %1423 = vmatpush1.bf16.msra.mxu0 0
          %1424 = vmatprep.subr.bf16.mxu0 0
          %1425 = vmatpush1.bf16.msra.mxu0 0
          %1426 = vmatprep.subr.bf16.mxu0 0
          %1427 = vmatpush1.bf16.msra.mxu0 0
          %1428 = vmatprep.subr.bf16.mxu0 0
          %1429 = vmatpush1.bf16.msra.mxu0 0
          %1430 = vmatprep.subr.bf16.mxu0 0
          %1431 = vmatpush1.bf16.msra.mxu0 0
          %1432 = vmatprep.subr.bf16.mxu0 0
          %1433 = vmatpush1.bf16.msra.mxu0 0
          %1434 = vmatprep.subr.bf16.mxu0 0
          %1435 = vmatpush1.bf16.msra.mxu0 0
          %1436 = vmatprep.mubr.bf16.mxu0 0
          %1437 = vmatmul.mubr.bf16.gmra.mrb[0].mxu0 %v1340
          %v1438 = vpop.f32.mrb[0].mxu0
          %v1439 = vadd.f32 %v1306, %v1438
          %v1440 = vpop.f32.mrb[0].mxu0
          %v1441 = vpop.f32.mrb[0].mxu0
          %v1442 = vadd.f32 %v1306, %v1441
          %v1443 = vpop.f32.mrb[0].mxu0
          %1444 = vmatprep.mubr.bf16.mxu0 0
          %1445 = vmatmul.mubr.bf16.gmra.mrb[0].mxu0 %v1341
          %v1446 = vpop.f32.mrb[0].mxu0
          %v1447 = vadd.f32 %v1306, %v1446
          %v1448 = vpop.f32.mrb[0].mxu0
          %v1449 = vpop.f32.mrb[0].mxu0
          %v1450 = vadd.f32 %v1306, %v1449
          %v1451 = vpop.f32.mrb[0].mxu0
          %1452 = vmatprep.mubr.bf16.mxu0 0
          %1453 = vmatmul.mubr.bf16.gmra.mrb[0].mxu0 %v1342
          %v1454 = vpop.f32.mrb[0].mxu0
          %v1455 = vadd.f32 %v1306, %v1454
          %v1456 = vpop.f32.mrb[0].mxu0
          %v1457 = vpop.f32.mrb[0].mxu0
          %v1458 = vadd.f32 %v1306, %v1457
          %v1459 = vpop.f32.mrb[0].mxu0
          %1460 = vmatprep.mubr.bf16.mxu0 0
          %1461 = vmatmul.mubr.bf16.gmra.mrb[0].mxu0 %v1343
          %v1462 = vpop.f32.mrb[0].mxu0
          %v1463 = vadd.f32 %v1306, %v1462
          %v1464 = vpop.f32.mrb[0].mxu0
          %v1465 = vpop.f32.mrb[0].mxu0
          %v1466 = vadd.f32 %v1306, %v1465
          %v1467 = vpop.f32.mrb[0].mxu0
          %1468 = vmatprep.mubr.bf16.mxu0 0
          %1469 = vmatmul.mubr.bf16.gmra.mrb[0].mxu0 %v1344
          %v1470 = vpop.f32.mrb[0].mxu0
          %v1471 = vadd.f32 %v1306, %v1470
          %v1472 = vpop.f32.mrb[0].mxu0
          %v1473 = vpop.f32.mrb[0].mxu0
          %v1474 = vadd.f32 %v1306, %v1473
          %v1475 = vpop.f32.mrb[0].mxu0
          %1476 = vmatprep.mubr.bf16.mxu0 0
          %1477 = vmatmul.mubr.bf16.gmra.mrb[0].mxu0 %v1345
          %v1478 = vpop.f32.mrb[0].mxu0
          %v1479 = vadd.f32 %v1306, %v1478
          %v1480 = vpop.f32.mrb[0].mxu0
          %v1481 = vpop.f32.mrb[0].mxu0
          %v1482 = vadd.f32 %v1306, %v1481
          %v1483 = vpop.f32.mrb[0].mxu0
          %1484 = vmatprep.mubr.bf16.mxu0 0
          %1485 = vmatmul.mubr.bf16.gmra.mrb[0].mxu0 %v1346
          %v1486 = vpop.f32.mrb[0].mxu0
          %v1487 = vadd.f32 %v1306, %v1486
          %v1488 = vpop.f32.mrb[0].mxu0
          %v1489 = vpop.f32.mrb[0].mxu0
          %v1490 = vadd.f32 %v1306, %v1489
          %v1491 = vpop.f32.mrb[0].mxu0
          %1492 = vmatprep.mubr.bf16.mxu0 0
          %1493 = vmatmul.mubr.bf16.gmra.mrb[0].mxu0 %v1347
          %v1494 = vpop.f32.mrb[0].mxu0
          %v1495 = vadd.f32 %v1306, %v1494
          %v1496 = vpop.f32.mrb[0].mxu0
          %v1497 = vpop.f32.mrb[0].mxu0
          %v1498 = vadd.f32 %v1306, %v1497
          %v1499 = vpop.f32.mrb[0].mxu0
          %1500 = vdwg.mxu0
          %v1501 = vmul.f32 %v1439, 0.5
          %v1502 = vmul.f32 %v1442, 0.5
          %v1503 = vmul.f32 %v1447, 0.5
          %v1504 = vmul.f32 %v1450, 0.5
          %v1505 = vmul.f32 %v1455, 0.5
          %v1506 = vmul.f32 %v1458, 0.5
          %v1507 = vmul.f32 %v1463, 0.5
          %v1508 = vmul.f32 %v1466, 0.5
          %v1509 = vmul.f32 %v1471, 0.5
          %v1510 = vmul.f32 %v1474, 0.5
          %v1511 = vmul.f32 %v1479, 0.5
          %v1512 = vmul.f32 %v1482, 0.5
          %v1513 = vmul.f32 %v1487, 0.5
          %v1514 = vmul.f32 %v1490, 0.5
          %v1515 = vmul.f32 %v1495, 0.5
          %v1516 = vmul.f32 %v1498, 0.5
          %v1517 = vmul.f32 %v1439, 0.044715
          %v1518 = vmul.f32 %v1442, 0.044715
          %v1519 = vmul.f32 %v1447, 0.044715
          %v1520 = vmul.f32 %v1450, 0.044715
          %v1521 = vmul.f32 %v1455, 0.044715
          %v1522 = vmul.f32 %v1458, 0.044715
          %v1523 = vmul.f32 %v1463, 0.044715
          %v1524 = vmul.f32 %v1466, 0.044715
          %v1525 = vmul.f32 %v1471, 0.044715
          %v1526 = vmul.f32 %v1474, 0.044715
          %v1527 = vmul.f32 %v1479, 0.044715
          %v1528 = vmul.f32 %v1482, 0.044715
          %v1529 = vmul.f32 %v1487, 0.044715
          %v1530 = vmul.f32 %v1490, 0.044715
          %v1531 = vmul.f32 %v1495, 0.044715
          %v1532 = vmul.f32 %v1498, 0.044715
          %v1533 = vmul.f32 %v1517, %v1439
          %v1534 = vmul.f32 %v1518, %v1442
          %v1535 = vmul.f32 %v1519, %v1447
          %v1536 = vmul.f32 %v1520, %v1450
          %v1537 = vmul.f32 %v1521, %v1455
          %v1538 = vmul.f32 %v1522, %v1458
          %v1539 = vmul.f32 %v1523, %v1463
          %v1540 = vmul.f32 %v1524, %v1466
          %v1541 = vmul.f32 %v1525, %v1471
          %v1542 = vmul.f32 %v1526, %v1474
          %v1543 = vmul.f32 %v1527, %v1479
          %v1544 = vmul.f32 %v1528, %v1482
          %v1545 = vmul.f32 %v1529, %v1487
          %v1546 = vmul.f32 %v1530, %v1490
          %v1547 = vmul.f32 %v1531, %v1495
          %v1548 = vmul.f32 %v1532, %v1498
          %v1549 = vmul.f32 %v1533, %v1439
          %v1550 = vmul.f32 %v1534, %v1442
          %v1551 = vmul.f32 %v1535, %v1447
          %v1552 = vmul.f32 %v1536, %v1450
          %v1553 = vmul.f32 %v1537, %v1455
          %v1554 = vmul.f32 %v1538, %v1458
          %v1555 = vmul.f32 %v1539, %v1463
          %v1556 = vmul.f32 %v1540, %v1466
          %v1557 = vmul.f32 %v1541, %v1471
          %v1558 = vmul.f32 %v1542, %v1474
          %v1559 = vmul.f32 %v1543, %v1479
          %v1560 = vmul.f32 %v1544, %v1482
          %v1561 = vmul.f32 %v1545, %v1487
          %v1562 = vmul.f32 %v1546, %v1490
          %v1563 = vmul.f32 %v1547, %v1495
          %v1564 = vmul.f32 %v1548, %v1498
          %v1565 = vadd.f32 %v1439, %v1549
          %v1566 = vadd.f32 %v1442, %v1550
          %v1567 = vadd.f32 %v1447, %v1551
          %v1568 = vadd.f32 %v1450, %v1552
          %v1569 = vadd.f32 %v1455, %v1553
          %v1570 = vadd.f32 %v1458, %v1554
          %v1571 = vadd.f32 %v1463, %v1555
          %v1572 = vadd.f32 %v1466, %v1556
          %v1573 = vadd.f32 %v1471, %v1557
          %v1574 = vadd.f32 %v1474, %v1558
          %v1575 = vadd.f32 %v1479, %v1559
          %v1576 = vadd.f32 %v1482, %v1560
          %v1577 = vadd.f32 %v1487, %v1561
          %v1578 = vadd.f32 %v1490, %v1562
          %v1579 = vadd.f32 %v1495, %v1563
          %v1580 = vadd.f32 %v1498, %v1564
          %v1581 = vmul.f32 %v1565, 0.7978846
          %v1582 = vmul.f32 %v1566, 0.7978846
          %v1583 = vmul.f32 %v1567, 0.7978846
          %v1584 = vmul.f32 %v1568, 0.7978846
          %v1585 = vmul.f32 %v1569, 0.7978846
          %v1586 = vmul.f32 %v1570, 0.7978846
          %v1587 = vmul.f32 %v1571, 0.7978846
          %v1588 = vmul.f32 %v1572, 0.7978846
          %v1589 = vmul.f32 %v1573, 0.7978846
          %v1590 = vmul.f32 %v1574, 0.7978846
          %v1591 = vmul.f32 %v1575, 0.7978846
          %v1592 = vmul.f32 %v1576, 0.7978846
          %v1593 = vmul.f32 %v1577, 0.7978846
          %v1594 = vmul.f32 %v1578, 0.7978846
          %v1595 = vmul.f32 %v1579, 0.7978846
          %v1596 = vmul.f32 %v1580, 0.7978846
          %v1597 = vtanh.pop %v1581
          %v1598 = vtanh.pop %v1582
          %v1599 = vtanh.pop %v1583
          %v1600 = vtanh.pop %v1584
          %v1601 = vtanh.pop %v1585
          %v1602 = vtanh.pop %v1586
          %v1603 = vtanh.pop %v1587
          %v1604 = vtanh.pop %v1588
          %v1605 = vtanh.pop %v1589
          %v1606 = vtanh.pop %v1590
          %v1607 = vtanh.pop %v1591
          %v1608 = vtanh.pop %v1592
          %v1609 = vtanh.pop %v1593
          %v1610 = vtanh.pop %v1594
          %v1611 = vtanh.pop %v1595
          %v1612 = vtanh.pop %v1596
          %v1613 = vadd.f32 %v1597, 1.0
          %v1614 = vadd.f32 %v1598, 1.0
          %v1615 = vadd.f32 %v1599, 1.0
          %v1616 = vadd.f32 %v1600, 1.0
          %v1617 = vadd.f32 %v1601, 1.0
          %v1618 = vadd.f32 %v1602, 1.0
          %v1619 = vadd.f32 %v1603, 1.0
          %v1620 = vadd.f32 %v1604, 1.0
          %v1621 = vadd.f32 %v1605, 1.0
          %v1622 = vadd.f32 %v1606, 1.0
          %v1623 = vadd.f32 %v1607, 1.0
          %v1624 = vadd.f32 %v1608, 1.0
          %v1625 = vadd.f32 %v1609, 1.0
          %v1626 = vadd.f32 %v1610, 1.0
          %v1627 = vadd.f32 %v1611, 1.0
          %v1628 = vadd.f32 %v1612, 1.0
          %v1629 = vmul.f32 %v1501, %v1613
          %v1630 = vmul.f32 %v1502, %v1614
          %v1631 = vmul.f32 %v1503, %v1615
          %v1632 = vmul.f32 %v1504, %v1616
          %v1633 = vmul.f32 %v1505, %v1617
          %v1634 = vmul.f32 %v1506, %v1618
          %v1635 = vmul.f32 %v1507, %v1619
          %v1636 = vmul.f32 %v1508, %v1620
          %v1637 = vmul.f32 %v1509, %v1621
          %v1638 = vmul.f32 %v1510, %v1622
          %v1639 = vmul.f32 %v1511, %v1623
          %v1640 = vmul.f32 %v1512, %v1624
          %v1641 = vmul.f32 %v1513, %v1625
          %v1642 = vmul.f32 %v1514, %v1626
          %v1643 = vmul.f32 %v1515, %v1627
          %v1644 = vmul.f32 %v1516, %v1628
          %v1645 = vpack.c.bf16 %v1630, %v1629
          %v1646 = vpack.c.bf16 %v1632, %v1631
          %v1647 = vpack.c.bf16 %v1634, %v1633
          %v1648 = vpack.c.bf16 %v1636, %v1635
          %v1649 = vpack.c.bf16 %v1638, %v1637
          %v1650 = vpack.c.bf16 %v1640, %v1639
          %v1651 = vpack.c.bf16 %v1642, %v1641
          %v1652 = vpack.c.bf16 %v1644, %v1643
          %v1653 = vld [vmem:[#allocation8] sm:$0xf]
          %v1654 = vld [vmem:[#allocation8 + $0x4] sm:$0xf]
          %v1655 = vld [vmem:[#allocation8 + $0x8] sm:$0xf]
          %v1656 = vld [vmem:[#allocation8 + $0xc] sm:$0xf]
          %v1657 = vld [vmem:[#allocation8 + $0x10] sm:$0xf]
          %v1658 = vld [vmem:[#allocation8 + $0x14] sm:$0xf]
          %v1659 = vld [vmem:[#allocation8 + $0x18] sm:$0xf]
          %v1660 = vld [vmem:[#allocation8 + $0x1c] sm:$0xf]
          %v1661 = vld [vmem:[#allocation8 + $0x20] sm:$0xf]
          %v1662 = vld [vmem:[#allocation8 + $0x24] sm:$0xf]
          %v1663 = vld [vmem:[#allocation8 + $0x28] sm:$0xf]
          %v1664 = vld [vmem:[#allocation8 + $0x2c] sm:$0xf]
          %v1665 = vld [vmem:[#allocation8 + $0x30] sm:$0xf]
          %v1666 = vld [vmem:[#allocation8 + $0x34] sm:$0xf]
          %v1667 = vld [vmem:[#allocation8 + $0x38] sm:$0xf]
          %v1668 = vld [vmem:[#allocation8 + $0x3c] sm:$0xf]
          %v1669 = vld [vmem:[%s9] sm:$0x1]
          %v1671 = vlaneseq
          %v1672 = vshrl.u32 %v1671, 7
          %v1673 = vsub.s32 0, %v1672
          %v1674 = vrot.slane %v1669, %v1673
          %v1692 = vunpack.c.l.b16 %v1653
          %v1693 = vunpack.c.l.b16 %v1654
          %v1694 = vunpack.c.l.b16 %v1655
          %v1695 = vunpack.c.l.b16 %v1656
          %v1696 = vunpack.c.l.b16 %v1657
          %v1697 = vunpack.c.l.b16 %v1658
          %v1698 = vunpack.c.l.b16 %v1659
          %v1699 = vunpack.c.l.b16 %v1660
          %v1700 = vunpack.c.l.b16 %v1661
          %v1701 = vunpack.c.l.b16 %v1662
          %v1702 = vunpack.c.l.b16 %v1663
          %v1703 = vunpack.c.l.b16 %v1664
          %v1704 = vunpack.c.l.b16 %v1665
          %v1705 = vunpack.c.l.b16 %v1666
          %v1706 = vunpack.c.l.b16 %v1667
          %v1707 = vunpack.c.l.b16 %v1668
          %v1708 = vpack.c.b16 %v1693, %v1692
          %v1709 = vpack.c.b16 %v1695, %v1694
          %v1710 = vpack.c.b16 %v1697, %v1696
          %v1711 = vpack.c.b16 %v1699, %v1698
          %v1712 = vpack.c.b16 %v1701, %v1700
          %v1713 = vpack.c.b16 %v1703, %v1702
          %v1714 = vpack.c.b16 %v1705, %v1704
          %v1715 = vpack.c.b16 %v1707, %v1706
          %1724 = vmatprep.subr.bf16.mxu0 0
          %1725 = vmatpush1.bf16.msra.mxu0 %v1708
          %1726 = vmatprep.subr.bf16.mxu0 0
          %1727 = vmatpush1.bf16.msra.mxu0 %v1709
          %1728 = vmatprep.subr.bf16.mxu0 0
          %1729 = vmatpush1.bf16.msra.mxu0 %v1710
          %1730 = vmatprep.subr.bf16.mxu0 0
          %1731 = vmatpush1.bf16.msra.mxu0 %v1711
          %1732 = vmatprep.subr.bf16.mxu0 0
          %1733 = vmatpush1.bf16.msra.mxu0 %v1712
          %1734 = vmatprep.subr.bf16.mxu0 0
          %1735 = vmatpush1.bf16.msra.mxu0 %v1713
          %1736 = vmatprep.subr.bf16.mxu0 0
          %1737 = vmatpush1.bf16.msra.mxu0 %v1714
          %1738 = vmatprep.subr.bf16.mxu0 0
          %1739 = vmatpush1.bf16.msra.mxu0 %v1715
          %1740 = vmatprep.subr.bf16.mxu0 0
          %1741 = vmatpush1.bf16.msra.mxu0 0
          %1742 = vmatprep.subr.bf16.mxu0 0
          %1743 = vmatpush1.bf16.msra.mxu0 0
          %1744 = vmatprep.subr.bf16.mxu0 0
          %1745 = vmatpush1.bf16.msra.mxu0 0
          %1746 = vmatprep.subr.bf16.mxu0 0
          %1747 = vmatpush1.bf16.msra.mxu0 0
          %1748 = vmatprep.subr.bf16.mxu0 0
          %1749 = vmatpush1.bf16.msra.mxu0 0
          %1750 = vmatprep.subr.bf16.mxu0 0
          %1751 = vmatpush1.bf16.msra.mxu0 0
          %1752 = vmatprep.subr.bf16.mxu0 0
          %1753 = vmatpush1.bf16.msra.mxu0 0
          %1754 = vmatprep.subr.bf16.mxu0 0
          %1755 = vmatpush1.bf16.msra.mxu0 0
          %1756 = vmatprep.mubr.bf16.mxu0 0
          %1757 = vmatmul.mubr.bf16.gmra.mrb[0].mxu0 %v1645
          %v1758 = vpop.f32.mrb[0].mxu0
          %v1759 = vadd.f32 %v1674, %v1758
          %v1760 = vpop.f32.mrb[0].mxu0
          %v1761 = vpop.f32.mrb[0].mxu0
          %v1762 = vadd.f32 %v1674, %v1761
          %v1763 = vpop.f32.mrb[0].mxu0
          %1764 = vmatprep.mubr.bf16.mxu0 0
          %1765 = vmatmul.mubr.bf16.gmra.mrb[0].mxu0 %v1646
          %v1766 = vpop.f32.mrb[0].mxu0
          %v1767 = vadd.f32 %v1674, %v1766
          %v1768 = vpop.f32.mrb[0].mxu0
          %v1769 = vpop.f32.mrb[0].mxu0
          %v1770 = vadd.f32 %v1674, %v1769
          %v1771 = vpop.f32.mrb[0].mxu0
          %1772 = vmatprep.mubr.bf16.mxu0 0
          %1773 = vmatmul.mubr.bf16.gmra.mrb[0].mxu0 %v1647
          %v1774 = vpop.f32.mrb[0].mxu0
          %v1775 = vadd.f32 %v1674, %v1774
          %v1776 = vpop.f32.mrb[0].mxu0
          %v1777 = vpop.f32.mrb[0].mxu0
          %v1778 = vadd.f32 %v1674, %v1777
          %v1779 = vpop.f32.mrb[0].mxu0
          %1780 = vmatprep.mubr.bf16.mxu0 0
          %1781 = vmatmul.mubr.bf16.gmra.mrb[0].mxu0 %v1648
          %v1782 = vpop.f32.mrb[0].mxu0
          %v1783 = vadd.f32 %v1674, %v1782
          %v1784 = vpop.f32.mrb[0].mxu0
          %v1785 = vpop.f32.mrb[0].mxu0
          %v1786 = vadd.f32 %v1674, %v1785
          %v1787 = vpop.f32.mrb[0].mxu0
          %1788 = vmatprep.mubr.bf16.mxu0 0
          %1789 = vmatmul.mubr.bf16.gmra.mrb[0].mxu0 %v1649
          %v1790 = vpop.f32.mrb[0].mxu0
          %v1791 = vadd.f32 %v1674, %v1790
          %v1792 = vpop.f32.mrb[0].mxu0
          %v1793 = vpop.f32.mrb[0].mxu0
          %v1794 = vadd.f32 %v1674, %v1793
          %v1795 = vpop.f32.mrb[0].mxu0
          %1796 = vmatprep.mubr.bf16.mxu0 0
          %1797 = vmatmul.mubr.bf16.gmra.mrb[0].mxu0 %v1650
          %v1798 = vpop.f32.mrb[0].mxu0
          %v1799 = vadd.f32 %v1674, %v1798
          %v1800 = vpop.f32.mrb[0].mxu0
          %v1801 = vpop.f32.mrb[0].mxu0
          %v1802 = vadd.f32 %v1674, %v1801
          %v1803 = vpop.f32.mrb[0].mxu0
          %1804 = vmatprep.mubr.bf16.mxu0 0
          %1805 = vmatmul.mubr.bf16.gmra.mrb[0].mxu0 %v1651
          %v1806 = vpop.f32.mrb[0].mxu0
          %v1807 = vadd.f32 %v1674, %v1806
          %v1808 = vpop.f32.mrb[0].mxu0
          %v1809 = vpop.f32.mrb[0].mxu0
          %v1810 = vadd.f32 %v1674, %v1809
          %v1811 = vpop.f32.mrb[0].mxu0
          %1812 = vmatprep.mubr.bf16.mxu0 0
          %1813 = vmatmul.mubr.bf16.gmra.mrb[0].mxu0 %v1652
          %v1814 = vpop.f32.mrb[0].mxu0
          %v1815 = vadd.f32 %v1674, %v1814
          %v1816 = vpop.f32.mrb[0].mxu0
          %v1817 = vpop.f32.mrb[0].mxu0
          %v1818 = vadd.f32 %v1674, %v1817
          %v1819 = vpop.f32.mrb[0].mxu0
          %1820 = vdwg.mxu0
          %v1821 = vunpack.c.l.bf16 %v1261
          %v1822 = vunpack.c.h.bf16 %v1261
          %v1823 = vunpack.c.l.bf16 %v1262
          %v1824 = vunpack.c.h.bf16 %v1262
          %v1825 = vunpack.c.l.bf16 %v1263
          %v1826 = vunpack.c.h.bf16 %v1263
          %v1827 = vunpack.c.l.bf16 %v1264
          %v1828 = vunpack.c.h.bf16 %v1264
          %v1829 = vunpack.c.l.bf16 %v1265
          %v1830 = vunpack.c.h.bf16 %v1265
          %v1831 = vunpack.c.l.bf16 %v1266
          %v1832 = vunpack.c.h.bf16 %v1266
          %v1833 = vunpack.c.l.bf16 %v1267
          %v1834 = vunpack.c.h.bf16 %v1267
          %v1835 = vunpack.c.l.bf16 %v1268
          %v1836 = vunpack.c.h.bf16 %v1268
          %v1837 = vadd.f32 %v1759, %v1821
          %v1838 = vadd.f32 %v1762, %v1822
          %v1839 = vadd.f32 %v1767, %v1823
          %v1840 = vadd.f32 %v1770, %v1824
          %v1841 = vadd.f32 %v1775, %v1825
          %v1842 = vadd.f32 %v1778, %v1826
          %v1843 = vadd.f32 %v1783, %v1827
          %v1844 = vadd.f32 %v1786, %v1828
          %v1845 = vadd.f32 %v1791, %v1829
          %v1846 = vadd.f32 %v1794, %v1830
          %v1847 = vadd.f32 %v1799, %v1831
          %v1848 = vadd.f32 %v1802, %v1832
          %v1849 = vadd.f32 %v1807, %v1833
          %v1850 = vadd.f32 %v1810, %v1834
          %v1851 = vadd.f32 %v1815, %v1835
          %v1852 = vadd.f32 %v1818, %v1836
          %v1853 = vmul.f32 %v1837, 0.5
          %v1854 = vmul.f32 %v1838, 0.5
          %v1855 = vmul.f32 %v1839, 0.5
          %v1856 = vmul.f32 %v1840, 0.5
          %v1857 = vmul.f32 %v1841, 0.5
          %v1858 = vmul.f32 %v1842, 0.5
          %v1859 = vmul.f32 %v1843, 0.5
          %v1860 = vmul.f32 %v1844, 0.5
          %v1861 = vmul.f32 %v1845, 0.5
          %v1862 = vmul.f32 %v1846, 0.5
          %v1863 = vmul.f32 %v1847, 0.5
          %v1864 = vmul.f32 %v1848, 0.5
          %v1865 = vmul.f32 %v1849, 0.5
          %v1866 = vmul.f32 %v1850, 0.5
          %v1867 = vmul.f32 %v1851, 0.5
          %v1868 = vmul.f32 %v1852, 0.5
          %v1869 = vmul.f32 %v1837, 0.044715
          %v1870 = vmul.f32 %v1838, 0.044715
          %v1871 = vmul.f32 %v1839, 0.044715
          %v1872 = vmul.f32 %v1840, 0.044715
          %v1873 = vmul.f32 %v1841, 0.044715
          %v1874 = vmul.f32 %v1842, 0.044715
          %v1875 = vmul.f32 %v1843, 0.044715
          %v1876 = vmul.f32 %v1844, 0.044715
          %v1877 = vmul.f32 %v1845, 0.044715
          %v1878 = vmul.f32 %v1846, 0.044715
          %v1879 = vmul.f32 %v1847, 0.044715
          %v1880 = vmul.f32 %v1848, 0.044715
          %v1881 = vmul.f32 %v1849, 0.044715
          %v1882 = vmul.f32 %v1850, 0.044715
          %v1883 = vmul.f32 %v1851, 0.044715
          %v1884 = vmul.f32 %v1852, 0.044715
          %v1885 = vmul.f32 %v1869, %v1837
          %v1886 = vmul.f32 %v1870, %v1838
          %v1887 = vmul.f32 %v1871, %v1839
          %v1888 = vmul.f32 %v1872, %v1840
          %v1889 = vmul.f32 %v1873, %v1841
          %v1890 = vmul.f32 %v1874, %v1842
          %v1891 = vmul.f32 %v1875, %v1843
          %v1892 = vmul.f32 %v1876, %v1844
          %v1893 = vmul.f32 %v1877, %v1845
          %v1894 = vmul.f32 %v1878, %v1846
          %v1895 = vmul.f32 %v1879, %v1847
          %v1896 = vmul.f32 %v1880, %v1848
          %v1897 = vmul.f32 %v1881, %v1849
          %v1898 = vmul.f32 %v1882, %v1850
          %v1899 = vmul.f32 %v1883, %v1851
          %v1900 = vmul.f32 %v1884, %v1852
          %v1901 = vmul.f32 %v1885, %v1837
          %v1902 = vmul.f32 %v1886, %v1838
          %v1903 = vmul.f32 %v1887, %v1839
          %v1904 = vmul.f32 %v1888, %v1840
          %v1905 = vmul.f32 %v1889, %v1841
          %v1906 = vmul.f32 %v1890, %v1842
          %v1907 = vmul.f32 %v1891, %v1843
          %v1908 = vmul.f32 %v1892, %v1844
          %v1909 = vmul.f32 %v1893, %v1845
          %v1910 = vmul.f32 %v1894, %v1846
          %v1911 = vmul.f32 %v1895, %v1847
          %v1912 = vmul.f32 %v1896, %v1848
          %v1913 = vmul.f32 %v1897, %v1849
          %v1914 = vmul.f32 %v1898, %v1850
          %v1915 = vmul.f32 %v1899, %v1851
          %v1916 = vmul.f32 %v1900, %v1852
          %v1917 = vadd.f32 %v1837, %v1901
          %v1918 = vadd.f32 %v1838, %v1902
          %v1919 = vadd.f32 %v1839, %v1903
          %v1920 = vadd.f32 %v1840, %v1904
          %v1921 = vadd.f32 %v1841, %v1905
          %v1922 = vadd.f32 %v1842, %v1906
          %v1923 = vadd.f32 %v1843, %v1907
          %v1924 = vadd.f32 %v1844, %v1908
          %v1925 = vadd.f32 %v1845, %v1909
          %v1926 = vadd.f32 %v1846, %v1910
          %v1927 = vadd.f32 %v1847, %v1911
          %v1928 = vadd.f32 %v1848, %v1912
          %v1929 = vadd.f32 %v1849, %v1913
          %v1930 = vadd.f32 %v1850, %v1914
          %v1931 = vadd.f32 %v1851, %v1915
          %v1932 = vadd.f32 %v1852, %v1916
          %v1933 = vmul.f32 %v1917, 0.7978846
          %v1934 = vmul.f32 %v1918, 0.7978846
          %v1935 = vmul.f32 %v1919, 0.7978846
          %v1936 = vmul.f32 %v1920, 0.7978846
          %v1937 = vmul.f32 %v1921, 0.7978846
          %v1938 = vmul.f32 %v1922, 0.7978846
          %v1939 = vmul.f32 %v1923, 0.7978846
          %v1940 = vmul.f32 %v1924, 0.7978846
          %v1941 = vmul.f32 %v1925, 0.7978846
          %v1942 = vmul.f32 %v1926, 0.7978846
          %v1943 = vmul.f32 %v1927, 0.7978846
          %v1944 = vmul.f32 %v1928, 0.7978846
          %v1945 = vmul.f32 %v1929, 0.7978846
          %v1946 = vmul.f32 %v1930, 0.7978846
          %v1947 = vmul.f32 %v1931, 0.7978846
          %v1948 = vmul.f32 %v1932, 0.7978846
          %v1949 = vtanh.pop %v1933
          %v1950 = vtanh.pop %v1934
          %v1951 = vtanh.pop %v1935
          %v1952 = vtanh.pop %v1936
          %v1953 = vtanh.pop %v1937
          %v1954 = vtanh.pop %v1938
          %v1955 = vtanh.pop %v1939
          %v1956 = vtanh.pop %v1940
          %v1957 = vtanh.pop %v1941
          %v1958 = vtanh.pop %v1942
          %v1959 = vtanh.pop %v1943
          %v1960 = vtanh.pop %v1944
          %v1961 = vtanh.pop %v1945
          %v1962 = vtanh.pop %v1946
          %v1963 = vtanh.pop %v1947
          %v1964 = vtanh.pop %v1948
          %v1965 = vadd.f32 %v1949, 1.0
          %v1966 = vadd.f32 %v1950, 1.0
          %v1967 = vadd.f32 %v1951, 1.0
          %v1968 = vadd.f32 %v1952, 1.0
          %v1969 = vadd.f32 %v1953, 1.0
          %v1970 = vadd.f32 %v1954, 1.0
          %v1971 = vadd.f32 %v1955, 1.0
          %v1972 = vadd.f32 %v1956, 1.0
          %v1973 = vadd.f32 %v1957, 1.0
          %v1974 = vadd.f32 %v1958, 1.0
          %v1975 = vadd.f32 %v1959, 1.0
          %v1976 = vadd.f32 %v1960, 1.0
          %v1977 = vadd.f32 %v1961, 1.0
          %v1978 = vadd.f32 %v1962, 1.0
          %v1979 = vadd.f32 %v1963, 1.0
          %v1980 = vadd.f32 %v1964, 1.0
          %v1981 = vmul.f32 %v1853, %v1965
          %v1982 = vmul.f32 %v1854, %v1966
          %v1983 = vmul.f32 %v1855, %v1967
          %v1984 = vmul.f32 %v1856, %v1968
          %v1985 = vmul.f32 %v1857, %v1969
          %v1986 = vmul.f32 %v1858, %v1970
          %v1987 = vmul.f32 %v1859, %v1971
          %v1988 = vmul.f32 %v1860, %v1972
          %v1989 = vmul.f32 %v1861, %v1973
          %v1990 = vmul.f32 %v1862, %v1974
          %v1991 = vmul.f32 %v1863, %v1975
          %v1992 = vmul.f32 %v1864, %v1976
          %v1993 = vmul.f32 %v1865, %v1977
          %v1994 = vmul.f32 %v1866, %v1978
          %v1995 = vmul.f32 %v1867, %v1979
          %v1996 = vmul.f32 %v1868, %v1980
          %v1997 = vpack.c.bf16 %v1982, %v1981
          %v1998 = vpack.c.bf16 %v1984, %v1983
          %v1999 = vpack.c.bf16 %v1986, %v1985
          %v2000 = vpack.c.bf16 %v1988, %v1987
          %v2001 = vpack.c.bf16 %v1990, %v1989
          %v2002 = vpack.c.bf16 %v1992, %v1991
          %v2003 = vpack.c.bf16 %v1994, %v1993
          %v2004 = vpack.c.bf16 %v1996, %v1995
          %v2005 = vld [vmem:[#allocation9] sm:$0xf]
          %v2006 = vld [vmem:[#allocation9 + $0x4] sm:$0xf]
          %v2007 = vld [vmem:[#allocation9 + $0x8] sm:$0xf]
          %v2008 = vld [vmem:[#allocation9 + $0xc] sm:$0xf]
          %v2009 = vld [vmem:[#allocation9 + $0x10] sm:$0xf]
          %v2010 = vld [vmem:[#allocation9 + $0x14] sm:$0xf]
          %v2011 = vld [vmem:[#allocation9 + $0x18] sm:$0xf]
          %v2012 = vld [vmem:[#allocation9 + $0x1c] sm:$0xf]
          %v2013 = vld [vmem:[#allocation9 + $0x20] sm:$0xf]
          %v2014 = vld [vmem:[#allocation9 + $0x24] sm:$0xf]
          %v2015 = vld [vmem:[#allocation9 + $0x28] sm:$0xf]
          %v2016 = vld [vmem:[#allocation9 + $0x2c] sm:$0xf]
          %v2017 = vld [vmem:[#allocation9 + $0x30] sm:$0xf]
          %v2018 = vld [vmem:[#allocation9 + $0x34] sm:$0xf]
          %v2019 = vld [vmem:[#allocation9 + $0x38] sm:$0xf]
          %v2020 = vld [vmem:[#allocation9 + $0x3c] sm:$0xf]
          %v2021 = vld [vmem:[%s11] sm:$0x1]
          %v2023 = vlaneseq
          %v2024 = vshrl.u32 %v2023, 7
          %v2025 = vsub.s32 0, %v2024
          %v2026 = vrot.slane %v2021, %v2025
          %v2044 = vunpack.c.l.b16 %v2005
          %v2045 = vunpack.c.l.b16 %v2006
          %v2046 = vunpack.c.l.b16 %v2007
          %v2047 = vunpack.c.l.b16 %v2008
          %v2048 = vunpack.c.l.b16 %v2009
          %v2049 = vunpack.c.l.b16 %v2010
          %v2050 = vunpack.c.l.b16 %v2011
          %v2051 = vunpack.c.l.b16 %v2012
          %v2052 = vunpack.c.l.b16 %v2013
          %v2053 = vunpack.c.l.b16 %v2014
          %v2054 = vunpack.c.l.b16 %v2015
          %v2055 = vunpack.c.l.b16 %v2016
          %v2056 = vunpack.c.l.b16 %v2017
          %v2057 = vunpack.c.l.b16 %v2018
          %v2058 = vunpack.c.l.b16 %v2019
          %v2059 = vunpack.c.l.b16 %v2020
          %v2060 = vpack.c.b16 %v2045, %v2044
          %v2061 = vpack.c.b16 %v2047, %v2046
          %v2062 = vpack.c.b16 %v2049, %v2048
          %v2063 = vpack.c.b16 %v2051, %v2050
          %v2064 = vpack.c.b16 %v2053, %v2052
          %v2065 = vpack.c.b16 %v2055, %v2054
          %v2066 = vpack.c.b16 %v2057, %v2056
          %v2067 = vpack.c.b16 %v2059, %v2058
          %2076 = vmatprep.subr.bf16.mxu0 0
          %2077 = vmatpush1.bf16.msra.mxu0 %v2060
          %2078 = vmatprep.subr.bf16.mxu0 0
          %2079 = vmatpush1.bf16.msra.mxu0 %v2061
          %2080 = vmatprep.subr.bf16.mxu0 0
          %2081 = vmatpush1.bf16.msra.mxu0 %v2062
          %2082 = vmatprep.subr.bf16.mxu0 0
          %2083 = vmatpush1.bf16.msra.mxu0 %v2063
          %2084 = vmatprep.subr.bf16.mxu0 0
          %2085 = vmatpush1.bf16.msra.mxu0 %v2064
          %2086 = vmatprep.subr.bf16.mxu0 0
          %2087 = vmatpush1.bf16.msra.mxu0 %v2065
          %2088 = vmatprep.subr.bf16.mxu0 0
          %2089 = vmatpush1.bf16.msra.mxu0 %v2066
          %2090 = vmatprep.subr.bf16.mxu0 0
          %2091 = vmatpush1.bf16.msra.mxu0 %v2067
          %2092 = vmatprep.subr.bf16.mxu0 0
          %2093 = vmatpush1.bf16.msra.mxu0 0
          %2094 = vmatprep.subr.bf16.mxu0 0
          %2095 = vmatpush1.bf16.msra.mxu0 0
          %2096 = vmatprep.subr.bf16.mxu0 0
          %2097 = vmatpush1.bf16.msra.mxu0 0
          %2098 = vmatprep.subr.bf16.mxu0 0
          %2099 = vmatpush1.bf16.msra.mxu0 0
          %2100 = vmatprep.subr.bf16.mxu0 0
          %2101 = vmatpush1.bf16.msra.mxu0 0
          %2102 = vmatprep.subr.bf16.mxu0 0
          %2103 = vmatpush1.bf16.msra.mxu0 0
          %2104 = vmatprep.subr.bf16.mxu0 0
          %2105 = vmatpush1.bf16.msra.mxu0 0
          %2106 = vmatprep.subr.bf16.mxu0 0
          %2107 = vmatpush1.bf16.msra.mxu0 0
          %2108 = vmatprep.mubr.bf16.mxu0 0
          %2109 = vmatmul.mubr.bf16.gmra.mrb[0].mxu0 %v1997
          %v2110 = vpop.f32.mrb[0].mxu0
          %v2111 = vadd.f32 %v2026, %v2110
          %v2112 = vpop.f32.mrb[0].mxu0
          %v2113 = vpop.f32.mrb[0].mxu0
          %v2114 = vadd.f32 %v2026, %v2113
          %v2115 = vpop.f32.mrb[0].mxu0
          %2116 = vmatprep.mubr.bf16.mxu0 0
          %2117 = vmatmul.mubr.bf16.gmra.mrb[0].mxu0 %v1998
          %v2118 = vpop.f32.mrb[0].mxu0
          %v2119 = vadd.f32 %v2026, %v2118
          %v2120 = vpop.f32.mrb[0].mxu0
          %v2121 = vpop.f32.mrb[0].mxu0
          %v2122 = vadd.f32 %v2026, %v2121
          %v2123 = vpop.f32.mrb[0].mxu0
          %2124 = vmatprep.mubr.bf16.mxu0 0
          %2125 = vmatmul.mubr.bf16.gmra.mrb[0].mxu0 %v1999
          %v2126 = vpop.f32.mrb[0].mxu0
          %v2127 = vadd.f32 %v2026, %v2126
          %v2128 = vpop.f32.mrb[0].mxu0
          %v2129 = vpop.f32.mrb[0].mxu0
          %v2130 = vadd.f32 %v2026, %v2129
          %v2131 = vpop.f32.mrb[0].mxu0
          %2132 = vmatprep.mubr.bf16.mxu0 0
          %2133 = vmatmul.mubr.bf16.gmra.mrb[0].mxu0 %v2000
          %v2134 = vpop.f32.mrb[0].mxu0
          %v2135 = vadd.f32 %v2026, %v2134
          %v2136 = vpop.f32.mrb[0].mxu0
          %v2137 = vpop.f32.mrb[0].mxu0
          %v2138 = vadd.f32 %v2026, %v2137
          %v2139 = vpop.f32.mrb[0].mxu0
          %2140 = vmatprep.mubr.bf16.mxu0 0
          %2141 = vmatmul.mubr.bf16.gmra.mrb[0].mxu0 %v2001
          %v2142 = vpop.f32.mrb[0].mxu0
          %v2143 = vadd.f32 %v2026, %v2142
          %v2144 = vpop.f32.mrb[0].mxu0
          %v2145 = vpop.f32.mrb[0].mxu0
          %v2146 = vadd.f32 %v2026, %v2145
          %v2147 = vpop.f32.mrb[0].mxu0
          %2148 = vmatprep.mubr.bf16.mxu0 0
          %2149 = vmatmul.mubr.bf16.gmra.mrb[0].mxu0 %v2002
          %v2150 = vpop.f32.mrb[0].mxu0
          %v2151 = vadd.f32 %v2026, %v2150
          %v2152 = vpop.f32.mrb[0].mxu0
          %v2153 = vpop.f32.mrb[0].mxu0
          %v2154 = vadd.f32 %v2026, %v2153
          %v2155 = vpop.f32.mrb[0].mxu0
          %2156 = vmatprep.mubr.bf16.mxu0 0
          %2157 = vmatmul.mubr.bf16.gmra.mrb[0].mxu0 %v2003
          %v2158 = vpop.f32.mrb[0].mxu0
          %v2159 = vadd.f32 %v2026, %v2158
          %v2160 = vpop.f32.mrb[0].mxu0
          %v2161 = vpop.f32.mrb[0].mxu0
          %v2162 = vadd.f32 %v2026, %v2161
          %v2163 = vpop.f32.mrb[0].mxu0
          %2164 = vmatprep.mubr.bf16.mxu0 0
          %2165 = vmatmul.mubr.bf16.gmra.mrb[0].mxu0 %v2004
          %v2166 = vpop.f32.mrb[0].mxu0
          %v2167 = vadd.f32 %v2026, %v2166
          %v2168 = vpop.f32.mrb[0].mxu0
          %v2169 = vpop.f32.mrb[0].mxu0
          %v2170 = vadd.f32 %v2026, %v2169
          %v2171 = vpop.f32.mrb[0].mxu0
          %2172 = vdwg.mxu0
          %v2173 = vmul.f32 %v2111, 0.5
          %v2174 = vmul.f32 %v2114, 0.5
          %v2175 = vmul.f32 %v2119, 0.5
          %v2176 = vmul.f32 %v2122, 0.5
          %v2177 = vmul.f32 %v2127, 0.5
          %v2178 = vmul.f32 %v2130, 0.5
          %v2179 = vmul.f32 %v2135, 0.5
          %v2180 = vmul.f32 %v2138, 0.5
          %v2181 = vmul.f32 %v2143, 0.5
          %v2182 = vmul.f32 %v2146, 0.5
          %v2183 = vmul.f32 %v2151, 0.5
          %v2184 = vmul.f32 %v2154, 0.5
          %v2185 = vmul.f32 %v2159, 0.5
          %v2186 = vmul.f32 %v2162, 0.5
          %v2187 = vmul.f32 %v2167, 0.5
          %v2188 = vmul.f32 %v2170, 0.5
          %v2189 = vmul.f32 %v2111, 0.044715
          %v2190 = vmul.f32 %v2114, 0.044715
          %v2191 = vmul.f32 %v2119, 0.044715
          %v2192 = vmul.f32 %v2122, 0.044715
          %v2193 = vmul.f32 %v2127, 0.044715
          %v2194 = vmul.f32 %v2130, 0.044715
          %v2195 = vmul.f32 %v2135, 0.044715
          %v2196 = vmul.f32 %v2138, 0.044715
          %v2197 = vmul.f32 %v2143, 0.044715
          %v2198 = vmul.f32 %v2146, 0.044715
          %v2199 = vmul.f32 %v2151, 0.044715
          %v2200 = vmul.f32 %v2154, 0.044715
          %v2201 = vmul.f32 %v2159, 0.044715
          %v2202 = vmul.f32 %v2162, 0.044715
          %v2203 = vmul.f32 %v2167, 0.044715
          %v2204 = vmul.f32 %v2170, 0.044715
          %v2205 = vmul.f32 %v2189, %v2111
          %v2206 = vmul.f32 %v2190, %v2114
          %v2207 = vmul.f32 %v2191, %v2119
          %v2208 = vmul.f32 %v2192, %v2122
          %v2209 = vmul.f32 %v2193, %v2127
          %v2210 = vmul.f32 %v2194, %v2130
          %v2211 = vmul.f32 %v2195, %v2135
          %v2212 = vmul.f32 %v2196, %v2138
          %v2213 = vmul.f32 %v2197, %v2143
          %v2214 = vmul.f32 %v2198, %v2146
          %v2215 = vmul.f32 %v2199, %v2151
          %v2216 = vmul.f32 %v2200, %v2154
          %v2217 = vmul.f32 %v2201, %v2159
          %v2218 = vmul.f32 %v2202, %v2162
          %v2219 = vmul.f32 %v2203, %v2167
          %v2220 = vmul.f32 %v2204, %v2170
          %v2221 = vmul.f32 %v2205, %v2111
          %v2222 = vmul.f32 %v2206, %v2114
          %v2223 = vmul.f32 %v2207, %v2119
          %v2224 = vmul.f32 %v2208, %v2122
          %v2225 = vmul.f32 %v2209, %v2127
          %v2226 = vmul.f32 %v2210, %v2130
          %v2227 = vmul.f32 %v2211, %v2135
          %v2228 = vmul.f32 %v2212, %v2138
          %v2229 = vmul.f32 %v2213, %v2143
          %v2230 = vmul.f32 %v2214, %v2146
          %v2231 = vmul.f32 %v2215, %v2151
          %v2232 = vmul.f32 %v2216, %v2154
          %v2233 = vmul.f32 %v2217, %v2159
          %v2234 = vmul.f32 %v2218, %v2162
          %v2235 = vmul.f32 %v2219, %v2167
          %v2236 = vmul.f32 %v2220, %v2170
          %v2237 = vadd.f32 %v2111, %v2221
          %v2238 = vadd.f32 %v2114, %v2222
          %v2239 = vadd.f32 %v2119, %v2223
          %v2240 = vadd.f32 %v2122, %v2224
          %v2241 = vadd.f32 %v2127, %v2225
          %v2242 = vadd.f32 %v2130, %v2226
          %v2243 = vadd.f32 %v2135, %v2227
          %v2244 = vadd.f32 %v2138, %v2228
          %v2245 = vadd.f32 %v2143, %v2229
          %v2246 = vadd.f32 %v2146, %v2230
          %v2247 = vadd.f32 %v2151, %v2231
          %v2248 = vadd.f32 %v2154, %v2232
          %v2249 = vadd.f32 %v2159, %v2233
          %v2250 = vadd.f32 %v2162, %v2234
          %v2251 = vadd.f32 %v2167, %v2235
          %v2252 = vadd.f32 %v2170, %v2236
          %v2253 = vmul.f32 %v2237, 0.7978846
          %v2254 = vmul.f32 %v2238, 0.7978846
          %v2255 = vmul.f32 %v2239, 0.7978846
          %v2256 = vmul.f32 %v2240, 0.7978846
          %v2257 = vmul.f32 %v2241, 0.7978846
          %v2258 = vmul.f32 %v2242, 0.7978846
          %v2259 = vmul.f32 %v2243, 0.7978846
          %v2260 = vmul.f32 %v2244, 0.7978846
          %v2261 = vmul.f32 %v2245, 0.7978846
          %v2262 = vmul.f32 %v2246, 0.7978846
          %v2263 = vmul.f32 %v2247, 0.7978846
          %v2264 = vmul.f32 %v2248, 0.7978846
          %v2265 = vmul.f32 %v2249, 0.7978846
          %v2266 = vmul.f32 %v2250, 0.7978846
          %v2267 = vmul.f32 %v2251, 0.7978846
          %v2268 = vmul.f32 %v2252, 0.7978846
          %v2269 = vtanh.pop %v2253
          %v2270 = vtanh.pop %v2254
          %v2271 = vtanh.pop %v2255
          %v2272 = vtanh.pop %v2256
          %v2273 = vtanh.pop %v2257
          %v2274 = vtanh.pop %v2258
          %v2275 = vtanh.pop %v2259
          %v2276 = vtanh.pop %v2260
          %v2277 = vtanh.pop %v2261
          %v2278 = vtanh.pop %v2262
          %v2279 = vtanh.pop %v2263
          %v2280 = vtanh.pop %v2264
          %v2281 = vtanh.pop %v2265
          %v2282 = vtanh.pop %v2266
          %v2283 = vtanh.pop %v2267
          %v2284 = vtanh.pop %v2268
          %v2285 = vadd.f32 %v2269, 1.0
          %v2286 = vadd.f32 %v2270, 1.0
          %v2287 = vadd.f32 %v2271, 1.0
          %v2288 = vadd.f32 %v2272, 1.0
          %v2289 = vadd.f32 %v2273, 1.0
          %v2290 = vadd.f32 %v2274, 1.0
          %v2291 = vadd.f32 %v2275, 1.0
          %v2292 = vadd.f32 %v2276, 1.0
          %v2293 = vadd.f32 %v2277, 1.0
          %v2294 = vadd.f32 %v2278, 1.0
          %v2295 = vadd.f32 %v2279, 1.0
          %v2296 = vadd.f32 %v2280, 1.0
          %v2297 = vadd.f32 %v2281, 1.0
          %v2298 = vadd.f32 %v2282, 1.0
          %v2299 = vadd.f32 %v2283, 1.0
          %v2300 = vadd.f32 %v2284, 1.0
          %v2301 = vmul.f32 %v2173, %v2285
          %v2302 = vmul.f32 %v2174, %v2286
          %v2303 = vmul.f32 %v2175, %v2287
          %v2304 = vmul.f32 %v2176, %v2288
          %v2305 = vmul.f32 %v2177, %v2289
          %v2306 = vmul.f32 %v2178, %v2290
          %v2307 = vmul.f32 %v2179, %v2291
          %v2308 = vmul.f32 %v2180, %v2292
          %v2309 = vmul.f32 %v2181, %v2293
          %v2310 = vmul.f32 %v2182, %v2294
          %v2311 = vmul.f32 %v2183, %v2295
          %v2312 = vmul.f32 %v2184, %v2296
          %v2313 = vmul.f32 %v2185, %v2297
          %v2314 = vmul.f32 %v2186, %v2298
          %v2315 = vmul.f32 %v2187, %v2299
          %v2316 = vmul.f32 %v2188, %v2300
          %v2317 = vpack.c.bf16 %v2302, %v2301
          %v2318 = vpack.c.bf16 %v2304, %v2303
          %v2319 = vpack.c.bf16 %v2306, %v2305
          %v2320 = vpack.c.bf16 %v2308, %v2307
          %v2321 = vpack.c.bf16 %v2310, %v2309
          %v2322 = vpack.c.bf16 %v2312, %v2311
          %v2323 = vpack.c.bf16 %v2314, %v2313
          %v2324 = vpack.c.bf16 %v2316, %v2315
          %2325 = vst.msk [vmem:[#allocation2] sm:$0xff] %vm819, %v2317
          %2326 = vst.msk [vmem:[#allocation2 + $0x8] sm:$0xff] %vm819, %v2318
          %2327 = vst.msk [vmem:[#allocation2 + $0x10] sm:$0xff] %vm819, %v2319
          %2328 = vst.msk [vmem:[#allocation2 + $0x18] sm:$0xff] %vm819, %v2320
          %2329 = vst.msk [vmem:[#allocation2 + $0x20] sm:$0xff] %vm819, %v2321
          %2330 = vst.msk [vmem:[#allocation2 + $0x28] sm:$0xff] %vm819, %v2322
          %2331 = vst.msk [vmem:[#allocation2 + $0x30] sm:$0xff] %vm819, %v2323
          %2332 = vst.msk [vmem:[#allocation2 + $0x38] sm:$0xff] %vm819, %v2324
          %2341 = vrot.lane.b32.xlu0 %v2317, 96
          %v2342 = vpop.permute.xlu0 %2341
          %2343 = vrot.lane.b32.xlu0 %v2318, 96
          %v2344 = vpop.permute.xlu0 %2343
          %2345 = vrot.lane.b32.xlu0 %v2319, 96
          %v2346 = vpop.permute.xlu0 %2345
          %2347 = vrot.lane.b32.xlu0 %v2320, 96
          %v2348 = vpop.permute.xlu0 %2347
          %2349 = vrot.lane.b32.xlu0 %v2321, 96
          %v2350 = vpop.permute.xlu0 %2349
          %2351 = vrot.lane.b32.xlu0 %v2322, 96
          %v2352 = vpop.permute.xlu0 %2351
          %2353 = vrot.lane.b32.xlu0 %v2323, 96
          %v2354 = vpop.permute.xlu0 %2353
          %2355 = vrot.lane.b32.xlu0 %v2324, 96
          %v2356 = vpop.permute.xlu0 %2355
          %s2365 = scalar_lea.vmem [#allocation2], 64
          %2366 = vst.msk [vmem:[%s2365] sm:$0xff] %vm819, %v2342
          %2367 = vst.msk [vmem:[%s2365 + $0x8] sm:$0xff] %vm819, %v2344
          %2368 = vst.msk [vmem:[%s2365 + $0x10] sm:$0xff] %vm819, %v2346
          %2369 = vst.msk [vmem:[%s2365 + $0x18] sm:$0xff] %vm819, %v2348
          %2370 = vst.msk [vmem:[%s2365 + $0x20] sm:$0xff] %vm819, %v2350
          %2371 = vst.msk [vmem:[%s2365 + $0x28] sm:$0xff] %vm819, %v2352
          %2372 = vst.msk [vmem:[%s2365 + $0x30] sm:$0xff] %vm819, %v2354
          %2373 = vst.msk [vmem:[%s2365 + $0x38] sm:$0xff] %vm819, %v2356
          %2374 = vrot.lane.b32.xlu0 %v2317, 64
          %v2375 = vpop.permute.xlu0 %2374
          %2376 = vrot.lane.b32.xlu0 %v2318, 64
          %v2377 = vpop.permute.xlu0 %2376
          %2378 = vrot.lane.b32.xlu0 %v2319, 64
          %v2379 = vpop.permute.xlu0 %2378
          %2380 = vrot.lane.b32.xlu0 %v2320, 64
          %v2381 = vpop.permute.xlu0 %2380
          %2382 = vrot.lane.b32.xlu0 %v2321, 64
          %v2383 = vpop.permute.xlu0 %2382
          %2384 = vrot.lane.b32.xlu0 %v2322, 64
          %v2385 = vpop.permute.xlu0 %2384
          %2386 = vrot.lane.b32.xlu0 %v2323, 64
          %v2387 = vpop.permute.xlu0 %2386
          %2388 = vrot.lane.b32.xlu0 %v2324, 64
          %v2389 = vpop.permute.xlu0 %2388
          %s2398 = scalar_lea.vmem [#allocation2], 128
          %2399 = vst.msk [vmem:[%s2398] sm:$0xff] %vm819, %v2375
          %2400 = vst.msk [vmem:[%s2398 + $0x8] sm:$0xff] %vm819, %v2377
          %2401 = vst.msk [vmem:[%s2398 + $0x10] sm:$0xff] %vm819, %v2379
          %2402 = vst.msk [vmem:[%s2398 + $0x18] sm:$0xff] %vm819, %v2381
          %2403 = vst.msk [vmem:[%s2398 + $0x20] sm:$0xff] %vm819, %v2383
          %2404 = vst.msk [vmem:[%s2398 + $0x28] sm:$0xff] %vm819, %v2385
          %2405 = vst.msk [vmem:[%s2398 + $0x30] sm:$0xff] %vm819, %v2387
          %2406 = vst.msk [vmem:[%s2398 + $0x38] sm:$0xff] %vm819, %v2389
          %2407 = vrot.lane.b32.xlu0 %v2317, 32
          %v2408 = vpop.permute.xlu0 %2407
          %2409 = vrot.lane.b32.xlu0 %v2318, 32
          %v2410 = vpop.permute.xlu0 %2409
          %2411 = vrot.lane.b32.xlu0 %v2319, 32
          %v2412 = vpop.permute.xlu0 %2411
          %2413 = vrot.lane.b32.xlu0 %v2320, 32
          %v2414 = vpop.permute.xlu0 %2413
          %2415 = vrot.lane.b32.xlu0 %v2321, 32
          %v2416 = vpop.permute.xlu0 %2415
          %2417 = vrot.lane.b32.xlu0 %v2322, 32
          %v2418 = vpop.permute.xlu0 %2417
          %2419 = vrot.lane.b32.xlu0 %v2323, 32
          %v2420 = vpop.permute.xlu0 %2419
          %2421 = vrot.lane.b32.xlu0 %v2324, 32
          %v2422 = vpop.permute.xlu0 %2421
          %s2431 = scalar_lea.vmem [#allocation2], 192
          %2432 = vst.msk [vmem:[%s2431] sm:$0xff] %vm819, %v2408
          %2433 = vst.msk [vmem:[%s2431 + $0x8] sm:$0xff] %vm819, %v2410
          %2434 = vst.msk [vmem:[%s2431 + $0x10] sm:$0xff] %vm819, %v2412
          %2435 = vst.msk [vmem:[%s2431 + $0x18] sm:$0xff] %vm819, %v2414
          %2436 = vst.msk [vmem:[%s2431 + $0x20] sm:$0xff] %vm819, %v2416
          %2437 = vst.msk [vmem:[%s2431 + $0x28] sm:$0xff] %vm819, %v2418
          %2438 = vst.msk [vmem:[%s2431 + $0x30] sm:$0xff] %vm819, %v2420
          %2439 = vst.msk [vmem:[%s2431 + $0x38] sm:$0xff] %vm819, %v2422
        $region96: #{tpu_custom_call.1} parent=75 // pred_fallthru
          _
        %s2440 = smul.u32 %s38, 8
        %s2441 = smul.addr %s2440, 8
        %s2442 = scalar_lea.vmem [#allocation2], %s2441
        %v2443 = vld [vmem:[%s2442] sm:$0xff]
        %v2444 = vld [vmem:[%s2442 + $0x8] sm:$0xff]
        %v2445 = vld [vmem:[%s2442 + $0x10] sm:$0xff]
        %v2446 = vld [vmem:[%s2442 + $0x18] sm:$0xff]
        %v2447 = vld [vmem:[%s2442 + $0x20] sm:$0xff]
        %v2448 = vld [vmem:[%s2442 + $0x28] sm:$0xff]
        %v2449 = vld [vmem:[%s2442 + $0x30] sm:$0xff]
        %v2450 = vld [vmem:[%s2442 + $0x38] sm:$0xff]
        %v2451 = vld [vmem:[%s599] sm:$0xf]
        %v2452 = vld [vmem:[%s599 + $0x4] sm:$0xf]
        %v2453 = vld [vmem:[%s599 + $0x8] sm:$0xf]
        %v2454 = vld [vmem:[%s599 + $0xc] sm:$0xf]
        %v2455 = vld [vmem:[%s602] sm:$0x1]
        %v2457 = vlaneseq
        %v2458 = vshrl.u32 %v2457, 7
        %v2459 = vsub.s32 0, %v2458
        %v2460 = vrot.slane %v2455, %v2459
        %v2466 = vunpack.c.l.b16 %v2451
        %v2467 = vunpack.c.l.b16 %v2452
        %v2468 = vunpack.c.l.b16 %v2453
        %v2469 = vunpack.c.l.b16 %v2454
        %v2470 = vpack.c.b16 %v2467, %v2466
        %v2471 = vpack.c.b16 %v2469, %v2468
        %vm2474 = vcmask 261120
        %v2476 = vsel %vm2474, %v2443, 0
        %v2479 = vsel %vm2474, %v2444, 0
        %v2482 = vsel %vm2474, %v2445, 0
        %v2485 = vsel %vm2474, %v2446, 0
        %v2488 = vsel %vm2474, %v2447, 0
        %v2491 = vsel %vm2474, %v2448, 0
        %v2494 = vsel %vm2474, %v2449, 0
        %v2497 = vsel %vm2474, %v2450, 0
        %2499 = vmatprep.subr.bf16.mxu0 0
        %2500 = vmatpush1.bf16.msra.mxu0 %v2470
        %2501 = vmatprep.subr.bf16.mxu0 0
        %2502 = vmatpush1.bf16.msra.mxu0 %v2471
        %2503 = vmatprep.subr.bf16.mxu0 0
        %2504 = vmatpush1.bf16.msra.mxu0 0
        %2505 = vmatprep.subr.bf16.mxu0 0
        %2506 = vmatpush1.bf16.msra.mxu0 0
        %2507 = vmatprep.subr.bf16.mxu0 0
        %2508 = vmatpush1.bf16.msra.mxu0 0
        %2509 = vmatprep.subr.bf16.mxu0 0
        %2510 = vmatpush1.bf16.msra.mxu0 0
        %2511 = vmatprep.subr.bf16.mxu0 0
        %2512 = vmatpush1.bf16.msra.mxu0 0
        %2513 = vmatprep.subr.bf16.mxu0 0
        %2514 = vmatpush1.bf16.msra.mxu0 0
        %2515 = vmatprep.subr.bf16.mxu0 0
        %2516 = vmatpush1.bf16.msra.mxu0 0
        %2517 = vmatprep.subr.bf16.mxu0 0
        %2518 = vmatpush1.bf16.msra.mxu0 0
        %2519 = vmatprep.subr.bf16.mxu0 0
        %2520 = vmatpush1.bf16.msra.mxu0 0
        %2521 = vmatprep.subr.bf16.mxu0 0
        %2522 = vmatpush1.bf16.msra.mxu0 0
        %2523 = vmatprep.subr.bf16.mxu0 0
        %2524 = vmatpush1.bf16.msra.mxu0 0
        %2525 = vmatprep.subr.bf16.mxu0 0
        %2526 = vmatpush1.bf16.msra.mxu0 0
        %2527 = vmatprep.subr.bf16.mxu0 0
        %2528 = vmatpush1.bf16.msra.mxu0 0
        %2529 = vmatprep.subr.bf16.mxu0 0
        %2530 = vmatpush1.bf16.msra.mxu0 0
        %2531 = vmatprep.mubr.bf16.mxu0 0
        %2532 = vmatmul.mubr.bf16.gmra.mrb[0].mxu0 %v2476
        %v2533 = vpop.f32.mrb[0].mxu0
        %v2534 = vadd.f32 %v2460, %v2533
        %v2535 = vpop.f32.mrb[0].mxu0
        %v2536 = vpop.f32.mrb[0].mxu0
        %v2537 = vadd.f32 %v2460, %v2536
        %v2538 = vpop.f32.mrb[0].mxu0
        %2539 = vmatprep.mubr.bf16.mxu0 0
        %2540 = vmatmul.mubr.bf16.gmra.mrb[0].mxu0 %v2479
        %v2541 = vpop.f32.mrb[0].mxu0
        %v2542 = vadd.f32 %v2460, %v2541
        %v2543 = vpop.f32.mrb[0].mxu0
        %v2544 = vpop.f32.mrb[0].mxu0
        %v2545 = vadd.f32 %v2460, %v2544
        %v2546 = vpop.f32.mrb[0].mxu0
        %2547 = vmatprep.mubr.bf16.mxu0 0
        %2548 = vmatmul.mubr.bf16.gmra.mrb[0].mxu0 %v2482
        %v2549 = vpop.f32.mrb[0].mxu0
        %v2550 = vadd.f32 %v2460, %v2549
        %v2551 = vpop.f32.mrb[0].mxu0
        %v2552 = vpop.f32.mrb[0].mxu0
        %v2553 = vadd.f32 %v2460, %v2552
        %v2554 = vpop.f32.mrb[0].mxu0
        %2555 = vmatprep.mubr.bf16.mxu0 0
        %2556 = vmatmul.mubr.bf16.gmra.mrb[0].mxu0 %v2485
        %v2557 = vpop.f32.mrb[0].mxu0
        %v2558 = vadd.f32 %v2460, %v2557
        %v2559 = vpop.f32.mrb[0].mxu0
        %v2560 = vpop.f32.mrb[0].mxu0
        %v2561 = vadd.f32 %v2460, %v2560
        %v2562 = vpop.f32.mrb[0].mxu0
        %2563 = vmatprep.mubr.bf16.mxu0 0
        %2564 = vmatmul.mubr.bf16.gmra.mrb[0].mxu0 %v2488
        %v2565 = vpop.f32.mrb[0].mxu0
        %v2566 = vadd.f32 %v2460, %v2565
        %v2567 = vpop.f32.mrb[0].mxu0
        %v2568 = vpop.f32.mrb[0].mxu0
        %v2569 = vadd.f32 %v2460, %v2568
        %v2570 = vpop.f32.mrb[0].mxu0
        %2571 = vmatprep.mubr.bf16.mxu0 0
        %2572 = vmatmul.mubr.bf16.gmra.mrb[0].mxu0 %v2491
        %v2573 = vpop.f32.mrb[0].mxu0
        %v2574 = vadd.f32 %v2460, %v2573
        %v2575 = vpop.f32.mrb[0].mxu0
        %v2576 = vpop.f32.mrb[0].mxu0
        %v2577 = vadd.f32 %v2460, %v2576
        %v2578 = vpop.f32.mrb[0].mxu0
        %2579 = vmatprep.mubr.bf16.mxu0 0
        %2580 = vmatmul.mubr.bf16.gmra.mrb[0].mxu0 %v2494
        %v2581 = vpop.f32.mrb[0].mxu0
        %v2582 = vadd.f32 %v2460, %v2581
        %v2583 = vpop.f32.mrb[0].mxu0
        %v2584 = vpop.f32.mrb[0].mxu0
        %v2585 = vadd.f32 %v2460, %v2584
        %v2586 = vpop.f32.mrb[0].mxu0
        %2587 = vmatprep.mubr.bf16.mxu0 0
        %2588 = vmatmul.mubr.bf16.gmra.mrb[0].mxu0 %v2497
        %v2589 = vpop.f32.mrb[0].mxu0
        %v2590 = vadd.f32 %v2460, %v2589
        %v2591 = vpop.f32.mrb[0].mxu0
        %v2592 = vpop.f32.mrb[0].mxu0
        %v2593 = vadd.f32 %v2460, %v2592
        %v2594 = vpop.f32.mrb[0].mxu0
        %2595 = vdwg.mxu0
        %v2596 = vpack.c.bf16 %v2537, %v2534
        %v2597 = vpack.c.bf16 %v2545, %v2542
        %v2598 = vpack.c.bf16 %v2553, %v2550
        %v2599 = vpack.c.bf16 %v2561, %v2558
        %v2600 = vpack.c.bf16 %v2569, %v2566
        %v2601 = vpack.c.bf16 %v2577, %v2574
        %v2602 = vpack.c.bf16 %v2585, %v2582
        %v2603 = vpack.c.bf16 %v2593, %v2590
        %v2612 = vunpack.c.l.b16 %v2596
        %v2613 = vunpack.c.h.b16 %v2596
        %v2614 = vunpack.c.l.b16 %v2597
        %v2615 = vunpack.c.h.b16 %v2597
        %v2616 = vunpack.c.l.b16 %v2598
        %v2617 = vunpack.c.h.b16 %v2598
        %v2618 = vunpack.c.l.b16 %v2599
        %v2619 = vunpack.c.h.b16 %v2599
        %v2620 = vunpack.c.l.b16 %v2600
        %v2621 = vunpack.c.h.b16 %v2600
        %v2622 = vunpack.c.l.b16 %v2601
        %v2623 = vunpack.c.h.b16 %v2601
        %v2624 = vunpack.c.l.b16 %v2602
        %v2625 = vunpack.c.h.b16 %v2602
        %v2626 = vunpack.c.l.b16 %v2603
        %v2627 = vunpack.c.h.b16 %v2603
        %v2628 = vpack.c.b16 %v2612, %v2612
        %v2629 = vpack.c.b16 %v2613, %v2613
        %v2630 = vpack.c.b16 %v2614, %v2614
        %v2631 = vpack.c.b16 %v2615, %v2615
        %v2632 = vpack.c.b16 %v2616, %v2616
        %v2633 = vpack.c.b16 %v2617, %v2617
        %v2634 = vpack.c.b16 %v2618, %v2618
        %v2635 = vpack.c.b16 %v2619, %v2619
        %v2636 = vpack.c.b16 %v2620, %v2620
        %v2637 = vpack.c.b16 %v2621, %v2621
        %v2638 = vpack.c.b16 %v2622, %v2622
        %v2639 = vpack.c.b16 %v2623, %v2623
        %v2640 = vpack.c.b16 %v2624, %v2624
        %v2641 = vpack.c.b16 %v2625, %v2625
        %v2642 = vpack.c.b16 %v2626, %v2626
        %v2643 = vpack.c.b16 %v2627, %v2627
        %2660 = vst [vmem:[%s583] sm:$0xf] %v2628
        %2661 = vst [vmem:[%s583 + $0x4] sm:$0xf] %v2629
        %2662 = vst [vmem:[%s583 + $0x8] sm:$0xf] %v2630
        %2663 = vst [vmem:[%s583 + $0xc] sm:$0xf] %v2631
        %2664 = vst [vmem:[%s583 + $0x10] sm:$0xf] %v2632
        %2665 = vst [vmem:[%s583 + $0x14] sm:$0xf] %v2633
        %2666 = vst [vmem:[%s583 + $0x18] sm:$0xf] %v2634
        %2667 = vst [vmem:[%s583 + $0x1c] sm:$0xf] %v2635
        %2668 = vst [vmem:[%s583 + $0x20] sm:$0xf] %v2636
        %2669 = vst [vmem:[%s583 + $0x24] sm:$0xf] %v2637
        %2670 = vst [vmem:[%s583 + $0x28] sm:$0xf] %v2638
        %2671 = vst [vmem:[%s583 + $0x2c] sm:$0xf] %v2639
        %2672 = vst [vmem:[%s583 + $0x30] sm:$0xf] %v2640
        %2673 = vst [vmem:[%s583 + $0x34] sm:$0xf] %v2641
        %2674 = vst [vmem:[%s583 + $0x38] sm:$0xf] %v2642
        %2675 = vst [vmem:[%s583 + $0x3c] sm:$0xf] %v2643
        %s2676 = sand.u32 %s376, 1
        %s2677 = scalar_lea.sflag [#allocation5], %s2676
        %s2678 = sand.u32 %s376, 1
        %s2679 = smul.addr %s2678, 64
        %s2680 = scalar_lea.vmem [#allocation11], %s2679
        // Predicated region
        $region97: #{tpu_custom_call.1} parent=75 // pred_check
          %p2681 = pneg %p386
        $region98: #{tpu_custom_call.1} parent=75 // pred_check_branch
          %2683 = sbr.rel (%p2681) target = $region100
        $region99: #{tpu_custom_call.1} parent=75 // pred_region
          %s2684 = sadd.s32 %s38, %s37
          %s2685 = smul.u32 16, %s36
          %s2687 = ssub.s32 1024, 1024
          %2688 = vsyncadd %s2677, %s2687
          %s2689 = smul.addr %s2685, 4
          %s2690 = sadd.s32 %s2684, %s2689
          %s2691 = smul.addr %s2690, 64
          %s2692 = scalar_lea.hbm %s14, %s2691
          %s2693 = sshll.u32 %s2680, 4
          %s2694 = int_to_ptr.vmem [resolvable:$true] %s2693
          %2699 = dma.vmem_to_hbm [thread:$0]  %s2694, 1024, %s2692, %s2677, 64, 256, 4
        $region100: #{tpu_custom_call.1} parent=75 // pred_fallthru
          _
      $region76: #{tpu_custom_call.1} parent=5 // pred_fallthru
        _
      %p2700 = scmp.le.s32.totalorder 2, %s26
      // Predicated region
      $region101: #{tpu_custom_call.1} parent=5 // pred_check
        %p2701 = pneg %p2700
      $region102: #{tpu_custom_call.1} parent=5 // pred_check_branch
        %2703 = sbr.rel (%p2701) target = $region104
      $region103: #{tpu_custom_call.1} parent=5 // pred_region
        %s2704 = ssub.s32 %s26, 2
        // Predicated region
        $region105: #{tpu_custom_call.1} parent=103 // pred_check
          %p2705 = pneg %p392
        $region106: #{tpu_custom_call.1} parent=103 // pred_check_branch
          %2707 = sbr.rel (%p2705) target = $region108
        $region107: #{tpu_custom_call.1} parent=103 // pred_region
          %s2708 = sand.u32 %s377, 1
          %s2709 = scalar_lea.sflag [#allocation5], %s2708
          %s2710 = sand.u32 %s377, 1
          %s2711 = smul.addr %s2710, 64
          %s2712 = scalar_lea.vmem [#allocation11], %s2711
          %2713 = dma.done %s2709, 1024
        $region108: #{tpu_custom_call.1} parent=103 // pred_fallthru
          _
      $region104: #{tpu_custom_call.1} parent=5 // pred_fallthru
        _
    $region6: #{tpu_custom_call.1} parent=1 // loop_footer
      %s30 = sadd.s32 1, %s26
    $region7: #{tpu_custom_call.1} parent=1 // loop_footer_branch
      %25 = sbr.rel target = $region3
    $region8: #{tpu_custom_call.1} parent=1 // loop_exit
      _
    %2714 = vsyncpa [#allocation4], 1
    %s2715 = scalar_lea.sflag [#allocation4], 1
    %2716 = vsyncpa %s2715, 1
    %2717 = vsyncpa [#allocation7], 1
    %2718 = vsyncpa [#allocation10], 1
    %2719 = vsyncpa [#allocation5], 1
    %s2720 = scalar_lea.sflag [#allocation5], 1
    %2721 = vsyncpa %s2720, 1

</llo_original>
